<compile_context>
chip_gen: v5e
topology: v5e:2x2
jax: 0.10.0
libtpu: 0.0.40
codegen_flags: <defaults>
</compile_context>

<pallas_src>
import jax
import jax.numpy as jnp
from jax.experimental import pallas as pl
from jax.experimental.pallas import tpu as pltpu


# ----------------------------------------------------------------------------
# Fused kernel: LSTM recurrence (unrolled) + attention + output projection.
# ----------------------------------------------------------------------------
def fused_kernel(pregates_ref, h0_ref, c0_ref, whh_ref,
                 wu_ref, bu_ref, wv_ref, bv_ref, wo_ref, bo_ref,
                 score_ref, w_ref):
    T = pregates_ref.shape[0]
    B, m = h0_ref.shape
    mxu_dtype = whh_ref.dtype            # f32 or bf16 (MXU operands only)

    h = h0_ref[...].astype(jnp.float32)  # (B, m) f32 state
    c = c0_ref[...].astype(jnp.float32)
    whh = whh_ref[...]                   # (m, 4m), hoisted load

    # Fully unrolled recurrence: T is a static Python int, so a plain Python
    # loop gives straight-line code (same as fori_loop(unroll=True)) with
    # concrete indices; only h @ W_hh sits on the serial latency chain.
    hs_steps = []
    for t in range(T):
        gates = (pregates_ref[t].astype(jnp.float32)               # (B, 4m)
                 + jnp.dot(h.astype(mxu_dtype), whh,
                           preferred_element_type=jnp.float32))
        i = jax.nn.sigmoid(gates[:, 0 * m:1 * m])
        f = jax.nn.sigmoid(gates[:, 1 * m:2 * m])
        g = jnp.tanh(gates[:, 2 * m:3 * m])
        o = jax.nn.sigmoid(gates[:, 3 * m:4 * m])
        c = f * c + i * g
        h = o * jnp.tanh(c)
        hs_steps.append(h)               # encoder_output stays on-chip

    # Attention: e = vattn(tanh(Uattn(h_s))), softmax over T.
    u = jnp.tanh(jnp.dot(h.astype(mxu_dtype), wu_ref[...],
                         preferred_element_type=jnp.float32)
                 + bu_ref[...].astype(jnp.float32))                 # (B, m)
    e = (jnp.dot(u.astype(mxu_dtype), wv_ref[...],
                 preferred_element_type=jnp.float32)
         + bv_ref[...].astype(jnp.float32))                         # (B, T)

    e_max = jnp.max(e, axis=1, keepdims=True)
    p = jnp.exp(e - e_max)
    w = p * pl.reciprocal(jnp.sum(p, axis=1, keepdims=True), approx=False)  # (B, T)

    # bmm-equivalent weighted sum over T: T cheap VPU FMAs, no transpose, no
    # materialized (T, B, m) encoder tensor.
    attn = jnp.zeros((B, m), jnp.float32)
    for t in range(T):
        attn = attn + w[:, t:t + 1] * hs_steps[t]                   # (B, m)

    score = (jnp.dot(attn.astype(mxu_dtype), wo_ref[...],
                     preferred_element_type=jnp.float32)
             + bo_ref[...].astype(jnp.float32))                     # (B, O)

    score_ref[...] = score.astype(score_ref.dtype)
    w_ref[...] = w.astype(w_ref.dtype)


# ----------------------------------------------------------------------------
# Model wrapper: mirrors AttnRnnModel.forward.
# ----------------------------------------------------------------------------
HIDDEN_SIZE = 256


def attn_rnn_forward(params, x, hidden, *, use_bf16_mxu=False):
    """x: (T, B, D) f32; hidden: (h0, c0) each (1, B, m). Returns (score, weights)."""
    h0, c0 = hidden
    h0 = h0[0]
    c0 = c0[0]
    T, B, D = x.shape
    m = h0.shape[1]
    O = params["wo"].shape[0]
    mxu = jnp.bfloat16 if use_bf16_mxu else jnp.float32

    # Dropout(p=0.2) -> identity (inference mode).
    # Hoisted input projection: ONE (T*B, D) x (D, 4m) matmul with the
    # combined LSTM bias folded in, removed from the serial recurrence.
    w_ih_t = params["w_ih"].T.astype(mxu)                    # (D, 4m)
    bias = (params["b_ih"] + params["b_hh"]).reshape(1, -1)  # (1, 4m) f32
    pregates = (jnp.dot(x.reshape(T * B, D).astype(mxu), w_ih_t,
                        preferred_element_type=jnp.float32)
                + bias).reshape(T, B, 4 * m)

    full = lambda shape: pl.BlockSpec(shape, lambda i: (0,) * len(shape))
    score, weights = pl.pallas_call(
        fused_kernel,
        out_shape=(jax.ShapeDtypeStruct((B, O), jnp.float32),
                   jax.ShapeDtypeStruct((B, T), jnp.float32)),
        grid_spec=pltpu.PrefetchScalarGridSpec(
            num_scalar_prefetch=0,
            grid=(1,),                               # single invocation; everything VMEM-resident
            in_specs=[
                full((T, B, 4 * m)),                 # pregates  (~256 KiB)
                full((B, m)), full((B, m)),          # h0, c0
                full((m, 4 * m)),                    # W_hh^T    (~1 MiB f32 / 512 KiB bf16)
                full((m, m)), full((1, m)),          # Uattn
                full((m, T)), full((1, T)),          # vattn
                full((m, O)), full((1, O)),          # out
            ],
            out_specs=[full((B, O)), full((B, T))],
        ),
        compiler_params=pltpu.CompilerParams(dimension_semantics=("arbitrary",)),
    )(pregates,
      h0, c0,
      params["w_hh"].T.astype(mxu),
      params["wu"].T.astype(mxu), params["bu"].reshape(1, -1),
      params["wv"].T.astype(mxu), params["bv"].reshape(1, -1),
      params["wo"].T.astype(mxu), params["bo"].reshape(1, -1))
    return score, weights


def init_params(key, seq_length, input_dim, output_dim, m=HIDDEN_SIZE):
    ks = jax.random.split(key, 10)
    s = 1.0 / jnp.sqrt(m)
    u = lambda k, shape: jax.random.uniform(k, shape, jnp.float32, -s, s)
    return dict(
        # LSTM (PyTorch layout: weight_ih (4m, D), weight_hh (4m, m); gate order i,f,g,o)
        w_ih=u(ks[0], (4 * m, input_dim)),
        w_hh=u(ks[1], (4 * m, m)),
        b_ih=u(ks[2], (4 * m,)),
        b_hh=u(ks[3], (4 * m,)),
        # Uattn: Linear(m, m)
        wu=u(ks[4], (m, m)), bu=u(ks[5], (m,)),
        # vattn: Linear(m, seq_length)
        wv=u(ks[6], (seq_length, m)), bv=u(ks[7], (seq_length,)),
        # out: Linear(m, output_dim)
        wo=u(ks[8], (output_dim, m)), bo=u(ks[9], (output_dim,)),
    )


# ----------------------------------------------------------------------------
# Pure-JAX reference (same math) for a sanity check.
# ----------------------------------------------------------------------------
def reference_forward(params, x, hidden):
    h = hidden[0][0]
    c = hidden[1][0]
    m = h.shape[1]
    enc = []
    for t in range(x.shape[0]):
        gates = x[t] @ params["w_ih"].T + params["b_ih"] + h @ params["w_hh"].T + params["b_hh"]
        i, f, g, o = (gates[:, 0:m], gates[:, m:2 * m], gates[:, 2 * m:3 * m], gates[:, 3 * m:])
        i, f, o = jax.nn.sigmoid(i), jax.nn.sigmoid(f), jax.nn.sigmoid(o)
        g = jnp.tanh(g)
        c = f * c + i * g
        h = o * jnp.tanh(c)
        enc.append(h)
    enc = jnp.stack(enc)                                      # (T, B, m)
    e = jnp.tanh(h @ params["wu"].T + params["bu"]) @ params["wv"].T + params["bv"]
    w = jax.nn.softmax(e, axis=1)                             # (B, T)
    attn = jnp.einsum("bt,tbm->bm", w, enc)
    score = attn @ params["wo"].T + params["bo"]
    return score, w


if __name__ == "__main__":
    T, B, D, O = 8, 8, 16, 8      # seq_length, batch, input_dim, output_dim
    m = HIDDEN_SIZE

    key = jax.random.PRNGKey(0)
    kp, kx = jax.random.split(key)
    params = init_params(kp, T, D, O, m)
    x = jax.random.normal(kx, (T, B, D), jnp.float32)
    hidden = (jnp.zeros((1, B, m), jnp.float32), jnp.zeros((1, B, m), jnp.float32))

    ref_score, ref_weights = reference_forward(params, x, hidden)

    # f32 MXU path (default; v5e-safe) -- tight check.
    fwd = jax.jit(lambda p, xx, hh: attn_rnn_forward(p, xx, hh, use_bf16_mxu=False))
    score, weights = fwd(params, x, hidden)
    jax.block_until_ready((score, weights))
    assert score.shape == (B, O) and weights.shape == (B, T)
    assert jnp.allclose(score, ref_score, rtol=1e-2, atol=1e-3)
    assert jnp.allclose(weights, ref_weights, rtol=1e-2, atol=1e-4)

    # bf16 MXU-operand path (v6e/v7x lever; elementwise math stays f32) -- loose check.
    fwd_bf16 = jax.jit(lambda p, xx, hh: attn_rnn_forward(p, xx, hh, use_bf16_mxu=True))
    score_b, weights_b = fwd_bf16(params, x, hidden)
    jax.block_until_ready((score_b, weights_b))
    assert jnp.allclose(score_b, ref_score, rtol=5e-2, atol=5e-2)
    assert jnp.allclose(weights_b, ref_weights, rtol=5e-2, atol=5e-2)

    print("KERNEL_OK")
</pallas_src>

<mosaic_0001>
module attributes {stable_mosaic.version = 11 : i64} {
  func.func @fused_kernel(%arg0: i32, %arg1: memref<8x8x1024xf32, #tpu.memory_space<vmem>>, %arg2: memref<8x256xf32, #tpu.memory_space<vmem>>, %arg3: memref<8x256xf32, #tpu.memory_space<vmem>>, %arg4: memref<256x1024xf32, #tpu.memory_space<vmem>>, %arg5: memref<256x256xf32, #tpu.memory_space<vmem>>, %arg6: memref<1x256xf32, #tpu.memory_space<vmem>>, %arg7: memref<256x8xf32, #tpu.memory_space<vmem>>, %arg8: memref<1x8xf32, #tpu.memory_space<vmem>>, %arg9: memref<256x8xf32, #tpu.memory_space<vmem>>, %arg10: memref<1x8xf32, #tpu.memory_space<vmem>>, %arg11: memref<8x8xf32, #tpu.memory_space<vmem>>, %arg12: memref<8x8xf32, #tpu.memory_space<vmem>>) attributes {dimension_semantics = [#tpu.dimension_semantics<arbitrary>], iteration_bounds = array<i64: 1>, scalar_prefetch = 0 : i64, scratch_operands = 0 : i64, tpu.core_type = #tpu.core_type<tc>, window_params = [{pipeline_mode = #tpu.pipeline_mode<synchronous>, transform_indices = @transform_0, window_bounds = array<i64: 8, 8, 1024>}, {pipeline_mode = #tpu.pipeline_mode<synchronous>, transform_indices = @transform_1, window_bounds = array<i64: 8, 256>}, {pipeline_mode = #tpu.pipeline_mode<synchronous>, transform_indices = @transform_2, window_bounds = array<i64: 8, 256>}, {pipeline_mode = #tpu.pipeline_mode<synchronous>, transform_indices = @transform_3, window_bounds = array<i64: 256, 1024>}, {pipeline_mode = #tpu.pipeline_mode<synchronous>, transform_indices = @transform_4, window_bounds = array<i64: 256, 256>}, {pipeline_mode = #tpu.pipeline_mode<synchronous>, transform_indices = @transform_5, window_bounds = array<i64: 1, 256>}, {pipeline_mode = #tpu.pipeline_mode<synchronous>, transform_indices = @transform_6, window_bounds = array<i64: 256, 8>}, {pipeline_mode = #tpu.pipeline_mode<synchronous>, transform_indices = @transform_7, window_bounds = array<i64: 1, 8>}, {pipeline_mode = #tpu.pipeline_mode<synchronous>, transform_indices = @transform_8, window_bounds = array<i64: 256, 8>}, {pipeline_mode = #tpu.pipeline_mode<synchronous>, transform_indices = @transform_9, window_bounds = array<i64: 1, 8>}, {pipeline_mode = #tpu.pipeline_mode<synchronous>, transform_indices = @transform_10, window_bounds = array<i64: 8, 8>}, {pipeline_mode = #tpu.pipeline_mode<synchronous>, transform_indices = @transform_11, window_bounds = array<i64: 8, 8>}]} {
    %c0 = arith.constant 0 : index
    %c0_0 = arith.constant 0 : index
    %0 = vector.load %arg2[%c0, %c0_0] : memref<8x256xf32, #tpu.memory_space<vmem>>, vector<8x256xf32>
    %c0_1 = arith.constant 0 : index
    %c0_2 = arith.constant 0 : index
    %1 = vector.load %arg3[%c0_1, %c0_2] : memref<8x256xf32, #tpu.memory_space<vmem>>, vector<8x256xf32>
    %c0_3 = arith.constant 0 : index
    %c0_4 = arith.constant 0 : index
    %2 = vector.load %arg4[%c0_3, %c0_4] : memref<256x1024xf32, #tpu.memory_space<vmem>>, vector<256x1024xf32>
    %c0_5 = arith.constant 0 : index
    %c0_6 = arith.constant 0 : index
    %c0_7 = arith.constant 0 : index
    %3 = vector.load %arg1[%c0_5, %c0_6, %c0_7] : memref<8x8x1024xf32, #tpu.memory_space<vmem>>, vector<1x8x1024xf32>
    %4 = vector.shape_cast %3 : vector<1x8x1024xf32> to vector<8x1024xf32>
    %cst = arith.constant dense<0.000000e+00> : vector<8x1024xf32>
    %5 = tpu.matmul %0, %2, %cst {dimension_numbers = #tpu.dot_dimension_numbers<[1], [0], [0], [1], [0, 0, 1, 1], [], []>} : vector<8x256xf32>, vector<256x1024xf32>, vector<8x1024xf32> -> vector<8x1024xf32>
    %6 = arith.addf %4, %5 : vector<8x1024xf32>
    %7 = vector.extract_strided_slice %6 {offsets = [0, 0], sizes = [8, 256], strides = [1, 1]} : vector<8x1024xf32> to vector<8x256xf32>
    %8 = arith.negf %7 : vector<8x256xf32>
    %9 = math.exp %8 : vector<8x256xf32>
    %cst_8 = arith.constant 1.000000e+00 : f32
    %10 = vector.broadcast %cst_8 : f32 to vector<8x256xf32>
    %11 = arith.addf %10, %9 : vector<8x256xf32>
    %12 = arith.divf %10, %11 : vector<8x256xf32>
    %13 = vector.extract_strided_slice %6 {offsets = [0, 256], sizes = [8, 256], strides = [1, 1]} : vector<8x1024xf32> to vector<8x256xf32>
    %14 = arith.negf %13 : vector<8x256xf32>
    %15 = math.exp %14 : vector<8x256xf32>
    %cst_9 = arith.constant 1.000000e+00 : f32
    %16 = vector.broadcast %cst_9 : f32 to vector<8x256xf32>
    %17 = arith.addf %16, %15 : vector<8x256xf32>
    %18 = arith.divf %16, %17 : vector<8x256xf32>
    %19 = vector.extract_strided_slice %6 {offsets = [0, 512], sizes = [8, 256], strides = [1, 1]} : vector<8x1024xf32> to vector<8x256xf32>
    %20 = math.tanh %19 : vector<8x256xf32>
    %21 = vector.extract_strided_slice %6 {offsets = [0, 768], sizes = [8, 256], strides = [1, 1]} : vector<8x1024xf32> to vector<8x256xf32>
    %22 = arith.negf %21 : vector<8x256xf32>
    %23 = math.exp %22 : vector<8x256xf32>
    %cst_10 = arith.constant 1.000000e+00 : f32
    %24 = vector.broadcast %cst_10 : f32 to vector<8x256xf32>
    %25 = arith.addf %24, %23 : vector<8x256xf32>
    %26 = arith.divf %24, %25 : vector<8x256xf32>
    %27 = arith.mulf %18, %1 : vector<8x256xf32>
    %28 = arith.mulf %12, %20 : vector<8x256xf32>
    %29 = arith.addf %27, %28 : vector<8x256xf32>
    %30 = math.tanh %29 : vector<8x256xf32>
    %31 = arith.mulf %26, %30 : vector<8x256xf32>
    %c1 = arith.constant 1 : index
    %c0_11 = arith.constant 0 : index
    %c0_12 = arith.constant 0 : index
    %32 = vector.load %arg1[%c1, %c0_11, %c0_12] : memref<8x8x1024xf32, #tpu.memory_space<vmem>>, vector<1x8x1024xf32>
    %33 = vector.shape_cast %32 : vector<1x8x1024xf32> to vector<8x1024xf32>
    %cst_13 = arith.constant dense<0.000000e+00> : vector<8x1024xf32>
    %34 = tpu.matmul %31, %2, %cst_13 {dimension_numbers = #tpu.dot_dimension_numbers<[1], [0], [0], [1], [0, 0, 1, 1], [], []>} : vector<8x256xf32>, vector<256x1024xf32>, vector<8x1024xf32> -> vector<8x1024xf32>
    %35 = arith.addf %33, %34 : vector<8x1024xf32>
    %36 = vector.extract_strided_slice %35 {offsets = [0, 0], sizes = [8, 256], strides = [1, 1]} : vector<8x1024xf32> to vector<8x256xf32>
    %37 = arith.negf %36 : vector<8x256xf32>
    %38 = math.exp %37 : vector<8x256xf32>
    %cst_14 = arith.constant 1.000000e+00 : f32
    %39 = vector.broadcast %cst_14 : f32 to vector<8x256xf32>
    %40 = arith.addf %39, %38 : vector<8x256xf32>
    %41 = arith.divf %39, %40 : vector<8x256xf32>
    %42 = vector.extract_strided_slice %35 {offsets = [0, 256], sizes = [8, 256], strides = [1, 1]} : vector<8x1024xf32> to vector<8x256xf32>
    %43 = arith.negf %42 : vector<8x256xf32>
    %44 = math.exp %43 : vector<8x256xf32>
    %cst_15 = arith.constant 1.000000e+00 : f32
    %45 = vector.broadcast %cst_15 : f32 to vector<8x256xf32>
    %46 = arith.addf %45, %44 : vector<8x256xf32>
    %47 = arith.divf %45, %46 : vector<8x256xf32>
    %48 = vector.extract_strided_slice %35 {offsets = [0, 512], sizes = [8, 256], strides = [1, 1]} : vector<8x1024xf32> to vector<8x256xf32>
    %49 = math.tanh %48 : vector<8x256xf32>
    %50 = vector.extract_strided_slice %35 {offsets = [0, 768], sizes = [8, 256], strides = [1, 1]} : vector<8x1024xf32> to vector<8x256xf32>
    %51 = arith.negf %50 : vector<8x256xf32>
    %52 = math.exp %51 : vector<8x256xf32>
    %cst_16 = arith.constant 1.000000e+00 : f32
    %53 = vector.broadcast %cst_16 : f32 to vector<8x256xf32>
    %54 = arith.addf %53, %52 : vector<8x256xf32>
    %55 = arith.divf %53, %54 : vector<8x256xf32>
    %56 = arith.mulf %47, %29 : vector<8x256xf32>
    %57 = arith.mulf %41, %49 : vector<8x256xf32>
    %58 = arith.addf %56, %57 : vector<8x256xf32>
    %59 = math.tanh %58 : vector<8x256xf32>
    %60 = arith.mulf %55, %59 : vector<8x256xf32>
    %c2 = arith.constant 2 : index
    %c0_17 = arith.constant 0 : index
    %c0_18 = arith.constant 0 : index
    %61 = vector.load %arg1[%c2, %c0_17, %c0_18] : memref<8x8x1024xf32, #tpu.memory_space<vmem>>, vector<1x8x1024xf32>
    %62 = vector.shape_cast %61 : vector<1x8x1024xf32> to vector<8x1024xf32>
    %cst_19 = arith.constant dense<0.000000e+00> : vector<8x1024xf32>
    %63 = tpu.matmul %60, %2, %cst_19 {dimension_numbers = #tpu.dot_dimension_numbers<[1], [0], [0], [1], [0, 0, 1, 1], [], []>} : vector<8x256xf32>, vector<256x1024xf32>, vector<8x1024xf32> -> vector<8x1024xf32>
    %64 = arith.addf %62, %63 : vector<8x1024xf32>
    %65 = vector.extract_strided_slice %64 {offsets = [0, 0], sizes = [8, 256], strides = [1, 1]} : vector<8x1024xf32> to vector<8x256xf32>
    %66 = arith.negf %65 : vector<8x256xf32>
    %67 = math.exp %66 : vector<8x256xf32>
    %cst_20 = arith.constant 1.000000e+00 : f32
    %68 = vector.broadcast %cst_20 : f32 to vector<8x256xf32>
    %69 = arith.addf %68, %67 : vector<8x256xf32>
    %70 = arith.divf %68, %69 : vector<8x256xf32>
    %71 = vector.extract_strided_slice %64 {offsets = [0, 256], sizes = [8, 256], strides = [1, 1]} : vector<8x1024xf32> to vector<8x256xf32>
    %72 = arith.negf %71 : vector<8x256xf32>
    %73 = math.exp %72 : vector<8x256xf32>
    %cst_21 = arith.constant 1.000000e+00 : f32
    %74 = vector.broadcast %cst_21 : f32 to vector<8x256xf32>
    %75 = arith.addf %74, %73 : vector<8x256xf32>
    %76 = arith.divf %74, %75 : vector<8x256xf32>
    %77 = vector.extract_strided_slice %64 {offsets = [0, 512], sizes = [8, 256], strides = [1, 1]} : vector<8x1024xf32> to vector<8x256xf32>
    %78 = math.tanh %77 : vector<8x256xf32>
    %79 = vector.extract_strided_slice %64 {offsets = [0, 768], sizes = [8, 256], strides = [1, 1]} : vector<8x1024xf32> to vector<8x256xf32>
    %80 = arith.negf %79 : vector<8x256xf32>
    %81 = math.exp %80 : vector<8x256xf32>
    %cst_22 = arith.constant 1.000000e+00 : f32
    %82 = vector.broadcast %cst_22 : f32 to vector<8x256xf32>
    %83 = arith.addf %82, %81 : vector<8x256xf32>
    %84 = arith.divf %82, %83 : vector<8x256xf32>
    %85 = arith.mulf %76, %58 : vector<8x256xf32>
    %86 = arith.mulf %70, %78 : vector<8x256xf32>
    %87 = arith.addf %85, %86 : vector<8x256xf32>
    %88 = math.tanh %87 : vector<8x256xf32>
    %89 = arith.mulf %84, %88 : vector<8x256xf32>
    %c3 = arith.constant 3 : index
    %c0_23 = arith.constant 0 : index
    %c0_24 = arith.constant 0 : index
    %90 = vector.load %arg1[%c3, %c0_23, %c0_24] : memref<8x8x1024xf32, #tpu.memory_space<vmem>>, vector<1x8x1024xf32>
    %91 = vector.shape_cast %90 : vector<1x8x1024xf32> to vector<8x1024xf32>
    %cst_25 = arith.constant dense<0.000000e+00> : vector<8x1024xf32>
    %92 = tpu.matmul %89, %2, %cst_25 {dimension_numbers = #tpu.dot_dimension_numbers<[1], [0], [0], [1], [0, 0, 1, 1], [], []>} : vector<8x256xf32>, vector<256x1024xf32>, vector<8x1024xf32> -> vector<8x1024xf32>
    %93 = arith.addf %91, %92 : vector<8x1024xf32>
    %94 = vector.extract_strided_slice %93 {offsets = [0, 0], sizes = [8, 256], strides = [1, 1]} : vector<8x1024xf32> to vector<8x256xf32>
    %95 = arith.negf %94 : vector<8x256xf32>
    %96 = math.exp %95 : vector<8x256xf32>
    %cst_26 = arith.constant 1.000000e+00 : f32
    %97 = vector.broadcast %cst_26 : f32 to vector<8x256xf32>
    %98 = arith.addf %97, %96 : vector<8x256xf32>
    %99 = arith.divf %97, %98 : vector<8x256xf32>
    %100 = vector.extract_strided_slice %93 {offsets = [0, 256], sizes = [8, 256], strides = [1, 1]} : vector<8x1024xf32> to vector<8x256xf32>
    %101 = arith.negf %100 : vector<8x256xf32>
    %102 = math.exp %101 : vector<8x256xf32>
    %cst_27 = arith.constant 1.000000e+00 : f32
    %103 = vector.broadcast %cst_27 : f32 to vector<8x256xf32>
    %104 = arith.addf %103, %102 : vector<8x256xf32>
    %105 = arith.divf %103, %104 : vector<8x256xf32>
    %106 = vector.extract_strided_slice %93 {offsets = [0, 512], sizes = [8, 256], strides = [1, 1]} : vector<8x1024xf32> to vector<8x256xf32>
    %107 = math.tanh %106 : vector<8x256xf32>
    %108 = vector.extract_strided_slice %93 {offsets = [0, 768], sizes = [8, 256], strides = [1, 1]} : vector<8x1024xf32> to vector<8x256xf32>
    %109 = arith.negf %108 : vector<8x256xf32>
    %110 = math.exp %109 : vector<8x256xf32>
    %cst_28 = arith.constant 1.000000e+00 : f32
    %111 = vector.broadcast %cst_28 : f32 to vector<8x256xf32>
    %112 = arith.addf %111, %110 : vector<8x256xf32>
    %113 = arith.divf %111, %112 : vector<8x256xf32>
    %114 = arith.mulf %105, %87 : vector<8x256xf32>
    %115 = arith.mulf %99, %107 : vector<8x256xf32>
    %116 = arith.addf %114, %115 : vector<8x256xf32>
    %117 = math.tanh %116 : vector<8x256xf32>
    %118 = arith.mulf %113, %117 : vector<8x256xf32>
    %c4 = arith.constant 4 : index
    %c0_29 = arith.constant 0 : index
    %c0_30 = arith.constant 0 : index
    %119 = vector.load %arg1[%c4, %c0_29, %c0_30] : memref<8x8x1024xf32, #tpu.memory_space<vmem>>, vector<1x8x1024xf32>
    %120 = vector.shape_cast %119 : vector<1x8x1024xf32> to vector<8x1024xf32>
    %cst_31 = arith.constant dense<0.000000e+00> : vector<8x1024xf32>
    %121 = tpu.matmul %118, %2, %cst_31 {dimension_numbers = #tpu.dot_dimension_numbers<[1], [0], [0], [1], [0, 0, 1, 1], [], []>} : vector<8x256xf32>, vector<256x1024xf32>, vector<8x1024xf32> -> vector<8x1024xf32>
    %122 = arith.addf %120, %121 : vector<8x1024xf32>
    %123 = vector.extract_strided_slice %122 {offsets = [0, 0], sizes = [8, 256], strides = [1, 1]} : vector<8x1024xf32> to vector<8x256xf32>
    %124 = arith.negf %123 : vector<8x256xf32>
    %125 = math.exp %124 : vector<8x256xf32>
    %cst_32 = arith.constant 1.000000e+00 : f32
    %126 = vector.broadcast %cst_32 : f32 to vector<8x256xf32>
    %127 = arith.addf %126, %125 : vector<8x256xf32>
    %128 = arith.divf %126, %127 : vector<8x256xf32>
    %129 = vector.extract_strided_slice %122 {offsets = [0, 256], sizes = [8, 256], strides = [1, 1]} : vector<8x1024xf32> to vector<8x256xf32>
    %130 = arith.negf %129 : vector<8x256xf32>
    %131 = math.exp %130 : vector<8x256xf32>
    %cst_33 = arith.constant 1.000000e+00 : f32
    %132 = vector.broadcast %cst_33 : f32 to vector<8x256xf32>
    %133 = arith.addf %132, %131 : vector<8x256xf32>
    %134 = arith.divf %132, %133 : vector<8x256xf32>
    %135 = vector.extract_strided_slice %122 {offsets = [0, 512], sizes = [8, 256], strides = [1, 1]} : vector<8x1024xf32> to vector<8x256xf32>
    %136 = math.tanh %135 : vector<8x256xf32>
    %137 = vector.extract_strided_slice %122 {offsets = [0, 768], sizes = [8, 256], strides = [1, 1]} : vector<8x1024xf32> to vector<8x256xf32>
    %138 = arith.negf %137 : vector<8x256xf32>
    %139 = math.exp %138 : vector<8x256xf32>
    %cst_34 = arith.constant 1.000000e+00 : f32
    %140 = vector.broadcast %cst_34 : f32 to vector<8x256xf32>
    %141 = arith.addf %140, %139 : vector<8x256xf32>
    %142 = arith.divf %140, %141 : vector<8x256xf32>
    %143 = arith.mulf %134, %116 : vector<8x256xf32>
    %144 = arith.mulf %128, %136 : vector<8x256xf32>
    %145 = arith.addf %143, %144 : vector<8x256xf32>
    %146 = math.tanh %145 : vector<8x256xf32>
    %147 = arith.mulf %142, %146 : vector<8x256xf32>
    %c5 = arith.constant 5 : index
    %c0_35 = arith.constant 0 : index
    %c0_36 = arith.constant 0 : index
    %148 = vector.load %arg1[%c5, %c0_35, %c0_36] : memref<8x8x1024xf32, #tpu.memory_space<vmem>>, vector<1x8x1024xf32>
    %149 = vector.shape_cast %148 : vector<1x8x1024xf32> to vector<8x1024xf32>
    %cst_37 = arith.constant dense<0.000000e+00> : vector<8x1024xf32>
    %150 = tpu.matmul %147, %2, %cst_37 {dimension_numbers = #tpu.dot_dimension_numbers<[1], [0], [0], [1], [0, 0, 1, 1], [], []>} : vector<8x256xf32>, vector<256x1024xf32>, vector<8x1024xf32> -> vector<8x1024xf32>
    %151 = arith.addf %149, %150 : vector<8x1024xf32>
    %152 = vector.extract_strided_slice %151 {offsets = [0, 0], sizes = [8, 256], strides = [1, 1]} : vector<8x1024xf32> to vector<8x256xf32>
    %153 = arith.negf %152 : vector<8x256xf32>
    %154 = math.exp %153 : vector<8x256xf32>
    %cst_38 = arith.constant 1.000000e+00 : f32
    %155 = vector.broadcast %cst_38 : f32 to vector<8x256xf32>
    %156 = arith.addf %155, %154 : vector<8x256xf32>
    %157 = arith.divf %155, %156 : vector<8x256xf32>
    %158 = vector.extract_strided_slice %151 {offsets = [0, 256], sizes = [8, 256], strides = [1, 1]} : vector<8x1024xf32> to vector<8x256xf32>
    %159 = arith.negf %158 : vector<8x256xf32>
    %160 = math.exp %159 : vector<8x256xf32>
    %cst_39 = arith.constant 1.000000e+00 : f32
    %161 = vector.broadcast %cst_39 : f32 to vector<8x256xf32>
    %162 = arith.addf %161, %160 : vector<8x256xf32>
    %163 = arith.divf %161, %162 : vector<8x256xf32>
    %164 = vector.extract_strided_slice %151 {offsets = [0, 512], sizes = [8, 256], strides = [1, 1]} : vector<8x1024xf32> to vector<8x256xf32>
    %165 = math.tanh %164 : vector<8x256xf32>
    %166 = vector.extract_strided_slice %151 {offsets = [0, 768], sizes = [8, 256], strides = [1, 1]} : vector<8x1024xf32> to vector<8x256xf32>
    %167 = arith.negf %166 : vector<8x256xf32>
    %168 = math.exp %167 : vector<8x256xf32>
    %cst_40 = arith.constant 1.000000e+00 : f32
    %169 = vector.broadcast %cst_40 : f32 to vector<8x256xf32>
    %170 = arith.addf %169, %168 : vector<8x256xf32>
    %171 = arith.divf %169, %170 : vector<8x256xf32>
    %172 = arith.mulf %163, %145 : vector<8x256xf32>
    %173 = arith.mulf %157, %165 : vector<8x256xf32>
    %174 = arith.addf %172, %173 : vector<8x256xf32>
    %175 = math.tanh %174 : vector<8x256xf32>
    %176 = arith.mulf %171, %175 : vector<8x256xf32>
    %c6 = arith.constant 6 : index
    %c0_41 = arith.constant 0 : index
    %c0_42 = arith.constant 0 : index
    %177 = vector.load %arg1[%c6, %c0_41, %c0_42] : memref<8x8x1024xf32, #tpu.memory_space<vmem>>, vector<1x8x1024xf32>
    %178 = vector.shape_cast %177 : vector<1x8x1024xf32> to vector<8x1024xf32>
    %cst_43 = arith.constant dense<0.000000e+00> : vector<8x1024xf32>
    %179 = tpu.matmul %176, %2, %cst_43 {dimension_numbers = #tpu.dot_dimension_numbers<[1], [0], [0], [1], [0, 0, 1, 1], [], []>} : vector<8x256xf32>, vector<256x1024xf32>, vector<8x1024xf32> -> vector<8x1024xf32>
    %180 = arith.addf %178, %179 : vector<8x1024xf32>
    %181 = vector.extract_strided_slice %180 {offsets = [0, 0], sizes = [8, 256], strides = [1, 1]} : vector<8x1024xf32> to vector<8x256xf32>
    %182 = arith.negf %181 : vector<8x256xf32>
    %183 = math.exp %182 : vector<8x256xf32>
    %cst_44 = arith.constant 1.000000e+00 : f32
    %184 = vector.broadcast %cst_44 : f32 to vector<8x256xf32>
    %185 = arith.addf %184, %183 : vector<8x256xf32>
    %186 = arith.divf %184, %185 : vector<8x256xf32>
    %187 = vector.extract_strided_slice %180 {offsets = [0, 256], sizes = [8, 256], strides = [1, 1]} : vector<8x1024xf32> to vector<8x256xf32>
    %188 = arith.negf %187 : vector<8x256xf32>
    %189 = math.exp %188 : vector<8x256xf32>
    %cst_45 = arith.constant 1.000000e+00 : f32
    %190 = vector.broadcast %cst_45 : f32 to vector<8x256xf32>
    %191 = arith.addf %190, %189 : vector<8x256xf32>
    %192 = arith.divf %190, %191 : vector<8x256xf32>
    %193 = vector.extract_strided_slice %180 {offsets = [0, 512], sizes = [8, 256], strides = [1, 1]} : vector<8x1024xf32> to vector<8x256xf32>
    %194 = math.tanh %193 : vector<8x256xf32>
    %195 = vector.extract_strided_slice %180 {offsets = [0, 768], sizes = [8, 256], strides = [1, 1]} : vector<8x1024xf32> to vector<8x256xf32>
    %196 = arith.negf %195 : vector<8x256xf32>
    %197 = math.exp %196 : vector<8x256xf32>
    %cst_46 = arith.constant 1.000000e+00 : f32
    %198 = vector.broadcast %cst_46 : f32 to vector<8x256xf32>
    %199 = arith.addf %198, %197 : vector<8x256xf32>
    %200 = arith.divf %198, %199 : vector<8x256xf32>
    %201 = arith.mulf %192, %174 : vector<8x256xf32>
    %202 = arith.mulf %186, %194 : vector<8x256xf32>
    %203 = arith.addf %201, %202 : vector<8x256xf32>
    %204 = math.tanh %203 : vector<8x256xf32>
    %205 = arith.mulf %200, %204 : vector<8x256xf32>
    %c7 = arith.constant 7 : index
    %c0_47 = arith.constant 0 : index
    %c0_48 = arith.constant 0 : index
    %206 = vector.load %arg1[%c7, %c0_47, %c0_48] : memref<8x8x1024xf32, #tpu.memory_space<vmem>>, vector<1x8x1024xf32>
    %207 = vector.shape_cast %206 : vector<1x8x1024xf32> to vector<8x1024xf32>
    %cst_49 = arith.constant dense<0.000000e+00> : vector<8x1024xf32>
    %208 = tpu.matmul %205, %2, %cst_49 {dimension_numbers = #tpu.dot_dimension_numbers<[1], [0], [0], [1], [0, 0, 1, 1], [], []>} : vector<8x256xf32>, vector<256x1024xf32>, vector<8x1024xf32> -> vector<8x1024xf32>
    %209 = arith.addf %207, %208 : vector<8x1024xf32>
    %210 = vector.extract_strided_slice %209 {offsets = [0, 0], sizes = [8, 256], strides = [1, 1]} : vector<8x1024xf32> to vector<8x256xf32>
    %211 = arith.negf %210 : vector<8x256xf32>
    %212 = math.exp %211 : vector<8x256xf32>
    %cst_50 = arith.constant 1.000000e+00 : f32
    %213 = vector.broadcast %cst_50 : f32 to vector<8x256xf32>
    %214 = arith.addf %213, %212 : vector<8x256xf32>
    %215 = arith.divf %213, %214 : vector<8x256xf32>
    %216 = vector.extract_strided_slice %209 {offsets = [0, 256], sizes = [8, 256], strides = [1, 1]} : vector<8x1024xf32> to vector<8x256xf32>
    %217 = arith.negf %216 : vector<8x256xf32>
    %218 = math.exp %217 : vector<8x256xf32>
    %cst_51 = arith.constant 1.000000e+00 : f32
    %219 = vector.broadcast %cst_51 : f32 to vector<8x256xf32>
    %220 = arith.addf %219, %218 : vector<8x256xf32>
    %221 = arith.divf %219, %220 : vector<8x256xf32>
    %222 = vector.extract_strided_slice %209 {offsets = [0, 512], sizes = [8, 256], strides = [1, 1]} : vector<8x1024xf32> to vector<8x256xf32>
    %223 = math.tanh %222 : vector<8x256xf32>
    %224 = vector.extract_strided_slice %209 {offsets = [0, 768], sizes = [8, 256], strides = [1, 1]} : vector<8x1024xf32> to vector<8x256xf32>
    %225 = arith.negf %224 : vector<8x256xf32>
    %226 = math.exp %225 : vector<8x256xf32>
    %cst_52 = arith.constant 1.000000e+00 : f32
    %227 = vector.broadcast %cst_52 : f32 to vector<8x256xf32>
    %228 = arith.addf %227, %226 : vector<8x256xf32>
    %229 = arith.divf %227, %228 : vector<8x256xf32>
    %230 = arith.mulf %221, %203 : vector<8x256xf32>
    %231 = arith.mulf %215, %223 : vector<8x256xf32>
    %232 = arith.addf %230, %231 : vector<8x256xf32>
    %233 = math.tanh %232 : vector<8x256xf32>
    %234 = arith.mulf %229, %233 : vector<8x256xf32>
    %c0_53 = arith.constant 0 : index
    %c0_54 = arith.constant 0 : index
    %235 = vector.load %arg5[%c0_53, %c0_54] : memref<256x256xf32, #tpu.memory_space<vmem>>, vector<256x256xf32>
    %cst_55 = arith.constant dense<0.000000e+00> : vector<8x256xf32>
    %236 = tpu.matmul %234, %235, %cst_55 {dimension_numbers = #tpu.dot_dimension_numbers<[1], [0], [0], [1], [0, 0, 1, 1], [], []>} : vector<8x256xf32>, vector<256x256xf32>, vector<8x256xf32> -> vector<8x256xf32>
    %c0_56 = arith.constant 0 : index
    %c0_57 = arith.constant 0 : index
    %237 = vector.load %arg6[%c0_56, %c0_57] : memref<1x256xf32, #tpu.memory_space<vmem>>, vector<1x256xf32>
    %238 = vector.broadcast %237 : vector<1x256xf32> to vector<8x256xf32>
    %239 = arith.addf %236, %238 : vector<8x256xf32>
    %240 = math.tanh %239 : vector<8x256xf32>
    %c0_58 = arith.constant 0 : index
    %c0_59 = arith.constant 0 : index
    %241 = vector.load %arg7[%c0_58, %c0_59] : memref<256x8xf32, #tpu.memory_space<vmem>>, vector<256x8xf32>
    %cst_60 = arith.constant dense<0.000000e+00> : vector<8x8xf32>
    %242 = tpu.matmul %240, %241, %cst_60 {dimension_numbers = #tpu.dot_dimension_numbers<[1], [0], [0], [1], [0, 0, 1, 1], [], []>} : vector<8x256xf32>, vector<256x8xf32>, vector<8x8xf32> -> vector<8x8xf32>
    %c0_61 = arith.constant 0 : index
    %c0_62 = arith.constant 0 : index
    %243 = vector.load %arg8[%c0_61, %c0_62] : memref<1x8xf32, #tpu.memory_space<vmem>>, vector<1x8xf32>
    %244 = vector.broadcast %243 : vector<1x8xf32> to vector<8x8xf32>
    %245 = arith.addf %242, %244 : vector<8x8xf32>
    %cst_63 = arith.constant dense<0xFF800000> : vector<8xf32>
    %246 = vector.multi_reduction <maximumf>, %245, %cst_63 [1] : vector<8x8xf32> to vector<8xf32>
    %247 = vector.shape_cast %246 : vector<8xf32> to vector<8x1xf32>
    %248 = vector.broadcast %247 : vector<8x1xf32> to vector<8x8xf32>
    %249 = arith.subf %245, %248 : vector<8x8xf32>
    %250 = math.exp %249 : vector<8x8xf32>
    %cst_64 = arith.constant dense<0.000000e+00> : vector<8xf32>
    %251 = vector.multi_reduction <add>, %250, %cst_64 [1] : vector<8x8xf32> to vector<8xf32>
    %252 = vector.shape_cast %251 : vector<8xf32> to vector<8x1xf32>
    %253 = tpu.reciprocal %252 : vector<8x1xf32> -> vector<8x1xf32>
    %254 = vector.broadcast %253 : vector<8x1xf32> to vector<8x8xf32>
    %255 = arith.mulf %250, %254 : vector<8x8xf32>
    %cst_65 = arith.constant 0.000000e+00 : f32
    %256 = vector.broadcast %cst_65 : f32 to vector<8x256xf32>
    %257 = vector.extract_strided_slice %255 {offsets = [0, 0], sizes = [8, 1], strides = [1, 1]} : vector<8x8xf32> to vector<8x1xf32>
    %258 = vector.broadcast %257 : vector<8x1xf32> to vector<8x256xf32>
    %259 = arith.mulf %258, %31 : vector<8x256xf32>
    %260 = arith.addf %256, %259 : vector<8x256xf32>
    %261 = vector.extract_strided_slice %255 {offsets = [0, 1], sizes = [8, 1], strides = [1, 1]} : vector<8x8xf32> to vector<8x1xf32>
    %262 = vector.broadcast %261 : vector<8x1xf32> to vector<8x256xf32>
    %263 = arith.mulf %262, %60 : vector<8x256xf32>
    %264 = arith.addf %260, %263 : vector<8x256xf32>
    %265 = vector.extract_strided_slice %255 {offsets = [0, 2], sizes = [8, 1], strides = [1, 1]} : vector<8x8xf32> to vector<8x1xf32>
    %266 = vector.broadcast %265 : vector<8x1xf32> to vector<8x256xf32>
    %267 = arith.mulf %266, %89 : vector<8x256xf32>
    %268 = arith.addf %264, %267 : vector<8x256xf32>
    %269 = vector.extract_strided_slice %255 {offsets = [0, 3], sizes = [8, 1], strides = [1, 1]} : vector<8x8xf32> to vector<8x1xf32>
    %270 = vector.broadcast %269 : vector<8x1xf32> to vector<8x256xf32>
    %271 = arith.mulf %270, %118 : vector<8x256xf32>
    %272 = arith.addf %268, %271 : vector<8x256xf32>
    %273 = vector.extract_strided_slice %255 {offsets = [0, 4], sizes = [8, 1], strides = [1, 1]} : vector<8x8xf32> to vector<8x1xf32>
    %274 = vector.broadcast %273 : vector<8x1xf32> to vector<8x256xf32>
    %275 = arith.mulf %274, %147 : vector<8x256xf32>
    %276 = arith.addf %272, %275 : vector<8x256xf32>
    %277 = vector.extract_strided_slice %255 {offsets = [0, 5], sizes = [8, 1], strides = [1, 1]} : vector<8x8xf32> to vector<8x1xf32>
    %278 = vector.broadcast %277 : vector<8x1xf32> to vector<8x256xf32>
    %279 = arith.mulf %278, %176 : vector<8x256xf32>
    %280 = arith.addf %276, %279 : vector<8x256xf32>
    %281 = vector.extract_strided_slice %255 {offsets = [0, 6], sizes = [8, 1], strides = [1, 1]} : vector<8x8xf32> to vector<8x1xf32>
    %282 = vector.broadcast %281 : vector<8x1xf32> to vector<8x256xf32>
    %283 = arith.mulf %282, %205 : vector<8x256xf32>
    %284 = arith.addf %280, %283 : vector<8x256xf32>
    %285 = vector.extract_strided_slice %255 {offsets = [0, 7], sizes = [8, 1], strides = [1, 1]} : vector<8x8xf32> to vector<8x1xf32>
    %286 = vector.broadcast %285 : vector<8x1xf32> to vector<8x256xf32>
    %287 = arith.mulf %286, %234 : vector<8x256xf32>
    %288 = arith.addf %284, %287 : vector<8x256xf32>
    %c0_66 = arith.constant 0 : index
    %c0_67 = arith.constant 0 : index
    %289 = vector.load %arg9[%c0_66, %c0_67] : memref<256x8xf32, #tpu.memory_space<vmem>>, vector<256x8xf32>
    %cst_68 = arith.constant dense<0.000000e+00> : vector<8x8xf32>
    %290 = tpu.matmul %288, %289, %cst_68 {dimension_numbers = #tpu.dot_dimension_numbers<[1], [0], [0], [1], [0, 0, 1, 1], [], []>} : vector<8x256xf32>, vector<256x8xf32>, vector<8x8xf32> -> vector<8x8xf32>
    %c0_69 = arith.constant 0 : index
    %c0_70 = arith.constant 0 : index
    %291 = vector.load %arg10[%c0_69, %c0_70] : memref<1x8xf32, #tpu.memory_space<vmem>>, vector<1x8xf32>
    %292 = vector.broadcast %291 : vector<1x8xf32> to vector<8x8xf32>
    %293 = arith.addf %290, %292 : vector<8x8xf32>
    %c0_71 = arith.constant 0 : index
    %c0_72 = arith.constant 0 : index
    %294 = vector.load %arg11[%c0_71, %c0_72] : memref<8x8xf32, #tpu.memory_space<vmem>>, vector<8x8xf32>
    tpu.vector_store %arg11[%c0_71, %c0_72], %293 {strides = array<i32>} : memref<8x8xf32, #tpu.memory_space<vmem>>, vector<8x8xf32>,
    %c0_73 = arith.constant 0 : index
    %c0_74 = arith.constant 0 : index
    %295 = vector.load %arg12[%c0_73, %c0_74] : memref<8x8xf32, #tpu.memory_space<vmem>>, vector<8x8xf32>
    tpu.vector_store %arg12[%c0_73, %c0_74], %255 {strides = array<i32>} : memref<8x8xf32, #tpu.memory_space<vmem>>, vector<8x8xf32>,
    return
  }
  func.func @transform_0(%arg0: i32) -> (i32, i32, i32) {
    %c0_i32 = arith.constant 0 : i32
    %c0_i32_0 = arith.constant 0 : i32
    %c0_i32_1 = arith.constant 0 : i32
    %c0_i32_2 = arith.constant 0 : i32
    return %c0_i32, %c0_i32_0, %c0_i32_1 : i32, i32, i32
  }
  func.func @transform_1(%arg0: i32) -> (i32, i32) {
    %c0_i32 = arith.constant 0 : i32
    %c0_i32_0 = arith.constant 0 : i32
    %c0_i32_1 = arith.constant 0 : i32
    return %c0_i32, %c0_i32_0 : i32, i32
  }
  func.func @transform_2(%arg0: i32) -> (i32, i32) {
    %c0_i32 = arith.constant 0 : i32
    %c0_i32_0 = arith.constant 0 : i32
    %c0_i32_1 = arith.constant 0 : i32
    return %c0_i32, %c0_i32_0 : i32, i32
  }
  func.func @transform_3(%arg0: i32) -> (i32, i32) {
    %c0_i32 = arith.constant 0 : i32
    %c0_i32_0 = arith.constant 0 : i32
    %c0_i32_1 = arith.constant 0 : i32
    return %c0_i32, %c0_i32_0 : i32, i32
  }
  func.func @transform_4(%arg0: i32) -> (i32, i32) {
    %c0_i32 = arith.constant 0 : i32
    %c0_i32_0 = arith.constant 0 : i32
    %c0_i32_1 = arith.constant 0 : i32
    return %c0_i32, %c0_i32_0 : i32, i32
  }
  func.func @transform_5(%arg0: i32) -> (i32, i32) {
    %c0_i32 = arith.constant 0 : i32
    %c0_i32_0 = arith.constant 0 : i32
    %c0_i32_1 = arith.constant 0 : i32
    return %c0_i32, %c0_i32_0 : i32, i32
  }
  func.func @transform_6(%arg0: i32) -> (i32, i32) {
    %c0_i32 = arith.constant 0 : i32
    %c0_i32_0 = arith.constant 0 : i32
    %c0_i32_1 = arith.constant 0 : i32
    return %c0_i32, %c0_i32_0 : i32, i32
  }
  func.func @transform_7(%arg0: i32) -> (i32, i32) {
    %c0_i32 = arith.constant 0 : i32
    %c0_i32_0 = arith.constant 0 : i32
    %c0_i32_1 = arith.constant 0 : i32
    return %c0_i32, %c0_i32_0 : i32, i32
  }
  func.func @transform_8(%arg0: i32) -> (i32, i32) {
    %c0_i32 = arith.constant 0 : i32
    %c0_i32_0 = arith.constant 0 : i32
    %c0_i32_1 = arith.constant 0 : i32
    return %c0_i32, %c0_i32_0 : i32, i32
  }
  func.func @transform_9(%arg0: i32) -> (i32, i32) {
    %c0_i32 = arith.constant 0 : i32
    %c0_i32_0 = arith.constant 0 : i32
    %c0_i32_1 = arith.constant 0 : i32
    return %c0_i32, %c0_i32_0 : i32, i32
  }
  func.func @transform_10(%arg0: i32) -> (i32, i32) {
    %c0_i32 = arith.constant 0 : i32
    %c0_i32_0 = arith.constant 0 : i32
    %c0_i32_1 = arith.constant 0 : i32
    return %c0_i32, %c0_i32_0 : i32, i32
  }
  func.func @transform_11(%arg0: i32) -> (i32, i32) {
    %c0_i32 = arith.constant 0 : i32
    %c0_i32_0 = arith.constant 0 : i32
    %c0_i32_1 = arith.constant 0 : i32
    return %c0_i32, %c0_i32_0 : i32, i32
  }
}

</mosaic_0001>

<llo_original>
// kernel: _lambda_.1
$region0: #{_lambda_.1}
  #allocation0 [shape = 'u32[]', space=smem, size = 0x4, offset = 0x4, fixed_abs, tag = 'smem constant byte address 0x4 - core index']
  #allocation1 [shape = 'u32[72,128]{1,0:T(1,128)}', space=vmem, size = 0x9000, scoped, tag = 'internal scratch']
  %s0 = inlined_call_operand.vmem [shape: f32[8,8,1024], index: 0, kind: input, shape index: {}]
  %s1 = inlined_call_operand.vmem [shape: f32[8,256], index: 1, kind: input, shape index: {}]
  %s2 = inlined_call_operand.vmem [shape: f32[8,256], index: 2, kind: input, shape index: {}]
  %s3 = inlined_call_operand.vmem [shape: f32[256,1024], index: 3, kind: input, shape index: {}]
  %s4 = inlined_call_operand.vmem [shape: f32[256,256], index: 4, kind: input, shape index: {}]
  %s5 = inlined_call_operand.vmem [shape: f32[1,256], index: 5, kind: input, shape index: {}]
  %s6 = inlined_call_operand.vmem [shape: f32[256,8], index: 6, kind: input, shape index: {}]
  %s7 = inlined_call_operand.vmem [shape: f32[1,8], index: 7, kind: input, shape index: {}]
  %s8 = inlined_call_operand.vmem [shape: f32[256,8], index: 8, kind: input, shape index: {}]
  %s9 = inlined_call_operand.vmem [shape: f32[1,8], index: 9, kind: input, shape index: {}]
  %s10 = inlined_call_operand.hbm [shape: f32[8,8], index: 10, kind: output, shape index: {0}]
  %s11 = inlined_call_operand.hbm [shape: f32[8,8], index: 11, kind: output, shape index: {1}]
  %12 = xla_tuple %s10, %s11
  %s13 = sld [smem:[#allocation0]]
  $region58: #{_lambda_.1} parent=0
    _
  %s15 = ssub.s32 1, %s13
  %s16 = scalar_select 0, %s15, %s13
  $region1: #{_lambda_.1} parent=0
    #allocation2 [shape = 'u8[4096]{0}', space=vmem, size = 0x1000, scoped, tag = 'output window, operand 0, single buffered']
    #allocation3 [shape = 's32[1]{0}', space=sflag, size = 0x4, scoped, tag = 'scoped memory for _lambda_.1']
    #allocation4 [shape = 'u8[4096]{0}', space=vmem, size = 0x1000, scoped, tag = 'output window, operand 1, single buffered']
    #allocation5 [shape = 's32[1]{0}', space=sflag, size = 0x4, scoped, tag = 'scoped memory for _lambda_.1']
    %17 = vsyncpa [#allocation3], 0
    %18 = vsyncpa [#allocation5], 0
    // Predicated region
    $region2: #{_lambda_.1} parent=1 // pred_check
      _
    $region3: #{_lambda_.1} parent=1 // pred_check_branch
      %20 = sbr.rel (0) target = $region5
    $region4: #{_lambda_.1} parent=1 // pred_region
      _
    $region5: #{_lambda_.1} parent=1 // pred_fallthru
      _
    // Predicated region
    $region6: #{_lambda_.1} parent=1 // pred_check
      _
    $region7: #{_lambda_.1} parent=1 // pred_check_branch
      %22 = sbr.rel (0) target = $region9
    $region8: #{_lambda_.1} parent=1 // pred_region
      _
    $region9: #{_lambda_.1} parent=1 // pred_fallthru
      _
    // Predicated region
    $region10: #{_lambda_.1} parent=1 // pred_check
      _
    $region11: #{_lambda_.1} parent=1 // pred_check_branch
      %24 = sbr.rel (0) target = $region13
    $region12: #{_lambda_.1} parent=1 // pred_region
      _
    $region13: #{_lambda_.1} parent=1 // pred_fallthru
      _
    // Predicated region
    $region14: #{_lambda_.1} parent=1 // pred_check
      _
    $region15: #{_lambda_.1} parent=1 // pred_check_branch
      %26 = sbr.rel (0) target = $region17
    $region16: #{_lambda_.1} parent=1 // pred_region
      _
    $region17: #{_lambda_.1} parent=1 // pred_fallthru
      _
    // Predicated region
    $region18: #{_lambda_.1} parent=1 // pred_check
      _
    $region19: #{_lambda_.1} parent=1 // pred_check_branch
      %28 = sbr.rel (0) target = $region21
    $region20: #{_lambda_.1} parent=1 // pred_region
      _
    $region21: #{_lambda_.1} parent=1 // pred_fallthru
      _
    // Predicated region
    $region22: #{_lambda_.1} parent=1 // pred_check
      _
    $region23: #{_lambda_.1} parent=1 // pred_check_branch
      %30 = sbr.rel (0) target = $region25
    $region24: #{_lambda_.1} parent=1 // pred_region
      _
    $region25: #{_lambda_.1} parent=1 // pred_fallthru
      _
    // Predicated region
    $region26: #{_lambda_.1} parent=1 // pred_check
      _
    $region27: #{_lambda_.1} parent=1 // pred_check_branch
      %32 = sbr.rel (0) target = $region29
    $region28: #{_lambda_.1} parent=1 // pred_region
      _
    $region29: #{_lambda_.1} parent=1 // pred_fallthru
      _
    // Predicated region
    $region30: #{_lambda_.1} parent=1 // pred_check
      _
    $region31: #{_lambda_.1} parent=1 // pred_check_branch
      %34 = sbr.rel (0) target = $region33
    $region32: #{_lambda_.1} parent=1 // pred_region
      _
    $region33: #{_lambda_.1} parent=1 // pred_fallthru
      _
    // Predicated region
    $region34: #{_lambda_.1} parent=1 // pred_check
      _
    $region35: #{_lambda_.1} parent=1 // pred_check_branch
      %36 = sbr.rel (0) target = $region37
    $region36: #{_lambda_.1} parent=1 // pred_region
      _
    $region37: #{_lambda_.1} parent=1 // pred_fallthru
      _
    // Predicated region
    $region38: #{_lambda_.1} parent=1 // pred_check
      _
    $region39: #{_lambda_.1} parent=1 // pred_check_branch
      %38 = sbr.rel (0) target = $region41
    $region40: #{_lambda_.1} parent=1 // pred_region
      _
    $region41: #{_lambda_.1} parent=1 // pred_fallthru
      _
    %v39 = vld [vmem:[%s1] sm:$0xff]
    %v40 = vld [vmem:[%s1 + $0x8] sm:$0xff]
    %v41 = vld [vmem:[%s2] sm:$0xff]
    %v42 = vld [vmem:[%s2 + $0x8] sm:$0xff]
    %v43 = vld [vmem:[%s3] sm:$0xff]
    %v44 = vld [vmem:[%s3 + $0x8] sm:$0xff]
    %v45 = vld [vmem:[%s3 + $0x10] sm:$0xff]
    %v46 = vld [vmem:[%s3 + $0x18] sm:$0xff]
    %v47 = vld [vmem:[%s3 + $0x20] sm:$0xff]
    %v48 = vld [vmem:[%s3 + $0x28] sm:$0xff]
    %v49 = vld [vmem:[%s3 + $0x30] sm:$0xff]
    %v50 = vld [vmem:[%s3 + $0x38] sm:$0xff]
    %v51 = vld [vmem:[%s3 + $0x40] sm:$0xff]
    %v52 = vld [vmem:[%s3 + $0x48] sm:$0xff]
    %v53 = vld [vmem:[%s3 + $0x50] sm:$0xff]
    %v54 = vld [vmem:[%s3 + $0x58] sm:$0xff]
    %v55 = vld [vmem:[%s3 + $0x60] sm:$0xff]
    %v56 = vld [vmem:[%s3 + $0x68] sm:$0xff]
    %v57 = vld [vmem:[%s3 + $0x70] sm:$0xff]
    %v58 = vld [vmem:[%s3 + $0x78] sm:$0xff]
    %v59 = vld [vmem:[%s3 + $0x80] sm:$0xff]
    %v60 = vld [vmem:[%s3 + $0x88] sm:$0xff]
    %v61 = vld [vmem:[%s3 + $0x90] sm:$0xff]
    %v62 = vld [vmem:[%s3 + $0x98] sm:$0xff]
    %v63 = vld [vmem:[%s3 + $0xa0] sm:$0xff]
    %v64 = vld [vmem:[%s3 + $0xa8] sm:$0xff]
    %v65 = vld [vmem:[%s3 + $0xb0] sm:$0xff]
    %v66 = vld [vmem:[%s3 + $0xb8] sm:$0xff]
    %v67 = vld [vmem:[%s3 + $0xc0] sm:$0xff]
    %v68 = vld [vmem:[%s3 + $0xc8] sm:$0xff]
    %v69 = vld [vmem:[%s3 + $0xd0] sm:$0xff]
    %v70 = vld [vmem:[%s3 + $0xd8] sm:$0xff]
    %v71 = vld [vmem:[%s3 + $0xe0] sm:$0xff]
    %v72 = vld [vmem:[%s3 + $0xe8] sm:$0xff]
    %v73 = vld [vmem:[%s3 + $0xf0] sm:$0xff]
    %v74 = vld [vmem:[%s3 + $0xf8] sm:$0xff]
    %v75 = vld [vmem:[%s3 + $0x100] sm:$0xff]
    %v76 = vld [vmem:[%s3 + $0x108] sm:$0xff]
    %v77 = vld [vmem:[%s3 + $0x110] sm:$0xff]
    %v78 = vld [vmem:[%s3 + $0x118] sm:$0xff]
    %v79 = vld [vmem:[%s3 + $0x120] sm:$0xff]
    %v80 = vld [vmem:[%s3 + $0x128] sm:$0xff]
    %v81 = vld [vmem:[%s3 + $0x130] sm:$0xff]
    %v82 = vld [vmem:[%s3 + $0x138] sm:$0xff]
    %v83 = vld [vmem:[%s3 + $0x140] sm:$0xff]
    %v84 = vld [vmem:[%s3 + $0x148] sm:$0xff]
    %v85 = vld [vmem:[%s3 + $0x150] sm:$0xff]
    %v86 = vld [vmem:[%s3 + $0x158] sm:$0xff]
    %v87 = vld [vmem:[%s3 + $0x160] sm:$0xff]
    %v88 = vld [vmem:[%s3 + $0x168] sm:$0xff]
    %v89 = vld [vmem:[%s3 + $0x170] sm:$0xff]
    %v90 = vld [vmem:[%s3 + $0x178] sm:$0xff]
    %v91 = vld [vmem:[%s3 + $0x180] sm:$0xff]
    %v92 = vld [vmem:[%s3 + $0x188] sm:$0xff]
    %v93 = vld [vmem:[%s3 + $0x190] sm:$0xff]
    %v94 = vld [vmem:[%s3 + $0x198] sm:$0xff]
    %v95 = vld [vmem:[%s3 + $0x1a0] sm:$0xff]
    %v96 = vld [vmem:[%s3 + $0x1a8] sm:$0xff]
    %v97 = vld [vmem:[%s3 + $0x1b0] sm:$0xff]
    %v98 = vld [vmem:[%s3 + $0x1b8] sm:$0xff]
    %v99 = vld [vmem:[%s3 + $0x1c0] sm:$0xff]
    %v100 = vld [vmem:[%s3 + $0x1c8] sm:$0xff]
    %v101 = vld [vmem:[%s3 + $0x1d0] sm:$0xff]
    %v102 = vld [vmem:[%s3 + $0x1d8] sm:$0xff]
    %v103 = vld [vmem:[%s3 + $0x1e0] sm:$0xff]
    %v104 = vld [vmem:[%s3 + $0x1e8] sm:$0xff]
    %v105 = vld [vmem:[%s3 + $0x1f0] sm:$0xff]
    %v106 = vld [vmem:[%s3 + $0x1f8] sm:$0xff]
    %v107 = vld [vmem:[%s3 + $0x200] sm:$0xff]
    %v108 = vld [vmem:[%s3 + $0x208] sm:$0xff]
    %v109 = vld [vmem:[%s3 + $0x210] sm:$0xff]
    %v110 = vld [vmem:[%s3 + $0x218] sm:$0xff]
    %v111 = vld [vmem:[%s3 + $0x220] sm:$0xff]
    %v112 = vld [vmem:[%s3 + $0x228] sm:$0xff]
    %v113 = vld [vmem:[%s3 + $0x230] sm:$0xff]
    %v114 = vld [vmem:[%s3 + $0x238] sm:$0xff]
    %v115 = vld [vmem:[%s3 + $0x240] sm:$0xff]
    %v116 = vld [vmem:[%s3 + $0x248] sm:$0xff]
    %v117 = vld [vmem:[%s3 + $0x250] sm:$0xff]
    %v118 = vld [vmem:[%s3 + $0x258] sm:$0xff]
    %v119 = vld [vmem:[%s3 + $0x260] sm:$0xff]
    %v120 = vld [vmem:[%s3 + $0x268] sm:$0xff]
    %v121 = vld [vmem:[%s3 + $0x270] sm:$0xff]
    %v122 = vld [vmem:[%s3 + $0x278] sm:$0xff]
    %v123 = vld [vmem:[%s3 + $0x280] sm:$0xff]
    %v124 = vld [vmem:[%s3 + $0x288] sm:$0xff]
    %v125 = vld [vmem:[%s3 + $0x290] sm:$0xff]
    %v126 = vld [vmem:[%s3 + $0x298] sm:$0xff]
    %v127 = vld [vmem:[%s3 + $0x2a0] sm:$0xff]
    %v128 = vld [vmem:[%s3 + $0x2a8] sm:$0xff]
    %v129 = vld [vmem:[%s3 + $0x2b0] sm:$0xff]
    %v130 = vld [vmem:[%s3 + $0x2b8] sm:$0xff]
    %v131 = vld [vmem:[%s3 + $0x2c0] sm:$0xff]
    %v132 = vld [vmem:[%s3 + $0x2c8] sm:$0xff]
    %v133 = vld [vmem:[%s3 + $0x2d0] sm:$0xff]
    %v134 = vld [vmem:[%s3 + $0x2d8] sm:$0xff]
    %v135 = vld [vmem:[%s3 + $0x2e0] sm:$0xff]
    %v136 = vld [vmem:[%s3 + $0x2e8] sm:$0xff]
    %v137 = vld [vmem:[%s3 + $0x2f0] sm:$0xff]
    %v138 = vld [vmem:[%s3 + $0x2f8] sm:$0xff]
    %v139 = vld [vmem:[%s3 + $0x300] sm:$0xff]
    %v140 = vld [vmem:[%s3 + $0x308] sm:$0xff]
    %v141 = vld [vmem:[%s3 + $0x310] sm:$0xff]
    %v142 = vld [vmem:[%s3 + $0x318] sm:$0xff]
    %v143 = vld [vmem:[%s3 + $0x320] sm:$0xff]
    %v144 = vld [vmem:[%s3 + $0x328] sm:$0xff]
    %v145 = vld [vmem:[%s3 + $0x330] sm:$0xff]
    %v146 = vld [vmem:[%s3 + $0x338] sm:$0xff]
    %v147 = vld [vmem:[%s3 + $0x340] sm:$0xff]
    %v148 = vld [vmem:[%s3 + $0x348] sm:$0xff]
    %v149 = vld [vmem:[%s3 + $0x350] sm:$0xff]
    %v150 = vld [vmem:[%s3 + $0x358] sm:$0xff]
    %v151 = vld [vmem:[%s3 + $0x360] sm:$0xff]
    %v152 = vld [vmem:[%s3 + $0x368] sm:$0xff]
    %v153 = vld [vmem:[%s3 + $0x370] sm:$0xff]
    %v154 = vld [vmem:[%s3 + $0x378] sm:$0xff]
    %v155 = vld [vmem:[%s3 + $0x380] sm:$0xff]
    %v156 = vld [vmem:[%s3 + $0x388] sm:$0xff]
    %v157 = vld [vmem:[%s3 + $0x390] sm:$0xff]
    %v158 = vld [vmem:[%s3 + $0x398] sm:$0xff]
    %v159 = vld [vmem:[%s3 + $0x3a0] sm:$0xff]
    %v160 = vld [vmem:[%s3 + $0x3a8] sm:$0xff]
    %v161 = vld [vmem:[%s3 + $0x3b0] sm:$0xff]
    %v162 = vld [vmem:[%s3 + $0x3b8] sm:$0xff]
    %v163 = vld [vmem:[%s3 + $0x3c0] sm:$0xff]
    %v164 = vld [vmem:[%s3 + $0x3c8] sm:$0xff]
    %v165 = vld [vmem:[%s3 + $0x3d0] sm:$0xff]
    %v166 = vld [vmem:[%s3 + $0x3d8] sm:$0xff]
    %v167 = vld [vmem:[%s3 + $0x3e0] sm:$0xff]
    %v168 = vld [vmem:[%s3 + $0x3e8] sm:$0xff]
    %v169 = vld [vmem:[%s3 + $0x3f0] sm:$0xff]
    %v170 = vld [vmem:[%s3 + $0x3f8] sm:$0xff]
    %v171 = vld [vmem:[%s3 + $0x400] sm:$0xff]
    %v172 = vld [vmem:[%s3 + $0x408] sm:$0xff]
    %v173 = vld [vmem:[%s3 + $0x410] sm:$0xff]
    %v174 = vld [vmem:[%s3 + $0x418] sm:$0xff]
    %v175 = vld [vmem:[%s3 + $0x420] sm:$0xff]
    %v176 = vld [vmem:[%s3 + $0x428] sm:$0xff]
    %v177 = vld [vmem:[%s3 + $0x430] sm:$0xff]
    %v178 = vld [vmem:[%s3 + $0x438] sm:$0xff]
    %v179 = vld [vmem:[%s3 + $0x440] sm:$0xff]
    %v180 = vld [vmem:[%s3 + $0x448] sm:$0xff]
    %v181 = vld [vmem:[%s3 + $0x450] sm:$0xff]
    %v182 = vld [vmem:[%s3 + $0x458] sm:$0xff]
    %v183 = vld [vmem:[%s3 + $0x460] sm:$0xff]
    %v184 = vld [vmem:[%s3 + $0x468] sm:$0xff]
    %v185 = vld [vmem:[%s3 + $0x470] sm:$0xff]
    %v186 = vld [vmem:[%s3 + $0x478] sm:$0xff]
    %v187 = vld [vmem:[%s3 + $0x480] sm:$0xff]
    %v188 = vld [vmem:[%s3 + $0x488] sm:$0xff]
    %v189 = vld [vmem:[%s3 + $0x490] sm:$0xff]
    %v190 = vld [vmem:[%s3 + $0x498] sm:$0xff]
    %v191 = vld [vmem:[%s3 + $0x4a0] sm:$0xff]
    %v192 = vld [vmem:[%s3 + $0x4a8] sm:$0xff]
    %v193 = vld [vmem:[%s3 + $0x4b0] sm:$0xff]
    %v194 = vld [vmem:[%s3 + $0x4b8] sm:$0xff]
    %v195 = vld [vmem:[%s3 + $0x4c0] sm:$0xff]
    %v196 = vld [vmem:[%s3 + $0x4c8] sm:$0xff]
    %v197 = vld [vmem:[%s3 + $0x4d0] sm:$0xff]
    %v198 = vld [vmem:[%s3 + $0x4d8] sm:$0xff]
    %v199 = vld [vmem:[%s3 + $0x4e0] sm:$0xff]
    %v200 = vld [vmem:[%s3 + $0x4e8] sm:$0xff]
    %v201 = vld [vmem:[%s3 + $0x4f0] sm:$0xff]
    %v202 = vld [vmem:[%s3 + $0x4f8] sm:$0xff]
    %v203 = vld [vmem:[%s3 + $0x500] sm:$0xff]
    %v204 = vld [vmem:[%s3 + $0x508] sm:$0xff]
    %v205 = vld [vmem:[%s3 + $0x510] sm:$0xff]
    %v206 = vld [vmem:[%s3 + $0x518] sm:$0xff]
    %v207 = vld [vmem:[%s3 + $0x520] sm:$0xff]
    %v208 = vld [vmem:[%s3 + $0x528] sm:$0xff]
    %v209 = vld [vmem:[%s3 + $0x530] sm:$0xff]
    %v210 = vld [vmem:[%s3 + $0x538] sm:$0xff]
    %v211 = vld [vmem:[%s3 + $0x540] sm:$0xff]
    %v212 = vld [vmem:[%s3 + $0x548] sm:$0xff]
    %v213 = vld [vmem:[%s3 + $0x550] sm:$0xff]
    %v214 = vld [vmem:[%s3 + $0x558] sm:$0xff]
    %v215 = vld [vmem:[%s3 + $0x560] sm:$0xff]
    %v216 = vld [vmem:[%s3 + $0x568] sm:$0xff]
    %v217 = vld [vmem:[%s3 + $0x570] sm:$0xff]
    %v218 = vld [vmem:[%s3 + $0x578] sm:$0xff]
    %v219 = vld [vmem:[%s3 + $0x580] sm:$0xff]
    %v220 = vld [vmem:[%s3 + $0x588] sm:$0xff]
    %v221 = vld [vmem:[%s3 + $0x590] sm:$0xff]
    %v222 = vld [vmem:[%s3 + $0x598] sm:$0xff]
    %v223 = vld [vmem:[%s3 + $0x5a0] sm:$0xff]
    %v224 = vld [vmem:[%s3 + $0x5a8] sm:$0xff]
    %v225 = vld [vmem:[%s3 + $0x5b0] sm:$0xff]
    %v226 = vld [vmem:[%s3 + $0x5b8] sm:$0xff]
    %v227 = vld [vmem:[%s3 + $0x5c0] sm:$0xff]
    %v228 = vld [vmem:[%s3 + $0x5c8] sm:$0xff]
    %v229 = vld [vmem:[%s3 + $0x5d0] sm:$0xff]
    %v230 = vld [vmem:[%s3 + $0x5d8] sm:$0xff]
    %v231 = vld [vmem:[%s3 + $0x5e0] sm:$0xff]
    %v232 = vld [vmem:[%s3 + $0x5e8] sm:$0xff]
    %v233 = vld [vmem:[%s3 + $0x5f0] sm:$0xff]
    %v234 = vld [vmem:[%s3 + $0x5f8] sm:$0xff]
    %v235 = vld [vmem:[%s3 + $0x600] sm:$0xff]
    %v236 = vld [vmem:[%s3 + $0x608] sm:$0xff]
    %v237 = vld [vmem:[%s3 + $0x610] sm:$0xff]
    %v238 = vld [vmem:[%s3 + $0x618] sm:$0xff]
    %v239 = vld [vmem:[%s3 + $0x620] sm:$0xff]
    %v240 = vld [vmem:[%s3 + $0x628] sm:$0xff]
    %v241 = vld [vmem:[%s3 + $0x630] sm:$0xff]
    %v242 = vld [vmem:[%s3 + $0x638] sm:$0xff]
    %v243 = vld [vmem:[%s3 + $0x640] sm:$0xff]
    %v244 = vld [vmem:[%s3 + $0x648] sm:$0xff]
    %v245 = vld [vmem:[%s3 + $0x650] sm:$0xff]
    %v246 = vld [vmem:[%s3 + $0x658] sm:$0xff]
    %v247 = vld [vmem:[%s3 + $0x660] sm:$0xff]
    %v248 = vld [vmem:[%s3 + $0x668] sm:$0xff]
    %v249 = vld [vmem:[%s3 + $0x670] sm:$0xff]
    %v250 = vld [vmem:[%s3 + $0x678] sm:$0xff]
    %v251 = vld [vmem:[%s3 + $0x680] sm:$0xff]
    %v252 = vld [vmem:[%s3 + $0x688] sm:$0xff]
    %v253 = vld [vmem:[%s3 + $0x690] sm:$0xff]
    %v254 = vld [vmem:[%s3 + $0x698] sm:$0xff]
    %v255 = vld [vmem:[%s3 + $0x6a0] sm:$0xff]
    %v256 = vld [vmem:[%s3 + $0x6a8] sm:$0xff]
    %v257 = vld [vmem:[%s3 + $0x6b0] sm:$0xff]
    %v258 = vld [vmem:[%s3 + $0x6b8] sm:$0xff]
    %v259 = vld [vmem:[%s3 + $0x6c0] sm:$0xff]
    %v260 = vld [vmem:[%s3 + $0x6c8] sm:$0xff]
    %v261 = vld [vmem:[%s3 + $0x6d0] sm:$0xff]
    %v262 = vld [vmem:[%s3 + $0x6d8] sm:$0xff]
    %v263 = vld [vmem:[%s3 + $0x6e0] sm:$0xff]
    %v264 = vld [vmem:[%s3 + $0x6e8] sm:$0xff]
    %v265 = vld [vmem:[%s3 + $0x6f0] sm:$0xff]
    %v266 = vld [vmem:[%s3 + $0x6f8] sm:$0xff]
    %v267 = vld [vmem:[%s3 + $0x700] sm:$0xff]
    %v268 = vld [vmem:[%s3 + $0x708] sm:$0xff]
    %v269 = vld [vmem:[%s3 + $0x710] sm:$0xff]
    %v270 = vld [vmem:[%s3 + $0x718] sm:$0xff]
    %v271 = vld [vmem:[%s3 + $0x720] sm:$0xff]
    %v272 = vld [vmem:[%s3 + $0x728] sm:$0xff]
    %v273 = vld [vmem:[%s3 + $0x730] sm:$0xff]
    %v274 = vld [vmem:[%s3 + $0x738] sm:$0xff]
    %v275 = vld [vmem:[%s3 + $0x740] sm:$0xff]
    %v276 = vld [vmem:[%s3 + $0x748] sm:$0xff]
    %v277 = vld [vmem:[%s3 + $0x750] sm:$0xff]
    %v278 = vld [vmem:[%s3 + $0x758] sm:$0xff]
    %v279 = vld [vmem:[%s3 + $0x760] sm:$0xff]
    %v280 = vld [vmem:[%s3 + $0x768] sm:$0xff]
    %v281 = vld [vmem:[%s3 + $0x770] sm:$0xff]
    %v282 = vld [vmem:[%s3 + $0x778] sm:$0xff]
    %v283 = vld [vmem:[%s3 + $0x780] sm:$0xff]
    %v284 = vld [vmem:[%s3 + $0x788] sm:$0xff]
    %v285 = vld [vmem:[%s3 + $0x790] sm:$0xff]
    %v286 = vld [vmem:[%s3 + $0x798] sm:$0xff]
    %v287 = vld [vmem:[%s3 + $0x7a0] sm:$0xff]
    %v288 = vld [vmem:[%s3 + $0x7a8] sm:$0xff]
    %v289 = vld [vmem:[%s3 + $0x7b0] sm:$0xff]
    %v290 = vld [vmem:[%s3 + $0x7b8] sm:$0xff]
    %v291 = vld [vmem:[%s3 + $0x7c0] sm:$0xff]
    %v292 = vld [vmem:[%s3 + $0x7c8] sm:$0xff]
    %v293 = vld [vmem:[%s3 + $0x7d0] sm:$0xff]
    %v294 = vld [vmem:[%s3 + $0x7d8] sm:$0xff]
    %v295 = vld [vmem:[%s3 + $0x7e0] sm:$0xff]
    %v296 = vld [vmem:[%s3 + $0x7e8] sm:$0xff]
    %v297 = vld [vmem:[%s3 + $0x7f0] sm:$0xff]
    %v298 = vld [vmem:[%s3 + $0x7f8] sm:$0xff]
    %v299 = vld [vmem:[%s0] sm:$0xff]
    %v300 = vld [vmem:[%s0 + $0x8] sm:$0xff]
    %v301 = vld [vmem:[%s0 + $0x10] sm:$0xff]
    %v302 = vld [vmem:[%s0 + $0x18] sm:$0xff]
    %v303 = vld [vmem:[%s0 + $0x20] sm:$0xff]
    %v304 = vld [vmem:[%s0 + $0x28] sm:$0xff]
    %v305 = vld [vmem:[%s0 + $0x30] sm:$0xff]
    %v306 = vld [vmem:[%s0 + $0x38] sm:$0xff]
    %307 = vmatpush.msra.mxu0 %v163
    %308 = vmatpush.msra.mxu0 %v155
    %309 = vmatpush.msra.mxu0 %v147
    %310 = vmatpush.msra.mxu0 %v139
    %311 = vmatpush.msra.mxu0 %v131
    %312 = vmatpush.msra.mxu0 %v123
    %313 = vmatpush.msra.mxu0 %v115
    %314 = vmatpush.msra.mxu0 %v107
    %315 = vmatpush.msra.mxu0 %v99
    %316 = vmatpush.msra.mxu0 %v91
    %317 = vmatpush.msra.mxu0 %v83
    %318 = vmatpush.msra.mxu0 %v75
    %319 = vmatpush.msra.mxu0 %v67
    %320 = vmatpush.msra.mxu0 %v59
    %321 = vmatpush.msra.mxu0 %v51
    %322 = vmatpush.msra.mxu0 %v43
    %323 = vmatmul.f32.gmra.mxu0 %v39
    %v324 = vpop.f32.mrf.mxu0
    %v325 = vadd.f32 0.0, %v324
    %326 = vdwg.mxu0
    %327 = vmatpush.msra.mxu0 %v291
    %328 = vmatpush.msra.mxu0 %v283
    %329 = vmatpush.msra.mxu0 %v275
    %330 = vmatpush.msra.mxu0 %v267
    %331 = vmatpush.msra.mxu0 %v259
    %332 = vmatpush.msra.mxu0 %v251
    %333 = vmatpush.msra.mxu0 %v243
    %334 = vmatpush.msra.mxu0 %v235
    %335 = vmatpush.msra.mxu0 %v227
    %336 = vmatpush.msra.mxu0 %v219
    %337 = vmatpush.msra.mxu0 %v211
    %338 = vmatpush.msra.mxu0 %v203
    %339 = vmatpush.msra.mxu0 %v195
    %340 = vmatpush.msra.mxu0 %v187
    %341 = vmatpush.msra.mxu0 %v179
    %342 = vmatpush.msra.mxu0 %v171
    %343 = vmatmul.f32.gmra.mxu0 %v40
    %v344 = vpop.f32.mrf.mxu0
    %v345 = vadd.f32 %v325, %v344
    %346 = vdwg.mxu0
    %347 = vmatpush.msra.mxu0 %v164
    %348 = vmatpush.msra.mxu0 %v156
    %349 = vmatpush.msra.mxu0 %v148
    %350 = vmatpush.msra.mxu0 %v140
    %351 = vmatpush.msra.mxu0 %v132
    %352 = vmatpush.msra.mxu0 %v124
    %353 = vmatpush.msra.mxu0 %v116
    %354 = vmatpush.msra.mxu0 %v108
    %355 = vmatpush.msra.mxu0 %v100
    %356 = vmatpush.msra.mxu0 %v92
    %357 = vmatpush.msra.mxu0 %v84
    %358 = vmatpush.msra.mxu0 %v76
    %359 = vmatpush.msra.mxu0 %v68
    %360 = vmatpush.msra.mxu0 %v60
    %361 = vmatpush.msra.mxu0 %v52
    %362 = vmatpush.msra.mxu0 %v44
    %363 = vmatmul.f32.gmra.mxu0 %v39
    %v364 = vpop.f32.mrf.mxu0
    %v365 = vadd.f32 0.0, %v364
    %366 = vdwg.mxu0
    %367 = vmatpush.msra.mxu0 %v292
    %368 = vmatpush.msra.mxu0 %v284
    %369 = vmatpush.msra.mxu0 %v276
    %370 = vmatpush.msra.mxu0 %v268
    %371 = vmatpush.msra.mxu0 %v260
    %372 = vmatpush.msra.mxu0 %v252
    %373 = vmatpush.msra.mxu0 %v244
    %374 = vmatpush.msra.mxu0 %v236
    %375 = vmatpush.msra.mxu0 %v228
    %376 = vmatpush.msra.mxu0 %v220
    %377 = vmatpush.msra.mxu0 %v212
    %378 = vmatpush.msra.mxu0 %v204
    %379 = vmatpush.msra.mxu0 %v196
    %380 = vmatpush.msra.mxu0 %v188
    %381 = vmatpush.msra.mxu0 %v180
    %382 = vmatpush.msra.mxu0 %v172
    %383 = vmatmul.f32.gmra.mxu0 %v40
    %v384 = vpop.f32.mrf.mxu0
    %v385 = vadd.f32 %v365, %v384
    %386 = vdwg.mxu0
    %387 = vmatpush.msra.mxu0 %v165
    %388 = vmatpush.msra.mxu0 %v157
    %389 = vmatpush.msra.mxu0 %v149
    %390 = vmatpush.msra.mxu0 %v141
    %391 = vmatpush.msra.mxu0 %v133
    %392 = vmatpush.msra.mxu0 %v125
    %393 = vmatpush.msra.mxu0 %v117
    %394 = vmatpush.msra.mxu0 %v109
    %395 = vmatpush.msra.mxu0 %v101
    %396 = vmatpush.msra.mxu0 %v93
    %397 = vmatpush.msra.mxu0 %v85
    %398 = vmatpush.msra.mxu0 %v77
    %399 = vmatpush.msra.mxu0 %v69
    %400 = vmatpush.msra.mxu0 %v61
    %401 = vmatpush.msra.mxu0 %v53
    %402 = vmatpush.msra.mxu0 %v45
    %403 = vmatmul.f32.gmra.mxu0 %v39
    %v404 = vpop.f32.mrf.mxu0
    %v405 = vadd.f32 0.0, %v404
    %406 = vdwg.mxu0
    %407 = vmatpush.msra.mxu0 %v293
    %408 = vmatpush.msra.mxu0 %v285
    %409 = vmatpush.msra.mxu0 %v277
    %410 = vmatpush.msra.mxu0 %v269
    %411 = vmatpush.msra.mxu0 %v261
    %412 = vmatpush.msra.mxu0 %v253
    %413 = vmatpush.msra.mxu0 %v245
    %414 = vmatpush.msra.mxu0 %v237
    %415 = vmatpush.msra.mxu0 %v229
    %416 = vmatpush.msra.mxu0 %v221
    %417 = vmatpush.msra.mxu0 %v213
    %418 = vmatpush.msra.mxu0 %v205
    %419 = vmatpush.msra.mxu0 %v197
    %420 = vmatpush.msra.mxu0 %v189
    %421 = vmatpush.msra.mxu0 %v181
    %422 = vmatpush.msra.mxu0 %v173
    %423 = vmatmul.f32.gmra.mxu0 %v40
    %v424 = vpop.f32.mrf.mxu0
    %v425 = vadd.f32 %v405, %v424
    %426 = vdwg.mxu0
    %427 = vmatpush.msra.mxu0 %v166
    %428 = vmatpush.msra.mxu0 %v158
    %429 = vmatpush.msra.mxu0 %v150
    %430 = vmatpush.msra.mxu0 %v142
    %431 = vmatpush.msra.mxu0 %v134
    %432 = vmatpush.msra.mxu0 %v126
    %433 = vmatpush.msra.mxu0 %v118
    %434 = vmatpush.msra.mxu0 %v110
    %435 = vmatpush.msra.mxu0 %v102
    %436 = vmatpush.msra.mxu0 %v94
    %437 = vmatpush.msra.mxu0 %v86
    %438 = vmatpush.msra.mxu0 %v78
    %439 = vmatpush.msra.mxu0 %v70
    %440 = vmatpush.msra.mxu0 %v62
    %441 = vmatpush.msra.mxu0 %v54
    %442 = vmatpush.msra.mxu0 %v46
    %443 = vmatmul.f32.gmra.mxu0 %v39
    %v444 = vpop.f32.mrf.mxu0
    %v445 = vadd.f32 0.0, %v444
    %446 = vdwg.mxu0
    %447 = vmatpush.msra.mxu0 %v294
    %448 = vmatpush.msra.mxu0 %v286
    %449 = vmatpush.msra.mxu0 %v278
    %450 = vmatpush.msra.mxu0 %v270
    %451 = vmatpush.msra.mxu0 %v262
    %452 = vmatpush.msra.mxu0 %v254
    %453 = vmatpush.msra.mxu0 %v246
    %454 = vmatpush.msra.mxu0 %v238
    %455 = vmatpush.msra.mxu0 %v230
    %456 = vmatpush.msra.mxu0 %v222
    %457 = vmatpush.msra.mxu0 %v214
    %458 = vmatpush.msra.mxu0 %v206
    %459 = vmatpush.msra.mxu0 %v198
    %460 = vmatpush.msra.mxu0 %v190
    %461 = vmatpush.msra.mxu0 %v182
    %462 = vmatpush.msra.mxu0 %v174
    %463 = vmatmul.f32.gmra.mxu0 %v40
    %v464 = vpop.f32.mrf.mxu0
    %v465 = vadd.f32 %v445, %v464
    %466 = vdwg.mxu0
    %467 = vmatpush.msra.mxu0 %v167
    %468 = vmatpush.msra.mxu0 %v159
    %469 = vmatpush.msra.mxu0 %v151
    %470 = vmatpush.msra.mxu0 %v143
    %471 = vmatpush.msra.mxu0 %v135
    %472 = vmatpush.msra.mxu0 %v127
    %473 = vmatpush.msra.mxu0 %v119
    %474 = vmatpush.msra.mxu0 %v111
    %475 = vmatpush.msra.mxu0 %v103
    %476 = vmatpush.msra.mxu0 %v95
    %477 = vmatpush.msra.mxu0 %v87
    %478 = vmatpush.msra.mxu0 %v79
    %479 = vmatpush.msra.mxu0 %v71
    %480 = vmatpush.msra.mxu0 %v63
    %481 = vmatpush.msra.mxu0 %v55
    %482 = vmatpush.msra.mxu0 %v47
    %483 = vmatmul.f32.gmra.mxu0 %v39
    %v484 = vpop.f32.mrf.mxu0
    %v485 = vadd.f32 0.0, %v484
    %486 = vdwg.mxu0
    %487 = vmatpush.msra.mxu0 %v295
    %488 = vmatpush.msra.mxu0 %v287
    %489 = vmatpush.msra.mxu0 %v279
    %490 = vmatpush.msra.mxu0 %v271
    %491 = vmatpush.msra.mxu0 %v263
    %492 = vmatpush.msra.mxu0 %v255
    %493 = vmatpush.msra.mxu0 %v247
    %494 = vmatpush.msra.mxu0 %v239
    %495 = vmatpush.msra.mxu0 %v231
    %496 = vmatpush.msra.mxu0 %v223
    %497 = vmatpush.msra.mxu0 %v215
    %498 = vmatpush.msra.mxu0 %v207
    %499 = vmatpush.msra.mxu0 %v199
    %500 = vmatpush.msra.mxu0 %v191
    %501 = vmatpush.msra.mxu0 %v183
    %502 = vmatpush.msra.mxu0 %v175
    %503 = vmatmul.f32.gmra.mxu0 %v40
    %v504 = vpop.f32.mrf.mxu0
    %v505 = vadd.f32 %v485, %v504
    %506 = vdwg.mxu0
    %507 = vmatpush.msra.mxu0 %v168
    %508 = vmatpush.msra.mxu0 %v160
    %509 = vmatpush.msra.mxu0 %v152
    %510 = vmatpush.msra.mxu0 %v144
    %511 = vmatpush.msra.mxu0 %v136
    %512 = vmatpush.msra.mxu0 %v128
    %513 = vmatpush.msra.mxu0 %v120
    %514 = vmatpush.msra.mxu0 %v112
    %515 = vmatpush.msra.mxu0 %v104
    %516 = vmatpush.msra.mxu0 %v96
    %517 = vmatpush.msra.mxu0 %v88
    %518 = vmatpush.msra.mxu0 %v80
    %519 = vmatpush.msra.mxu0 %v72
    %520 = vmatpush.msra.mxu0 %v64
    %521 = vmatpush.msra.mxu0 %v56
    %522 = vmatpush.msra.mxu0 %v48
    %523 = vmatmul.f32.gmra.mxu0 %v39
    %v524 = vpop.f32.mrf.mxu0
    %v525 = vadd.f32 0.0, %v524
    %526 = vdwg.mxu0
    %527 = vmatpush.msra.mxu0 %v296
    %528 = vmatpush.msra.mxu0 %v288
    %529 = vmatpush.msra.mxu0 %v280
    %530 = vmatpush.msra.mxu0 %v272
    %531 = vmatpush.msra.mxu0 %v264
    %532 = vmatpush.msra.mxu0 %v256
    %533 = vmatpush.msra.mxu0 %v248
    %534 = vmatpush.msra.mxu0 %v240
    %535 = vmatpush.msra.mxu0 %v232
    %536 = vmatpush.msra.mxu0 %v224
    %537 = vmatpush.msra.mxu0 %v216
    %538 = vmatpush.msra.mxu0 %v208
    %539 = vmatpush.msra.mxu0 %v200
    %540 = vmatpush.msra.mxu0 %v192
    %541 = vmatpush.msra.mxu0 %v184
    %542 = vmatpush.msra.mxu0 %v176
    %543 = vmatmul.f32.gmra.mxu0 %v40
    %v544 = vpop.f32.mrf.mxu0
    %v545 = vadd.f32 %v525, %v544
    %546 = vdwg.mxu0
    %547 = vmatpush.msra.mxu0 %v169
    %548 = vmatpush.msra.mxu0 %v161
    %549 = vmatpush.msra.mxu0 %v153
    %550 = vmatpush.msra.mxu0 %v145
    %551 = vmatpush.msra.mxu0 %v137
    %552 = vmatpush.msra.mxu0 %v129
    %553 = vmatpush.msra.mxu0 %v121
    %554 = vmatpush.msra.mxu0 %v113
    %555 = vmatpush.msra.mxu0 %v105
    %556 = vmatpush.msra.mxu0 %v97
    %557 = vmatpush.msra.mxu0 %v89
    %558 = vmatpush.msra.mxu0 %v81
    %559 = vmatpush.msra.mxu0 %v73
    %560 = vmatpush.msra.mxu0 %v65
    %561 = vmatpush.msra.mxu0 %v57
    %562 = vmatpush.msra.mxu0 %v49
    %563 = vmatmul.f32.gmra.mxu0 %v39
    %v564 = vpop.f32.mrf.mxu0
    %v565 = vadd.f32 0.0, %v564
    %566 = vdwg.mxu0
    %567 = vmatpush.msra.mxu0 %v297
    %568 = vmatpush.msra.mxu0 %v289
    %569 = vmatpush.msra.mxu0 %v281
    %570 = vmatpush.msra.mxu0 %v273
    %571 = vmatpush.msra.mxu0 %v265
    %572 = vmatpush.msra.mxu0 %v257
    %573 = vmatpush.msra.mxu0 %v249
    %574 = vmatpush.msra.mxu0 %v241
    %575 = vmatpush.msra.mxu0 %v233
    %576 = vmatpush.msra.mxu0 %v225
    %577 = vmatpush.msra.mxu0 %v217
    %578 = vmatpush.msra.mxu0 %v209
    %579 = vmatpush.msra.mxu0 %v201
    %580 = vmatpush.msra.mxu0 %v193
    %581 = vmatpush.msra.mxu0 %v185
    %582 = vmatpush.msra.mxu0 %v177
    %583 = vmatmul.f32.gmra.mxu0 %v40
    %v584 = vpop.f32.mrf.mxu0
    %v585 = vadd.f32 %v565, %v584
    %586 = vdwg.mxu0
    %587 = vmatpush.msra.mxu0 %v170
    %588 = vmatpush.msra.mxu0 %v162
    %589 = vmatpush.msra.mxu0 %v154
    %590 = vmatpush.msra.mxu0 %v146
    %591 = vmatpush.msra.mxu0 %v138
    %592 = vmatpush.msra.mxu0 %v130
    %593 = vmatpush.msra.mxu0 %v122
    %594 = vmatpush.msra.mxu0 %v114
    %595 = vmatpush.msra.mxu0 %v106
    %596 = vmatpush.msra.mxu0 %v98
    %597 = vmatpush.msra.mxu0 %v90
    %598 = vmatpush.msra.mxu0 %v82
    %599 = vmatpush.msra.mxu0 %v74
    %600 = vmatpush.msra.mxu0 %v66
    %601 = vmatpush.msra.mxu0 %v58
    %602 = vmatpush.msra.mxu0 %v50
    %603 = vmatmul.f32.gmra.mxu0 %v39
    %v604 = vpop.f32.mrf.mxu0
    %v605 = vadd.f32 0.0, %v604
    %606 = vdwg.mxu0
    %607 = vmatpush.msra.mxu0 %v298
    %608 = vmatpush.msra.mxu0 %v290
    %609 = vmatpush.msra.mxu0 %v282
    %610 = vmatpush.msra.mxu0 %v274
    %611 = vmatpush.msra.mxu0 %v266
    %612 = vmatpush.msra.mxu0 %v258
    %613 = vmatpush.msra.mxu0 %v250
    %614 = vmatpush.msra.mxu0 %v242
    %615 = vmatpush.msra.mxu0 %v234
    %616 = vmatpush.msra.mxu0 %v226
    %617 = vmatpush.msra.mxu0 %v218
    %618 = vmatpush.msra.mxu0 %v210
    %619 = vmatpush.msra.mxu0 %v202
    %620 = vmatpush.msra.mxu0 %v194
    %621 = vmatpush.msra.mxu0 %v186
    %622 = vmatpush.msra.mxu0 %v178
    %623 = vmatmul.f32.gmra.mxu0 %v40
    %v624 = vpop.f32.mrf.mxu0
    %v625 = vadd.f32 %v605, %v624
    %626 = vdwg.mxu0
    %v627 = vadd.f32 %v299, %v345
    %v628 = vadd.f32 %v300, %v385
    %v629 = vadd.f32 %v301, %v425
    %v630 = vadd.f32 %v302, %v465
    %v631 = vadd.f32 %v303, %v505
    %v632 = vadd.f32 %v304, %v545
    %v633 = vadd.f32 %v305, %v585
    %v634 = vadd.f32 %v306, %v625
    %v635 = vxor.u32 %v627, 2147483648
    %v636 = vxor.u32 %v628, 2147483648
    %v637 = vmul.f32 %v635, 1.442695
    %v638 = vpow.pop %v637
    %v639 = vmul.f32 %v636, 1.442695
    %v640 = vpow.pop %v639
    %v641 = vadd.f32 %v638, 1.0
    %v642 = vadd.f32 %v640, 1.0
    %v643 = vrcp.pop %v641
    %v644 = vmul.f32 %v641, %v643
    %v645 = vsub.f32 1.0, %v644
    %v646 = vmul.f32 %v643, %v645
    %v647 = vadd.f32 %v643, %v646
    %vm648 = vweird.f32 %v641
    %vm649 = vweird.f32 %v643
    %vm650 = vmor %vm648, %vm649
    %v651 = vsel %vm650, %v643, %v647
    %v652 = vand.u32 2147483647, %v641
    %vm653 = vcmp.eq.f32.partialorder %v652, 8.507059e+37
    %v654 = vand.u32 %v641, 2147483648
    %v655 = vor.u32 1.1754944e-38, %v654
    %v656 = vsel %vm653, %v655, %v651
    %v657 = vmul.f32 1.0, %v656
    %v658 = vrcp.pop %v642
    %v659 = vmul.f32 %v642, %v658
    %v660 = vsub.f32 1.0, %v659
    %v661 = vmul.f32 %v658, %v660
    %v662 = vadd.f32 %v658, %v661
    %vm663 = vweird.f32 %v642
    %vm664 = vweird.f32 %v658
    %vm665 = vmor %vm663, %vm664
    %v666 = vsel %vm665, %v658, %v662
    %v667 = vand.u32 2147483647, %v642
    %vm668 = vcmp.eq.f32.partialorder %v667, 8.507059e+37
    %v669 = vand.u32 %v642, 2147483648
    %v670 = vor.u32 1.1754944e-38, %v669
    %v671 = vsel %vm668, %v670, %v666
    %v672 = vmul.f32 1.0, %v671
    %v673 = vxor.u32 %v629, 2147483648
    %v674 = vxor.u32 %v630, 2147483648
    %v675 = vmul.f32 %v673, 1.442695
    %v676 = vpow.pop %v675
    %v677 = vmul.f32 %v674, 1.442695
    %v678 = vpow.pop %v677
    %v679 = vadd.f32 %v676, 1.0
    %v680 = vadd.f32 %v678, 1.0
    %v681 = vrcp.pop %v679
    %v682 = vmul.f32 %v679, %v681
    %v683 = vsub.f32 1.0, %v682
    %v684 = vmul.f32 %v681, %v683
    %v685 = vadd.f32 %v681, %v684
    %vm686 = vweird.f32 %v679
    %vm687 = vweird.f32 %v681
    %vm688 = vmor %vm686, %vm687
    %v689 = vsel %vm688, %v681, %v685
    %v690 = vand.u32 2147483647, %v679
    %vm691 = vcmp.eq.f32.partialorder %v690, 8.507059e+37
    %v692 = vand.u32 %v679, 2147483648
    %v693 = vor.u32 1.1754944e-38, %v692
    %v694 = vsel %vm691, %v693, %v689
    %v695 = vmul.f32 1.0, %v694
    %v696 = vrcp.pop %v680
    %v697 = vmul.f32 %v680, %v696
    %v698 = vsub.f32 1.0, %v697
    %v699 = vmul.f32 %v696, %v698
    %v700 = vadd.f32 %v696, %v699
    %vm701 = vweird.f32 %v680
    %vm702 = vweird.f32 %v696
    %vm703 = vmor %vm701, %vm702
    %v704 = vsel %vm703, %v696, %v700
    %v705 = vand.u32 2147483647, %v680
    %vm706 = vcmp.eq.f32.partialorder %v705, 8.507059e+37
    %v707 = vand.u32 %v680, 2147483648
    %v708 = vor.u32 1.1754944e-38, %v707
    %v709 = vsel %vm706, %v708, %v704
    %v710 = vmul.f32 1.0, %v709
    %v711 = vtanh.pop %v631
    %v712 = vtanh.pop %v632
    %v713 = vxor.u32 %v633, 2147483648
    %v714 = vxor.u32 %v634, 2147483648
    %v715 = vmul.f32 %v713, 1.442695
    %v716 = vpow.pop %v715
    %v717 = vmul.f32 %v714, 1.442695
    %v718 = vpow.pop %v717
    %v719 = vadd.f32 %v716, 1.0
    %v720 = vadd.f32 %v718, 1.0
    %v721 = vrcp.pop %v719
    %v722 = vmul.f32 %v719, %v721
    %v723 = vsub.f32 1.0, %v722
    %v724 = vmul.f32 %v721, %v723
    %v725 = vadd.f32 %v721, %v724
    %vm726 = vweird.f32 %v719
    %vm727 = vweird.f32 %v721
    %vm728 = vmor %vm726, %vm727
    %v729 = vsel %vm728, %v721, %v725
    %v730 = vand.u32 2147483647, %v719
    %vm731 = vcmp.eq.f32.partialorder %v730, 8.507059e+37
    %v732 = vand.u32 %v719, 2147483648
    %v733 = vor.u32 1.1754944e-38, %v732
    %v734 = vsel %vm731, %v733, %v729
    %v735 = vmul.f32 1.0, %v734
    %v736 = vrcp.pop %v720
    %v737 = vmul.f32 %v720, %v736
    %v738 = vsub.f32 1.0, %v737
    %v739 = vmul.f32 %v736, %v738
    %v740 = vadd.f32 %v736, %v739
    %vm741 = vweird.f32 %v720
    %vm742 = vweird.f32 %v736
    %vm743 = vmor %vm741, %vm742
    %v744 = vsel %vm743, %v736, %v740
    %v745 = vand.u32 2147483647, %v720
    %vm746 = vcmp.eq.f32.partialorder %v745, 8.507059e+37
    %v747 = vand.u32 %v720, 2147483648
    %v748 = vor.u32 1.1754944e-38, %v747
    %v749 = vsel %vm746, %v748, %v744
    %v750 = vmul.f32 1.0, %v749
    %v751 = vmul.f32 %v695, %v41
    %v752 = vmul.f32 %v710, %v42
    %v753 = vmul.f32 %v657, %v711
    %v754 = vmul.f32 %v672, %v712
    %v755 = vadd.f32 %v751, %v753
    %v756 = vadd.f32 %v752, %v754
    %v757 = vtanh.pop %v755
    %v758 = vtanh.pop %v756
    %v759 = vmul.f32 %v735, %v757
    %v760 = vmul.f32 %v750, %v758
    %s761 = scalar_lea.vmem %s0, 64
    %v762 = vld [vmem:[%s761] sm:$0xff]
    %v763 = vld [vmem:[%s761 + $0x8] sm:$0xff]
    %v764 = vld [vmem:[%s761 + $0x10] sm:$0xff]
    %v765 = vld [vmem:[%s761 + $0x18] sm:$0xff]
    %v766 = vld [vmem:[%s761 + $0x20] sm:$0xff]
    %v767 = vld [vmem:[%s761 + $0x28] sm:$0xff]
    %v768 = vld [vmem:[%s761 + $0x30] sm:$0xff]
    %v769 = vld [vmem:[%s761 + $0x38] sm:$0xff]
    %770 = vmatpush.msra.mxu0 %v163
    %771 = vmatpush.msra.mxu0 %v155
    %772 = vmatpush.msra.mxu0 %v147
    %773 = vmatpush.msra.mxu0 %v139
    %774 = vmatpush.msra.mxu0 %v131
    %775 = vmatpush.msra.mxu0 %v123
    %776 = vmatpush.msra.mxu0 %v115
    %777 = vmatpush.msra.mxu0 %v107
    %778 = vmatpush.msra.mxu0 %v99
    %779 = vmatpush.msra.mxu0 %v91
    %780 = vmatpush.msra.mxu0 %v83
    %781 = vmatpush.msra.mxu0 %v75
    %782 = vmatpush.msra.mxu0 %v67
    %783 = vmatpush.msra.mxu0 %v59
    %784 = vmatpush.msra.mxu0 %v51
    %785 = vmatpush.msra.mxu0 %v43
    %786 = vmatmul.f32.gmra.mxu0 %v759
    %v787 = vpop.f32.mrf.mxu0
    %v788 = vadd.f32 0.0, %v787
    %789 = vdwg.mxu0
    %790 = vmatpush.msra.mxu0 %v291
    %791 = vmatpush.msra.mxu0 %v283
    %792 = vmatpush.msra.mxu0 %v275
    %793 = vmatpush.msra.mxu0 %v267
    %794 = vmatpush.msra.mxu0 %v259
    %795 = vmatpush.msra.mxu0 %v251
    %796 = vmatpush.msra.mxu0 %v243
    %797 = vmatpush.msra.mxu0 %v235
    %798 = vmatpush.msra.mxu0 %v227
    %799 = vmatpush.msra.mxu0 %v219
    %800 = vmatpush.msra.mxu0 %v211
    %801 = vmatpush.msra.mxu0 %v203
    %802 = vmatpush.msra.mxu0 %v195
    %803 = vmatpush.msra.mxu0 %v187
    %804 = vmatpush.msra.mxu0 %v179
    %805 = vmatpush.msra.mxu0 %v171
    %806 = vmatmul.f32.gmra.mxu0 %v760
    %v807 = vpop.f32.mrf.mxu0
    %v808 = vadd.f32 %v788, %v807
    %809 = vdwg.mxu0
    %810 = vmatpush.msra.mxu0 %v164
    %811 = vmatpush.msra.mxu0 %v156
    %812 = vmatpush.msra.mxu0 %v148
    %813 = vmatpush.msra.mxu0 %v140
    %814 = vmatpush.msra.mxu0 %v132
    %815 = vmatpush.msra.mxu0 %v124
    %816 = vmatpush.msra.mxu0 %v116
    %817 = vmatpush.msra.mxu0 %v108
    %818 = vmatpush.msra.mxu0 %v100
    %819 = vmatpush.msra.mxu0 %v92
    %820 = vmatpush.msra.mxu0 %v84
    %821 = vmatpush.msra.mxu0 %v76
    %822 = vmatpush.msra.mxu0 %v68
    %823 = vmatpush.msra.mxu0 %v60
    %824 = vmatpush.msra.mxu0 %v52
    %825 = vmatpush.msra.mxu0 %v44
    %826 = vmatmul.f32.gmra.mxu0 %v759
    %v827 = vpop.f32.mrf.mxu0
    %v828 = vadd.f32 0.0, %v827
    %829 = vdwg.mxu0
    %830 = vmatpush.msra.mxu0 %v292
    %831 = vmatpush.msra.mxu0 %v284
    %832 = vmatpush.msra.mxu0 %v276
    %833 = vmatpush.msra.mxu0 %v268
    %834 = vmatpush.msra.mxu0 %v260
    %835 = vmatpush.msra.mxu0 %v252
    %836 = vmatpush.msra.mxu0 %v244
    %837 = vmatpush.msra.mxu0 %v236
    %838 = vmatpush.msra.mxu0 %v228
    %839 = vmatpush.msra.mxu0 %v220
    %840 = vmatpush.msra.mxu0 %v212
    %841 = vmatpush.msra.mxu0 %v204
    %842 = vmatpush.msra.mxu0 %v196
    %843 = vmatpush.msra.mxu0 %v188
    %844 = vmatpush.msra.mxu0 %v180
    %845 = vmatpush.msra.mxu0 %v172
    %846 = vmatmul.f32.gmra.mxu0 %v760
    %v847 = vpop.f32.mrf.mxu0
    %v848 = vadd.f32 %v828, %v847
    %849 = vdwg.mxu0
    %850 = vmatpush.msra.mxu0 %v165
    %851 = vmatpush.msra.mxu0 %v157
    %852 = vmatpush.msra.mxu0 %v149
    %853 = vmatpush.msra.mxu0 %v141
    %854 = vmatpush.msra.mxu0 %v133
    %855 = vmatpush.msra.mxu0 %v125
    %856 = vmatpush.msra.mxu0 %v117
    %857 = vmatpush.msra.mxu0 %v109
    %858 = vmatpush.msra.mxu0 %v101
    %859 = vmatpush.msra.mxu0 %v93
    %860 = vmatpush.msra.mxu0 %v85
    %861 = vmatpush.msra.mxu0 %v77
    %862 = vmatpush.msra.mxu0 %v69
    %863 = vmatpush.msra.mxu0 %v61
    %864 = vmatpush.msra.mxu0 %v53
    %865 = vmatpush.msra.mxu0 %v45
    %866 = vmatmul.f32.gmra.mxu0 %v759
    %v867 = vpop.f32.mrf.mxu0
    %v868 = vadd.f32 0.0, %v867
    %869 = vdwg.mxu0
    %870 = vmatpush.msra.mxu0 %v293
    %871 = vmatpush.msra.mxu0 %v285
    %872 = vmatpush.msra.mxu0 %v277
    %873 = vmatpush.msra.mxu0 %v269
    %874 = vmatpush.msra.mxu0 %v261
    %875 = vmatpush.msra.mxu0 %v253
    %876 = vmatpush.msra.mxu0 %v245
    %877 = vmatpush.msra.mxu0 %v237
    %878 = vmatpush.msra.mxu0 %v229
    %879 = vmatpush.msra.mxu0 %v221
    %880 = vmatpush.msra.mxu0 %v213
    %881 = vmatpush.msra.mxu0 %v205
    %882 = vmatpush.msra.mxu0 %v197
    %883 = vmatpush.msra.mxu0 %v189
    %884 = vmatpush.msra.mxu0 %v181
    %885 = vmatpush.msra.mxu0 %v173
    %886 = vmatmul.f32.gmra.mxu0 %v760
    %v887 = vpop.f32.mrf.mxu0
    %v888 = vadd.f32 %v868, %v887
    %889 = vdwg.mxu0
    %890 = vmatpush.msra.mxu0 %v166
    %891 = vmatpush.msra.mxu0 %v158
    %892 = vmatpush.msra.mxu0 %v150
    %893 = vmatpush.msra.mxu0 %v142
    %894 = vmatpush.msra.mxu0 %v134
    %895 = vmatpush.msra.mxu0 %v126
    %896 = vmatpush.msra.mxu0 %v118
    %897 = vmatpush.msra.mxu0 %v110
    %898 = vmatpush.msra.mxu0 %v102
    %899 = vmatpush.msra.mxu0 %v94
    %900 = vmatpush.msra.mxu0 %v86
    %901 = vmatpush.msra.mxu0 %v78
    %902 = vmatpush.msra.mxu0 %v70
    %903 = vmatpush.msra.mxu0 %v62
    %904 = vmatpush.msra.mxu0 %v54
    %905 = vmatpush.msra.mxu0 %v46
    %906 = vmatmul.f32.gmra.mxu0 %v759
    %v907 = vpop.f32.mrf.mxu0
    %v908 = vadd.f32 0.0, %v907
    %909 = vdwg.mxu0
    %910 = vmatpush.msra.mxu0 %v294
    %911 = vmatpush.msra.mxu0 %v286
    %912 = vmatpush.msra.mxu0 %v278
    %913 = vmatpush.msra.mxu0 %v270
    %914 = vmatpush.msra.mxu0 %v262
    %915 = vmatpush.msra.mxu0 %v254
    %916 = vmatpush.msra.mxu0 %v246
    %917 = vmatpush.msra.mxu0 %v238
    %918 = vmatpush.msra.mxu0 %v230
    %919 = vmatpush.msra.mxu0 %v222
    %920 = vmatpush.msra.mxu0 %v214
    %921 = vmatpush.msra.mxu0 %v206
    %922 = vmatpush.msra.mxu0 %v198
    %923 = vmatpush.msra.mxu0 %v190
    %924 = vmatpush.msra.mxu0 %v182
    %925 = vmatpush.msra.mxu0 %v174
    %926 = vmatmul.f32.gmra.mxu0 %v760
    %v927 = vpop.f32.mrf.mxu0
    %v928 = vadd.f32 %v908, %v927
    %929 = vdwg.mxu0
    %930 = vmatpush.msra.mxu0 %v167
    %931 = vmatpush.msra.mxu0 %v159
    %932 = vmatpush.msra.mxu0 %v151
    %933 = vmatpush.msra.mxu0 %v143
    %934 = vmatpush.msra.mxu0 %v135
    %935 = vmatpush.msra.mxu0 %v127
    %936 = vmatpush.msra.mxu0 %v119
    %937 = vmatpush.msra.mxu0 %v111
    %938 = vmatpush.msra.mxu0 %v103
    %939 = vmatpush.msra.mxu0 %v95
    %940 = vmatpush.msra.mxu0 %v87
    %941 = vmatpush.msra.mxu0 %v79
    %942 = vmatpush.msra.mxu0 %v71
    %943 = vmatpush.msra.mxu0 %v63
    %944 = vmatpush.msra.mxu0 %v55
    %945 = vmatpush.msra.mxu0 %v47
    %946 = vmatmul.f32.gmra.mxu0 %v759
    %v947 = vpop.f32.mrf.mxu0
    %v948 = vadd.f32 0.0, %v947
    %949 = vdwg.mxu0
    %950 = vmatpush.msra.mxu0 %v295
    %951 = vmatpush.msra.mxu0 %v287
    %952 = vmatpush.msra.mxu0 %v279
    %953 = vmatpush.msra.mxu0 %v271
    %954 = vmatpush.msra.mxu0 %v263
    %955 = vmatpush.msra.mxu0 %v255
    %956 = vmatpush.msra.mxu0 %v247
    %957 = vmatpush.msra.mxu0 %v239
    %958 = vmatpush.msra.mxu0 %v231
    %959 = vmatpush.msra.mxu0 %v223
    %960 = vmatpush.msra.mxu0 %v215
    %961 = vmatpush.msra.mxu0 %v207
    %962 = vmatpush.msra.mxu0 %v199
    %963 = vmatpush.msra.mxu0 %v191
    %964 = vmatpush.msra.mxu0 %v183
    %965 = vmatpush.msra.mxu0 %v175
    %966 = vmatmul.f32.gmra.mxu0 %v760
    %v967 = vpop.f32.mrf.mxu0
    %v968 = vadd.f32 %v948, %v967
    %969 = vdwg.mxu0
    %970 = vmatpush.msra.mxu0 %v168
    %971 = vmatpush.msra.mxu0 %v160
    %972 = vmatpush.msra.mxu0 %v152
    %973 = vmatpush.msra.mxu0 %v144
    %974 = vmatpush.msra.mxu0 %v136
    %975 = vmatpush.msra.mxu0 %v128
    %976 = vmatpush.msra.mxu0 %v120
    %977 = vmatpush.msra.mxu0 %v112
    %978 = vmatpush.msra.mxu0 %v104
    %979 = vmatpush.msra.mxu0 %v96
    %980 = vmatpush.msra.mxu0 %v88
    %981 = vmatpush.msra.mxu0 %v80
    %982 = vmatpush.msra.mxu0 %v72
    %983 = vmatpush.msra.mxu0 %v64
    %984 = vmatpush.msra.mxu0 %v56
    %985 = vmatpush.msra.mxu0 %v48
    %986 = vmatmul.f32.gmra.mxu0 %v759
    %v987 = vpop.f32.mrf.mxu0
    %v988 = vadd.f32 0.0, %v987
    %989 = vdwg.mxu0
    %990 = vmatpush.msra.mxu0 %v296
    %991 = vmatpush.msra.mxu0 %v288
    %992 = vmatpush.msra.mxu0 %v280
    %993 = vmatpush.msra.mxu0 %v272
    %994 = vmatpush.msra.mxu0 %v264
    %995 = vmatpush.msra.mxu0 %v256
    %996 = vmatpush.msra.mxu0 %v248
    %997 = vmatpush.msra.mxu0 %v240
    %998 = vmatpush.msra.mxu0 %v232
    %999 = vmatpush.msra.mxu0 %v224
    %1000 = vmatpush.msra.mxu0 %v216
    %1001 = vmatpush.msra.mxu0 %v208
    %1002 = vmatpush.msra.mxu0 %v200
    %1003 = vmatpush.msra.mxu0 %v192
    %1004 = vmatpush.msra.mxu0 %v184
    %1005 = vmatpush.msra.mxu0 %v176
    %1006 = vmatmul.f32.gmra.mxu0 %v760
    %v1007 = vpop.f32.mrf.mxu0
    %v1008 = vadd.f32 %v988, %v1007
    %1009 = vdwg.mxu0
    %1010 = vmatpush.msra.mxu0 %v169
    %1011 = vmatpush.msra.mxu0 %v161
    %1012 = vmatpush.msra.mxu0 %v153
    %1013 = vmatpush.msra.mxu0 %v145
    %1014 = vmatpush.msra.mxu0 %v137
    %1015 = vmatpush.msra.mxu0 %v129
    %1016 = vmatpush.msra.mxu0 %v121
    %1017 = vmatpush.msra.mxu0 %v113
    %1018 = vmatpush.msra.mxu0 %v105
    %1019 = vmatpush.msra.mxu0 %v97
    %1020 = vmatpush.msra.mxu0 %v89
    %1021 = vmatpush.msra.mxu0 %v81
    %1022 = vmatpush.msra.mxu0 %v73
    %1023 = vmatpush.msra.mxu0 %v65
    %1024 = vmatpush.msra.mxu0 %v57
    %1025 = vmatpush.msra.mxu0 %v49
    %1026 = vmatmul.f32.gmra.mxu0 %v759
    %v1027 = vpop.f32.mrf.mxu0
    %v1028 = vadd.f32 0.0, %v1027
    %1029 = vdwg.mxu0
    %1030 = vmatpush.msra.mxu0 %v297
    %1031 = vmatpush.msra.mxu0 %v289
    %1032 = vmatpush.msra.mxu0 %v281
    %1033 = vmatpush.msra.mxu0 %v273
    %1034 = vmatpush.msra.mxu0 %v265
    %1035 = vmatpush.msra.mxu0 %v257
    %1036 = vmatpush.msra.mxu0 %v249
    %1037 = vmatpush.msra.mxu0 %v241
    %1038 = vmatpush.msra.mxu0 %v233
    %1039 = vmatpush.msra.mxu0 %v225
    %1040 = vmatpush.msra.mxu0 %v217
    %1041 = vmatpush.msra.mxu0 %v209
    %1042 = vmatpush.msra.mxu0 %v201
    %1043 = vmatpush.msra.mxu0 %v193
    %1044 = vmatpush.msra.mxu0 %v185
    %1045 = vmatpush.msra.mxu0 %v177
    %1046 = vmatmul.f32.gmra.mxu0 %v760
    %v1047 = vpop.f32.mrf.mxu0
    %v1048 = vadd.f32 %v1028, %v1047
    %1049 = vdwg.mxu0
    %1050 = vmatpush.msra.mxu0 %v170
    %1051 = vmatpush.msra.mxu0 %v162
    %1052 = vmatpush.msra.mxu0 %v154
    %1053 = vmatpush.msra.mxu0 %v146
    %1054 = vmatpush.msra.mxu0 %v138
    %1055 = vmatpush.msra.mxu0 %v130
    %1056 = vmatpush.msra.mxu0 %v122
    %1057 = vmatpush.msra.mxu0 %v114
    %1058 = vmatpush.msra.mxu0 %v106
    %1059 = vmatpush.msra.mxu0 %v98
    %1060 = vmatpush.msra.mxu0 %v90
    %1061 = vmatpush.msra.mxu0 %v82
    %1062 = vmatpush.msra.mxu0 %v74
    %1063 = vmatpush.msra.mxu0 %v66
    %1064 = vmatpush.msra.mxu0 %v58
    %1065 = vmatpush.msra.mxu0 %v50
    %1066 = vmatmul.f32.gmra.mxu0 %v759
    %v1067 = vpop.f32.mrf.mxu0
    %v1068 = vadd.f32 0.0, %v1067
    %1069 = vdwg.mxu0
    %1070 = vmatpush.msra.mxu0 %v298
    %1071 = vmatpush.msra.mxu0 %v290
    %1072 = vmatpush.msra.mxu0 %v282
    %1073 = vmatpush.msra.mxu0 %v274
    %1074 = vmatpush.msra.mxu0 %v266
    %1075 = vmatpush.msra.mxu0 %v258
    %1076 = vmatpush.msra.mxu0 %v250
    %1077 = vmatpush.msra.mxu0 %v242
    %1078 = vmatpush.msra.mxu0 %v234
    %1079 = vmatpush.msra.mxu0 %v226
    %1080 = vmatpush.msra.mxu0 %v218
    %1081 = vmatpush.msra.mxu0 %v210
    %1082 = vmatpush.msra.mxu0 %v202
    %1083 = vmatpush.msra.mxu0 %v194
    %1084 = vmatpush.msra.mxu0 %v186
    %1085 = vmatpush.msra.mxu0 %v178
    %1086 = vmatmul.f32.gmra.mxu0 %v760
    %v1087 = vpop.f32.mrf.mxu0
    %v1088 = vadd.f32 %v1068, %v1087
    %1089 = vdwg.mxu0
    %v1090 = vadd.f32 %v762, %v808
    %v1091 = vadd.f32 %v763, %v848
    %v1092 = vadd.f32 %v764, %v888
    %v1093 = vadd.f32 %v765, %v928
    %v1094 = vadd.f32 %v766, %v968
    %v1095 = vadd.f32 %v767, %v1008
    %v1096 = vadd.f32 %v768, %v1048
    %v1097 = vadd.f32 %v769, %v1088
    %v1098 = vxor.u32 %v1090, 2147483648
    %v1099 = vxor.u32 %v1091, 2147483648
    %v1100 = vmul.f32 %v1098, 1.442695
    %v1101 = vpow.pop %v1100
    %v1102 = vmul.f32 %v1099, 1.442695
    %v1103 = vpow.pop %v1102
    %v1104 = vadd.f32 %v1101, 1.0
    %v1105 = vadd.f32 %v1103, 1.0
    %v1106 = vrcp.pop %v1104
    %v1107 = vmul.f32 %v1104, %v1106
    %v1108 = vsub.f32 1.0, %v1107
    %v1109 = vmul.f32 %v1106, %v1108
    %v1110 = vadd.f32 %v1106, %v1109
    %vm1111 = vweird.f32 %v1104
    %vm1112 = vweird.f32 %v1106
    %vm1113 = vmor %vm1111, %vm1112
    %v1114 = vsel %vm1113, %v1106, %v1110
    %v1115 = vand.u32 2147483647, %v1104
    %vm1116 = vcmp.eq.f32.partialorder %v1115, 8.507059e+37
    %v1117 = vand.u32 %v1104, 2147483648
    %v1118 = vor.u32 1.1754944e-38, %v1117
    %v1119 = vsel %vm1116, %v1118, %v1114
    %v1120 = vmul.f32 1.0, %v1119
    %v1121 = vrcp.pop %v1105
    %v1122 = vmul.f32 %v1105, %v1121
    %v1123 = vsub.f32 1.0, %v1122
    %v1124 = vmul.f32 %v1121, %v1123
    %v1125 = vadd.f32 %v1121, %v1124
    %vm1126 = vweird.f32 %v1105
    %vm1127 = vweird.f32 %v1121
    %vm1128 = vmor %vm1126, %vm1127
    %v1129 = vsel %vm1128, %v1121, %v1125
    %v1130 = vand.u32 2147483647, %v1105
    %vm1131 = vcmp.eq.f32.partialorder %v1130, 8.507059e+37
    %v1132 = vand.u32 %v1105, 2147483648
    %v1133 = vor.u32 1.1754944e-38, %v1132
    %v1134 = vsel %vm1131, %v1133, %v1129
    %v1135 = vmul.f32 1.0, %v1134
    %v1136 = vxor.u32 %v1092, 2147483648
    %v1137 = vxor.u32 %v1093, 2147483648
    %v1138 = vmul.f32 %v1136, 1.442695
    %v1139 = vpow.pop %v1138
    %v1140 = vmul.f32 %v1137, 1.442695
    %v1141 = vpow.pop %v1140
    %v1142 = vadd.f32 %v1139, 1.0
    %v1143 = vadd.f32 %v1141, 1.0
    %v1144 = vrcp.pop %v1142
    %v1145 = vmul.f32 %v1142, %v1144
    %v1146 = vsub.f32 1.0, %v1145
    %v1147 = vmul.f32 %v1144, %v1146
    %v1148 = vadd.f32 %v1144, %v1147
    %vm1149 = vweird.f32 %v1142
    %vm1150 = vweird.f32 %v1144
    %vm1151 = vmor %vm1149, %vm1150
    %v1152 = vsel %vm1151, %v1144, %v1148
    %v1153 = vand.u32 2147483647, %v1142
    %vm1154 = vcmp.eq.f32.partialorder %v1153, 8.507059e+37
    %v1155 = vand.u32 %v1142, 2147483648
    %v1156 = vor.u32 1.1754944e-38, %v1155
    %v1157 = vsel %vm1154, %v1156, %v1152
    %v1158 = vmul.f32 1.0, %v1157
    %v1159 = vrcp.pop %v1143
    %v1160 = vmul.f32 %v1143, %v1159
    %v1161 = vsub.f32 1.0, %v1160
    %v1162 = vmul.f32 %v1159, %v1161
    %v1163 = vadd.f32 %v1159, %v1162
    %vm1164 = vweird.f32 %v1143
    %vm1165 = vweird.f32 %v1159
    %vm1166 = vmor %vm1164, %vm1165
    %v1167 = vsel %vm1166, %v1159, %v1163
    %v1168 = vand.u32 2147483647, %v1143
    %vm1169 = vcmp.eq.f32.partialorder %v1168, 8.507059e+37
    %v1170 = vand.u32 %v1143, 2147483648
    %v1171 = vor.u32 1.1754944e-38, %v1170
    %v1172 = vsel %vm1169, %v1171, %v1167
    %v1173 = vmul.f32 1.0, %v1172
    %v1174 = vtanh.pop %v1094
    %v1175 = vtanh.pop %v1095
    %v1176 = vxor.u32 %v1096, 2147483648
    %v1177 = vxor.u32 %v1097, 2147483648
    %v1178 = vmul.f32 %v1176, 1.442695
    %v1179 = vpow.pop %v1178
    %v1180 = vmul.f32 %v1177, 1.442695
    %v1181 = vpow.pop %v1180
    %v1182 = vadd.f32 %v1179, 1.0
    %v1183 = vadd.f32 %v1181, 1.0
    %v1184 = vrcp.pop %v1182
    %v1185 = vmul.f32 %v1182, %v1184
    %v1186 = vsub.f32 1.0, %v1185
    %v1187 = vmul.f32 %v1184, %v1186
    %v1188 = vadd.f32 %v1184, %v1187
    %vm1189 = vweird.f32 %v1182
    %vm1190 = vweird.f32 %v1184
    %vm1191 = vmor %vm1189, %vm1190
    %v1192 = vsel %vm1191, %v1184, %v1188
    %v1193 = vand.u32 2147483647, %v1182
    %vm1194 = vcmp.eq.f32.partialorder %v1193, 8.507059e+37
    %v1195 = vand.u32 %v1182, 2147483648
    %v1196 = vor.u32 1.1754944e-38, %v1195
    %v1197 = vsel %vm1194, %v1196, %v1192
    %v1198 = vmul.f32 1.0, %v1197
    %v1199 = vrcp.pop %v1183
    %v1200 = vmul.f32 %v1183, %v1199
    %v1201 = vsub.f32 1.0, %v1200
    %v1202 = vmul.f32 %v1199, %v1201
    %v1203 = vadd.f32 %v1199, %v1202
    %vm1204 = vweird.f32 %v1183
    %vm1205 = vweird.f32 %v1199
    %vm1206 = vmor %vm1204, %vm1205
    %v1207 = vsel %vm1206, %v1199, %v1203
    %v1208 = vand.u32 2147483647, %v1183
    %vm1209 = vcmp.eq.f32.partialorder %v1208, 8.507059e+37
    %v1210 = vand.u32 %v1183, 2147483648
    %v1211 = vor.u32 1.1754944e-38, %v1210
    %v1212 = vsel %vm1209, %v1211, %v1207
    %v1213 = vmul.f32 1.0, %v1212
    %v1214 = vmul.f32 %v1158, %v755
    %v1215 = vmul.f32 %v1173, %v756
    %v1216 = vmul.f32 %v1120, %v1174
    %v1217 = vmul.f32 %v1135, %v1175
    %v1218 = vadd.f32 %v1214, %v1216
    %v1219 = vadd.f32 %v1215, %v1217
    %v1220 = vtanh.pop %v1218
    %v1221 = vtanh.pop %v1219
    %v1222 = vmul.f32 %v1198, %v1220
    %v1223 = vmul.f32 %v1213, %v1221
    %s1224 = scalar_lea.vmem %s0, 128
    %v1225 = vld [vmem:[%s1224] sm:$0xff]
    %v1226 = vld [vmem:[%s1224 + $0x8] sm:$0xff]
    %v1227 = vld [vmem:[%s1224 + $0x10] sm:$0xff]
    %v1228 = vld [vmem:[%s1224 + $0x18] sm:$0xff]
    %v1229 = vld [vmem:[%s1224 + $0x20] sm:$0xff]
    %v1230 = vld [vmem:[%s1224 + $0x28] sm:$0xff]
    %v1231 = vld [vmem:[%s1224 + $0x30] sm:$0xff]
    %v1232 = vld [vmem:[%s1224 + $0x38] sm:$0xff]
    %1233 = vmatpush.msra.mxu0 %v163
    %1234 = vmatpush.msra.mxu0 %v155
    %1235 = vmatpush.msra.mxu0 %v147
    %1236 = vmatpush.msra.mxu0 %v139
    %1237 = vmatpush.msra.mxu0 %v131
    %1238 = vmatpush.msra.mxu0 %v123
    %1239 = vmatpush.msra.mxu0 %v115
    %1240 = vmatpush.msra.mxu0 %v107
    %1241 = vmatpush.msra.mxu0 %v99
    %1242 = vmatpush.msra.mxu0 %v91
    %1243 = vmatpush.msra.mxu0 %v83
    %1244 = vmatpush.msra.mxu0 %v75
    %1245 = vmatpush.msra.mxu0 %v67
    %1246 = vmatpush.msra.mxu0 %v59
    %1247 = vmatpush.msra.mxu0 %v51
    %1248 = vmatpush.msra.mxu0 %v43
    %1249 = vmatmul.f32.gmra.mxu0 %v1222
    %v1250 = vpop.f32.mrf.mxu0
    %v1251 = vadd.f32 0.0, %v1250
    %1252 = vdwg.mxu0
    %1253 = vmatpush.msra.mxu0 %v291
    %1254 = vmatpush.msra.mxu0 %v283
    %1255 = vmatpush.msra.mxu0 %v275
    %1256 = vmatpush.msra.mxu0 %v267
    %1257 = vmatpush.msra.mxu0 %v259
    %1258 = vmatpush.msra.mxu0 %v251
    %1259 = vmatpush.msra.mxu0 %v243
    %1260 = vmatpush.msra.mxu0 %v235
    %1261 = vmatpush.msra.mxu0 %v227
    %1262 = vmatpush.msra.mxu0 %v219
    %1263 = vmatpush.msra.mxu0 %v211
    %1264 = vmatpush.msra.mxu0 %v203
    %1265 = vmatpush.msra.mxu0 %v195
    %1266 = vmatpush.msra.mxu0 %v187
    %1267 = vmatpush.msra.mxu0 %v179
    %1268 = vmatpush.msra.mxu0 %v171
    %1269 = vmatmul.f32.gmra.mxu0 %v1223
    %v1270 = vpop.f32.mrf.mxu0
    %v1271 = vadd.f32 %v1251, %v1270
    %1272 = vdwg.mxu0
    %1273 = vmatpush.msra.mxu0 %v164
    %1274 = vmatpush.msra.mxu0 %v156
    %1275 = vmatpush.msra.mxu0 %v148
    %1276 = vmatpush.msra.mxu0 %v140
    %1277 = vmatpush.msra.mxu0 %v132
    %1278 = vmatpush.msra.mxu0 %v124
    %1279 = vmatpush.msra.mxu0 %v116
    %1280 = vmatpush.msra.mxu0 %v108
    %1281 = vmatpush.msra.mxu0 %v100
    %1282 = vmatpush.msra.mxu0 %v92
    %1283 = vmatpush.msra.mxu0 %v84
    %1284 = vmatpush.msra.mxu0 %v76
    %1285 = vmatpush.msra.mxu0 %v68
    %1286 = vmatpush.msra.mxu0 %v60
    %1287 = vmatpush.msra.mxu0 %v52
    %1288 = vmatpush.msra.mxu0 %v44
    %1289 = vmatmul.f32.gmra.mxu0 %v1222
    %v1290 = vpop.f32.mrf.mxu0
    %v1291 = vadd.f32 0.0, %v1290
    %1292 = vdwg.mxu0
    %1293 = vmatpush.msra.mxu0 %v292
    %1294 = vmatpush.msra.mxu0 %v284
    %1295 = vmatpush.msra.mxu0 %v276
    %1296 = vmatpush.msra.mxu0 %v268
    %1297 = vmatpush.msra.mxu0 %v260
    %1298 = vmatpush.msra.mxu0 %v252
    %1299 = vmatpush.msra.mxu0 %v244
    %1300 = vmatpush.msra.mxu0 %v236
    %1301 = vmatpush.msra.mxu0 %v228
    %1302 = vmatpush.msra.mxu0 %v220
    %1303 = vmatpush.msra.mxu0 %v212
    %1304 = vmatpush.msra.mxu0 %v204
    %1305 = vmatpush.msra.mxu0 %v196
    %1306 = vmatpush.msra.mxu0 %v188
    %1307 = vmatpush.msra.mxu0 %v180
    %1308 = vmatpush.msra.mxu0 %v172
    %1309 = vmatmul.f32.gmra.mxu0 %v1223
    %v1310 = vpop.f32.mrf.mxu0
    %v1311 = vadd.f32 %v1291, %v1310
    %1312 = vdwg.mxu0
    %1313 = vmatpush.msra.mxu0 %v165
    %1314 = vmatpush.msra.mxu0 %v157
    %1315 = vmatpush.msra.mxu0 %v149
    %1316 = vmatpush.msra.mxu0 %v141
    %1317 = vmatpush.msra.mxu0 %v133
    %1318 = vmatpush.msra.mxu0 %v125
    %1319 = vmatpush.msra.mxu0 %v117
    %1320 = vmatpush.msra.mxu0 %v109
    %1321 = vmatpush.msra.mxu0 %v101
    %1322 = vmatpush.msra.mxu0 %v93
    %1323 = vmatpush.msra.mxu0 %v85
    %1324 = vmatpush.msra.mxu0 %v77
    %1325 = vmatpush.msra.mxu0 %v69
    %1326 = vmatpush.msra.mxu0 %v61
    %1327 = vmatpush.msra.mxu0 %v53
    %1328 = vmatpush.msra.mxu0 %v45
    %1329 = vmatmul.f32.gmra.mxu0 %v1222
    %v1330 = vpop.f32.mrf.mxu0
    %v1331 = vadd.f32 0.0, %v1330
    %1332 = vdwg.mxu0
    %1333 = vmatpush.msra.mxu0 %v293
    %1334 = vmatpush.msra.mxu0 %v285
    %1335 = vmatpush.msra.mxu0 %v277
    %1336 = vmatpush.msra.mxu0 %v269
    %1337 = vmatpush.msra.mxu0 %v261
    %1338 = vmatpush.msra.mxu0 %v253
    %1339 = vmatpush.msra.mxu0 %v245
    %1340 = vmatpush.msra.mxu0 %v237
    %1341 = vmatpush.msra.mxu0 %v229
    %1342 = vmatpush.msra.mxu0 %v221
    %1343 = vmatpush.msra.mxu0 %v213
    %1344 = vmatpush.msra.mxu0 %v205
    %1345 = vmatpush.msra.mxu0 %v197
    %1346 = vmatpush.msra.mxu0 %v189
    %1347 = vmatpush.msra.mxu0 %v181
    %1348 = vmatpush.msra.mxu0 %v173
    %1349 = vmatmul.f32.gmra.mxu0 %v1223
    %v1350 = vpop.f32.mrf.mxu0
    %v1351 = vadd.f32 %v1331, %v1350
    %1352 = vdwg.mxu0
    %1353 = vmatpush.msra.mxu0 %v166
    %1354 = vmatpush.msra.mxu0 %v158
    %1355 = vmatpush.msra.mxu0 %v150
    %1356 = vmatpush.msra.mxu0 %v142
    %1357 = vmatpush.msra.mxu0 %v134
    %1358 = vmatpush.msra.mxu0 %v126
    %1359 = vmatpush.msra.mxu0 %v118
    %1360 = vmatpush.msra.mxu0 %v110
    %1361 = vmatpush.msra.mxu0 %v102
    %1362 = vmatpush.msra.mxu0 %v94
    %1363 = vmatpush.msra.mxu0 %v86
    %1364 = vmatpush.msra.mxu0 %v78
    %1365 = vmatpush.msra.mxu0 %v70
    %1366 = vmatpush.msra.mxu0 %v62
    %1367 = vmatpush.msra.mxu0 %v54
    %1368 = vmatpush.msra.mxu0 %v46
    %1369 = vmatmul.f32.gmra.mxu0 %v1222
    %v1370 = vpop.f32.mrf.mxu0
    %v1371 = vadd.f32 0.0, %v1370
    %1372 = vdwg.mxu0
    %1373 = vmatpush.msra.mxu0 %v294
    %1374 = vmatpush.msra.mxu0 %v286
    %1375 = vmatpush.msra.mxu0 %v278
    %1376 = vmatpush.msra.mxu0 %v270
    %1377 = vmatpush.msra.mxu0 %v262
    %1378 = vmatpush.msra.mxu0 %v254
    %1379 = vmatpush.msra.mxu0 %v246
    %1380 = vmatpush.msra.mxu0 %v238
    %1381 = vmatpush.msra.mxu0 %v230
    %1382 = vmatpush.msra.mxu0 %v222
    %1383 = vmatpush.msra.mxu0 %v214
    %1384 = vmatpush.msra.mxu0 %v206
    %1385 = vmatpush.msra.mxu0 %v198
    %1386 = vmatpush.msra.mxu0 %v190
    %1387 = vmatpush.msra.mxu0 %v182
    %1388 = vmatpush.msra.mxu0 %v174
    %1389 = vmatmul.f32.gmra.mxu0 %v1223
    %v1390 = vpop.f32.mrf.mxu0
    %v1391 = vadd.f32 %v1371, %v1390
    %1392 = vdwg.mxu0
    %1393 = vmatpush.msra.mxu0 %v167
    %1394 = vmatpush.msra.mxu0 %v159
    %1395 = vmatpush.msra.mxu0 %v151
    %1396 = vmatpush.msra.mxu0 %v143
    %1397 = vmatpush.msra.mxu0 %v135
    %1398 = vmatpush.msra.mxu0 %v127
    %1399 = vmatpush.msra.mxu0 %v119
    %1400 = vmatpush.msra.mxu0 %v111
    %1401 = vmatpush.msra.mxu0 %v103
    %1402 = vmatpush.msra.mxu0 %v95
    %1403 = vmatpush.msra.mxu0 %v87
    %1404 = vmatpush.msra.mxu0 %v79
    %1405 = vmatpush.msra.mxu0 %v71
    %1406 = vmatpush.msra.mxu0 %v63
    %1407 = vmatpush.msra.mxu0 %v55
    %1408 = vmatpush.msra.mxu0 %v47
    %1409 = vmatmul.f32.gmra.mxu0 %v1222
    %v1410 = vpop.f32.mrf.mxu0
    %v1411 = vadd.f32 0.0, %v1410
    %1412 = vdwg.mxu0
    %1413 = vmatpush.msra.mxu0 %v295
    %1414 = vmatpush.msra.mxu0 %v287
    %1415 = vmatpush.msra.mxu0 %v279
    %1416 = vmatpush.msra.mxu0 %v271
    %1417 = vmatpush.msra.mxu0 %v263
    %1418 = vmatpush.msra.mxu0 %v255
    %1419 = vmatpush.msra.mxu0 %v247
    %1420 = vmatpush.msra.mxu0 %v239
    %1421 = vmatpush.msra.mxu0 %v231
    %1422 = vmatpush.msra.mxu0 %v223
    %1423 = vmatpush.msra.mxu0 %v215
    %1424 = vmatpush.msra.mxu0 %v207
    %1425 = vmatpush.msra.mxu0 %v199
    %1426 = vmatpush.msra.mxu0 %v191
    %1427 = vmatpush.msra.mxu0 %v183
    %1428 = vmatpush.msra.mxu0 %v175
    %1429 = vmatmul.f32.gmra.mxu0 %v1223
    %v1430 = vpop.f32.mrf.mxu0
    %v1431 = vadd.f32 %v1411, %v1430
    %1432 = vdwg.mxu0
    %1433 = vmatpush.msra.mxu0 %v168
    %1434 = vmatpush.msra.mxu0 %v160
    %1435 = vmatpush.msra.mxu0 %v152
    %1436 = vmatpush.msra.mxu0 %v144
    %1437 = vmatpush.msra.mxu0 %v136
    %1438 = vmatpush.msra.mxu0 %v128
    %1439 = vmatpush.msra.mxu0 %v120
    %1440 = vmatpush.msra.mxu0 %v112
    %1441 = vmatpush.msra.mxu0 %v104
    %1442 = vmatpush.msra.mxu0 %v96
    %1443 = vmatpush.msra.mxu0 %v88
    %1444 = vmatpush.msra.mxu0 %v80
    %1445 = vmatpush.msra.mxu0 %v72
    %1446 = vmatpush.msra.mxu0 %v64
    %1447 = vmatpush.msra.mxu0 %v56
    %1448 = vmatpush.msra.mxu0 %v48
    %1449 = vmatmul.f32.gmra.mxu0 %v1222
    %v1450 = vpop.f32.mrf.mxu0
    %v1451 = vadd.f32 0.0, %v1450
    %1452 = vdwg.mxu0
    %1453 = vmatpush.msra.mxu0 %v296
    %1454 = vmatpush.msra.mxu0 %v288
    %1455 = vmatpush.msra.mxu0 %v280
    %1456 = vmatpush.msra.mxu0 %v272
    %1457 = vmatpush.msra.mxu0 %v264
    %1458 = vmatpush.msra.mxu0 %v256
    %1459 = vmatpush.msra.mxu0 %v248
    %1460 = vmatpush.msra.mxu0 %v240
    %1461 = vmatpush.msra.mxu0 %v232
    %1462 = vmatpush.msra.mxu0 %v224
    %1463 = vmatpush.msra.mxu0 %v216
    %1464 = vmatpush.msra.mxu0 %v208
    %1465 = vmatpush.msra.mxu0 %v200
    %1466 = vmatpush.msra.mxu0 %v192
    %1467 = vmatpush.msra.mxu0 %v184
    %1468 = vmatpush.msra.mxu0 %v176
    %1469 = vmatmul.f32.gmra.mxu0 %v1223
    %v1470 = vpop.f32.mrf.mxu0
    %v1471 = vadd.f32 %v1451, %v1470
    %1472 = vdwg.mxu0
    %1473 = vmatpush.msra.mxu0 %v169
    %1474 = vmatpush.msra.mxu0 %v161
    %1475 = vmatpush.msra.mxu0 %v153
    %1476 = vmatpush.msra.mxu0 %v145
    %1477 = vmatpush.msra.mxu0 %v137
    %1478 = vmatpush.msra.mxu0 %v129
    %1479 = vmatpush.msra.mxu0 %v121
    %1480 = vmatpush.msra.mxu0 %v113
    %1481 = vmatpush.msra.mxu0 %v105
    %1482 = vmatpush.msra.mxu0 %v97
    %1483 = vmatpush.msra.mxu0 %v89
    %1484 = vmatpush.msra.mxu0 %v81
    %1485 = vmatpush.msra.mxu0 %v73
    %1486 = vmatpush.msra.mxu0 %v65
    %1487 = vmatpush.msra.mxu0 %v57
    %1488 = vmatpush.msra.mxu0 %v49
    %1489 = vmatmul.f32.gmra.mxu0 %v1222
    %v1490 = vpop.f32.mrf.mxu0
    %v1491 = vadd.f32 0.0, %v1490
    %1492 = vdwg.mxu0
    %1493 = vmatpush.msra.mxu0 %v297
    %1494 = vmatpush.msra.mxu0 %v289
    %1495 = vmatpush.msra.mxu0 %v281
    %1496 = vmatpush.msra.mxu0 %v273
    %1497 = vmatpush.msra.mxu0 %v265
    %1498 = vmatpush.msra.mxu0 %v257
    %1499 = vmatpush.msra.mxu0 %v249
    %1500 = vmatpush.msra.mxu0 %v241
    %1501 = vmatpush.msra.mxu0 %v233
    %1502 = vmatpush.msra.mxu0 %v225
    %1503 = vmatpush.msra.mxu0 %v217
    %1504 = vmatpush.msra.mxu0 %v209
    %1505 = vmatpush.msra.mxu0 %v201
    %1506 = vmatpush.msra.mxu0 %v193
    %1507 = vmatpush.msra.mxu0 %v185
    %1508 = vmatpush.msra.mxu0 %v177
    %1509 = vmatmul.f32.gmra.mxu0 %v1223
    %v1510 = vpop.f32.mrf.mxu0
    %v1511 = vadd.f32 %v1491, %v1510
    %1512 = vdwg.mxu0
    %1513 = vmatpush.msra.mxu0 %v170
    %1514 = vmatpush.msra.mxu0 %v162
    %1515 = vmatpush.msra.mxu0 %v154
    %1516 = vmatpush.msra.mxu0 %v146
    %1517 = vmatpush.msra.mxu0 %v138
    %1518 = vmatpush.msra.mxu0 %v130
    %1519 = vmatpush.msra.mxu0 %v122
    %1520 = vmatpush.msra.mxu0 %v114
    %1521 = vmatpush.msra.mxu0 %v106
    %1522 = vmatpush.msra.mxu0 %v98
    %1523 = vmatpush.msra.mxu0 %v90
    %1524 = vmatpush.msra.mxu0 %v82
    %1525 = vmatpush.msra.mxu0 %v74
    %1526 = vmatpush.msra.mxu0 %v66
    %1527 = vmatpush.msra.mxu0 %v58
    %1528 = vmatpush.msra.mxu0 %v50
    %1529 = vmatmul.f32.gmra.mxu0 %v1222
    %v1530 = vpop.f32.mrf.mxu0
    %v1531 = vadd.f32 0.0, %v1530
    %1532 = vdwg.mxu0
    %1533 = vmatpush.msra.mxu0 %v298
    %1534 = vmatpush.msra.mxu0 %v290
    %1535 = vmatpush.msra.mxu0 %v282
    %1536 = vmatpush.msra.mxu0 %v274
    %1537 = vmatpush.msra.mxu0 %v266
    %1538 = vmatpush.msra.mxu0 %v258
    %1539 = vmatpush.msra.mxu0 %v250
    %1540 = vmatpush.msra.mxu0 %v242
    %1541 = vmatpush.msra.mxu0 %v234
    %1542 = vmatpush.msra.mxu0 %v226
    %1543 = vmatpush.msra.mxu0 %v218
    %1544 = vmatpush.msra.mxu0 %v210
    %1545 = vmatpush.msra.mxu0 %v202
    %1546 = vmatpush.msra.mxu0 %v194
    %1547 = vmatpush.msra.mxu0 %v186
    %1548 = vmatpush.msra.mxu0 %v178
    %1549 = vmatmul.f32.gmra.mxu0 %v1223
    %v1550 = vpop.f32.mrf.mxu0
    %v1551 = vadd.f32 %v1531, %v1550
    %1552 = vdwg.mxu0
    %v1553 = vadd.f32 %v1225, %v1271
    %v1554 = vadd.f32 %v1226, %v1311
    %v1555 = vadd.f32 %v1227, %v1351
    %v1556 = vadd.f32 %v1228, %v1391
    %v1557 = vadd.f32 %v1229, %v1431
    %v1558 = vadd.f32 %v1230, %v1471
    %v1559 = vadd.f32 %v1231, %v1511
    %v1560 = vadd.f32 %v1232, %v1551
    %v1561 = vxor.u32 %v1553, 2147483648
    %v1562 = vxor.u32 %v1554, 2147483648
    %v1563 = vmul.f32 %v1561, 1.442695
    %v1564 = vpow.pop %v1563
    %v1565 = vmul.f32 %v1562, 1.442695
    %v1566 = vpow.pop %v1565
    %v1567 = vadd.f32 %v1564, 1.0
    %v1568 = vadd.f32 %v1566, 1.0
    %v1569 = vrcp.pop %v1567
    %v1570 = vmul.f32 %v1567, %v1569
    %v1571 = vsub.f32 1.0, %v1570
    %v1572 = vmul.f32 %v1569, %v1571
    %v1573 = vadd.f32 %v1569, %v1572
    %vm1574 = vweird.f32 %v1567
    %vm1575 = vweird.f32 %v1569
    %vm1576 = vmor %vm1574, %vm1575
    %v1577 = vsel %vm1576, %v1569, %v1573
    %v1578 = vand.u32 2147483647, %v1567
    %vm1579 = vcmp.eq.f32.partialorder %v1578, 8.507059e+37
    %v1580 = vand.u32 %v1567, 2147483648
    %v1581 = vor.u32 1.1754944e-38, %v1580
    %v1582 = vsel %vm1579, %v1581, %v1577
    %v1583 = vmul.f32 1.0, %v1582
    %v1584 = vrcp.pop %v1568
    %v1585 = vmul.f32 %v1568, %v1584
    %v1586 = vsub.f32 1.0, %v1585
    %v1587 = vmul.f32 %v1584, %v1586
    %v1588 = vadd.f32 %v1584, %v1587
    %vm1589 = vweird.f32 %v1568
    %vm1590 = vweird.f32 %v1584
    %vm1591 = vmor %vm1589, %vm1590
    %v1592 = vsel %vm1591, %v1584, %v1588
    %v1593 = vand.u32 2147483647, %v1568
    %vm1594 = vcmp.eq.f32.partialorder %v1593, 8.507059e+37
    %v1595 = vand.u32 %v1568, 2147483648
    %v1596 = vor.u32 1.1754944e-38, %v1595
    %v1597 = vsel %vm1594, %v1596, %v1592
    %v1598 = vmul.f32 1.0, %v1597
    %v1599 = vxor.u32 %v1555, 2147483648
    %v1600 = vxor.u32 %v1556, 2147483648
    %v1601 = vmul.f32 %v1599, 1.442695
    %v1602 = vpow.pop %v1601
    %v1603 = vmul.f32 %v1600, 1.442695
    %v1604 = vpow.pop %v1603
    %v1605 = vadd.f32 %v1602, 1.0
    %v1606 = vadd.f32 %v1604, 1.0
    %v1607 = vrcp.pop %v1605
    %v1608 = vmul.f32 %v1605, %v1607
    %v1609 = vsub.f32 1.0, %v1608
    %v1610 = vmul.f32 %v1607, %v1609
    %v1611 = vadd.f32 %v1607, %v1610
    %vm1612 = vweird.f32 %v1605
    %vm1613 = vweird.f32 %v1607
    %vm1614 = vmor %vm1612, %vm1613
    %v1615 = vsel %vm1614, %v1607, %v1611
    %v1616 = vand.u32 2147483647, %v1605
    %vm1617 = vcmp.eq.f32.partialorder %v1616, 8.507059e+37
    %v1618 = vand.u32 %v1605, 2147483648
    %v1619 = vor.u32 1.1754944e-38, %v1618
    %v1620 = vsel %vm1617, %v1619, %v1615
    %v1621 = vmul.f32 1.0, %v1620
    %v1622 = vrcp.pop %v1606
    %v1623 = vmul.f32 %v1606, %v1622
    %v1624 = vsub.f32 1.0, %v1623
    %v1625 = vmul.f32 %v1622, %v1624
    %v1626 = vadd.f32 %v1622, %v1625
    %vm1627 = vweird.f32 %v1606
    %vm1628 = vweird.f32 %v1622
    %vm1629 = vmor %vm1627, %vm1628
    %v1630 = vsel %vm1629, %v1622, %v1626
    %v1631 = vand.u32 2147483647, %v1606
    %vm1632 = vcmp.eq.f32.partialorder %v1631, 8.507059e+37
    %v1633 = vand.u32 %v1606, 2147483648
    %v1634 = vor.u32 1.1754944e-38, %v1633
    %v1635 = vsel %vm1632, %v1634, %v1630
    %v1636 = vmul.f32 1.0, %v1635
    %v1637 = vtanh.pop %v1557
    %v1638 = vtanh.pop %v1558
    %v1639 = vxor.u32 %v1559, 2147483648
    %v1640 = vxor.u32 %v1560, 2147483648
    %v1641 = vmul.f32 %v1639, 1.442695
    %v1642 = vpow.pop %v1641
    %v1643 = vmul.f32 %v1640, 1.442695
    %v1644 = vpow.pop %v1643
    %v1645 = vadd.f32 %v1642, 1.0
    %v1646 = vadd.f32 %v1644, 1.0
    %v1647 = vrcp.pop %v1645
    %v1648 = vmul.f32 %v1645, %v1647
    %v1649 = vsub.f32 1.0, %v1648
    %v1650 = vmul.f32 %v1647, %v1649
    %v1651 = vadd.f32 %v1647, %v1650
    %vm1652 = vweird.f32 %v1645
    %vm1653 = vweird.f32 %v1647
    %vm1654 = vmor %vm1652, %vm1653
    %v1655 = vsel %vm1654, %v1647, %v1651
    %v1656 = vand.u32 2147483647, %v1645
    %vm1657 = vcmp.eq.f32.partialorder %v1656, 8.507059e+37
    %v1658 = vand.u32 %v1645, 2147483648
    %v1659 = vor.u32 1.1754944e-38, %v1658
    %v1660 = vsel %vm1657, %v1659, %v1655
    %v1661 = vmul.f32 1.0, %v1660
    %v1662 = vrcp.pop %v1646
    %v1663 = vmul.f32 %v1646, %v1662
    %v1664 = vsub.f32 1.0, %v1663
    %v1665 = vmul.f32 %v1662, %v1664
    %v1666 = vadd.f32 %v1662, %v1665
    %vm1667 = vweird.f32 %v1646
    %vm1668 = vweird.f32 %v1662
    %vm1669 = vmor %vm1667, %vm1668
    %v1670 = vsel %vm1669, %v1662, %v1666
    %v1671 = vand.u32 2147483647, %v1646
    %vm1672 = vcmp.eq.f32.partialorder %v1671, 8.507059e+37
    %v1673 = vand.u32 %v1646, 2147483648
    %v1674 = vor.u32 1.1754944e-38, %v1673
    %v1675 = vsel %vm1672, %v1674, %v1670
    %v1676 = vmul.f32 1.0, %v1675
    %v1677 = vmul.f32 %v1621, %v1218
    %v1678 = vmul.f32 %v1636, %v1219
    %v1679 = vmul.f32 %v1583, %v1637
    %v1680 = vmul.f32 %v1598, %v1638
    %v1681 = vadd.f32 %v1677, %v1679
    %v1682 = vadd.f32 %v1678, %v1680
    %v1683 = vtanh.pop %v1681
    %v1684 = vtanh.pop %v1682
    %v1685 = vmul.f32 %v1661, %v1683
    %v1686 = vmul.f32 %v1676, %v1684
    %s1687 = scalar_lea.vmem %s0, 192
    %v1688 = vld [vmem:[%s1687] sm:$0xff]
    %v1689 = vld [vmem:[%s1687 + $0x8] sm:$0xff]
    %v1690 = vld [vmem:[%s1687 + $0x10] sm:$0xff]
    %v1691 = vld [vmem:[%s1687 + $0x18] sm:$0xff]
    %v1692 = vld [vmem:[%s1687 + $0x20] sm:$0xff]
    %v1693 = vld [vmem:[%s1687 + $0x28] sm:$0xff]
    %v1694 = vld [vmem:[%s1687 + $0x30] sm:$0xff]
    %v1695 = vld [vmem:[%s1687 + $0x38] sm:$0xff]
    %1696 = vmatpush.msra.mxu0 %v163
    %1697 = vmatpush.msra.mxu0 %v155
    %1698 = vmatpush.msra.mxu0 %v147
    %1699 = vmatpush.msra.mxu0 %v139
    %1700 = vmatpush.msra.mxu0 %v131
    %1701 = vmatpush.msra.mxu0 %v123
    %1702 = vmatpush.msra.mxu0 %v115
    %1703 = vmatpush.msra.mxu0 %v107
    %1704 = vmatpush.msra.mxu0 %v99
    %1705 = vmatpush.msra.mxu0 %v91
    %1706 = vmatpush.msra.mxu0 %v83
    %1707 = vmatpush.msra.mxu0 %v75
    %1708 = vmatpush.msra.mxu0 %v67
    %1709 = vmatpush.msra.mxu0 %v59
    %1710 = vmatpush.msra.mxu0 %v51
    %1711 = vmatpush.msra.mxu0 %v43
    %1712 = vmatmul.f32.gmra.mxu0 %v1685
    %v1713 = vpop.f32.mrf.mxu0
    %v1714 = vadd.f32 0.0, %v1713
    %1715 = vdwg.mxu0
    %1716 = vmatpush.msra.mxu0 %v291
    %1717 = vmatpush.msra.mxu0 %v283
    %1718 = vmatpush.msra.mxu0 %v275
    %1719 = vmatpush.msra.mxu0 %v267
    %1720 = vmatpush.msra.mxu0 %v259
    %1721 = vmatpush.msra.mxu0 %v251
    %1722 = vmatpush.msra.mxu0 %v243
    %1723 = vmatpush.msra.mxu0 %v235
    %1724 = vmatpush.msra.mxu0 %v227
    %1725 = vmatpush.msra.mxu0 %v219
    %1726 = vmatpush.msra.mxu0 %v211
    %1727 = vmatpush.msra.mxu0 %v203
    %1728 = vmatpush.msra.mxu0 %v195
    %1729 = vmatpush.msra.mxu0 %v187
    %1730 = vmatpush.msra.mxu0 %v179
    %1731 = vmatpush.msra.mxu0 %v171
    %1732 = vmatmul.f32.gmra.mxu0 %v1686
    %v1733 = vpop.f32.mrf.mxu0
    %v1734 = vadd.f32 %v1714, %v1733
    %1735 = vdwg.mxu0
    %1736 = vmatpush.msra.mxu0 %v164
    %1737 = vmatpush.msra.mxu0 %v156
    %1738 = vmatpush.msra.mxu0 %v148
    %1739 = vmatpush.msra.mxu0 %v140
    %1740 = vmatpush.msra.mxu0 %v132
    %1741 = vmatpush.msra.mxu0 %v124
    %1742 = vmatpush.msra.mxu0 %v116
    %1743 = vmatpush.msra.mxu0 %v108
    %1744 = vmatpush.msra.mxu0 %v100
    %1745 = vmatpush.msra.mxu0 %v92
    %1746 = vmatpush.msra.mxu0 %v84
    %1747 = vmatpush.msra.mxu0 %v76
    %1748 = vmatpush.msra.mxu0 %v68
    %1749 = vmatpush.msra.mxu0 %v60
    %1750 = vmatpush.msra.mxu0 %v52
    %1751 = vmatpush.msra.mxu0 %v44
    %1752 = vmatmul.f32.gmra.mxu0 %v1685
    %v1753 = vpop.f32.mrf.mxu0
    %v1754 = vadd.f32 0.0, %v1753
    %1755 = vdwg.mxu0
    %1756 = vmatpush.msra.mxu0 %v292
    %1757 = vmatpush.msra.mxu0 %v284
    %1758 = vmatpush.msra.mxu0 %v276
    %1759 = vmatpush.msra.mxu0 %v268
    %1760 = vmatpush.msra.mxu0 %v260
    %1761 = vmatpush.msra.mxu0 %v252
    %1762 = vmatpush.msra.mxu0 %v244
    %1763 = vmatpush.msra.mxu0 %v236
    %1764 = vmatpush.msra.mxu0 %v228
    %1765 = vmatpush.msra.mxu0 %v220
    %1766 = vmatpush.msra.mxu0 %v212
    %1767 = vmatpush.msra.mxu0 %v204
    %1768 = vmatpush.msra.mxu0 %v196
    %1769 = vmatpush.msra.mxu0 %v188
    %1770 = vmatpush.msra.mxu0 %v180
    %1771 = vmatpush.msra.mxu0 %v172
    %1772 = vmatmul.f32.gmra.mxu0 %v1686
    %v1773 = vpop.f32.mrf.mxu0
    %v1774 = vadd.f32 %v1754, %v1773
    %1775 = vdwg.mxu0
    %1776 = vmatpush.msra.mxu0 %v165
    %1777 = vmatpush.msra.mxu0 %v157
    %1778 = vmatpush.msra.mxu0 %v149
    %1779 = vmatpush.msra.mxu0 %v141
    %1780 = vmatpush.msra.mxu0 %v133
    %1781 = vmatpush.msra.mxu0 %v125
    %1782 = vmatpush.msra.mxu0 %v117
    %1783 = vmatpush.msra.mxu0 %v109
    %1784 = vmatpush.msra.mxu0 %v101
    %1785 = vmatpush.msra.mxu0 %v93
    %1786 = vmatpush.msra.mxu0 %v85
    %1787 = vmatpush.msra.mxu0 %v77
    %1788 = vmatpush.msra.mxu0 %v69
    %1789 = vmatpush.msra.mxu0 %v61
    %1790 = vmatpush.msra.mxu0 %v53
    %1791 = vmatpush.msra.mxu0 %v45
    %1792 = vmatmul.f32.gmra.mxu0 %v1685
    %v1793 = vpop.f32.mrf.mxu0
    %v1794 = vadd.f32 0.0, %v1793
    %1795 = vdwg.mxu0
    %1796 = vmatpush.msra.mxu0 %v293
    %1797 = vmatpush.msra.mxu0 %v285
    %1798 = vmatpush.msra.mxu0 %v277
    %1799 = vmatpush.msra.mxu0 %v269
    %1800 = vmatpush.msra.mxu0 %v261
    %1801 = vmatpush.msra.mxu0 %v253
    %1802 = vmatpush.msra.mxu0 %v245
    %1803 = vmatpush.msra.mxu0 %v237
    %1804 = vmatpush.msra.mxu0 %v229
    %1805 = vmatpush.msra.mxu0 %v221
    %1806 = vmatpush.msra.mxu0 %v213
    %1807 = vmatpush.msra.mxu0 %v205
    %1808 = vmatpush.msra.mxu0 %v197
    %1809 = vmatpush.msra.mxu0 %v189
    %1810 = vmatpush.msra.mxu0 %v181
    %1811 = vmatpush.msra.mxu0 %v173
    %1812 = vmatmul.f32.gmra.mxu0 %v1686
    %v1813 = vpop.f32.mrf.mxu0
    %v1814 = vadd.f32 %v1794, %v1813
    %1815 = vdwg.mxu0
    %1816 = vmatpush.msra.mxu0 %v166
    %1817 = vmatpush.msra.mxu0 %v158
    %1818 = vmatpush.msra.mxu0 %v150
    %1819 = vmatpush.msra.mxu0 %v142
    %1820 = vmatpush.msra.mxu0 %v134
    %1821 = vmatpush.msra.mxu0 %v126
    %1822 = vmatpush.msra.mxu0 %v118
    %1823 = vmatpush.msra.mxu0 %v110
    %1824 = vmatpush.msra.mxu0 %v102
    %1825 = vmatpush.msra.mxu0 %v94
    %1826 = vmatpush.msra.mxu0 %v86
    %1827 = vmatpush.msra.mxu0 %v78
    %1828 = vmatpush.msra.mxu0 %v70
    %1829 = vmatpush.msra.mxu0 %v62
    %1830 = vmatpush.msra.mxu0 %v54
    %1831 = vmatpush.msra.mxu0 %v46
    %1832 = vmatmul.f32.gmra.mxu0 %v1685
    %v1833 = vpop.f32.mrf.mxu0
    %v1834 = vadd.f32 0.0, %v1833
    %1835 = vdwg.mxu0
    %1836 = vmatpush.msra.mxu0 %v294
    %1837 = vmatpush.msra.mxu0 %v286
    %1838 = vmatpush.msra.mxu0 %v278
    %1839 = vmatpush.msra.mxu0 %v270
    %1840 = vmatpush.msra.mxu0 %v262
    %1841 = vmatpush.msra.mxu0 %v254
    %1842 = vmatpush.msra.mxu0 %v246
    %1843 = vmatpush.msra.mxu0 %v238
    %1844 = vmatpush.msra.mxu0 %v230
    %1845 = vmatpush.msra.mxu0 %v222
    %1846 = vmatpush.msra.mxu0 %v214
    %1847 = vmatpush.msra.mxu0 %v206
    %1848 = vmatpush.msra.mxu0 %v198
    %1849 = vmatpush.msra.mxu0 %v190
    %1850 = vmatpush.msra.mxu0 %v182
    %1851 = vmatpush.msra.mxu0 %v174
    %1852 = vmatmul.f32.gmra.mxu0 %v1686
    %v1853 = vpop.f32.mrf.mxu0
    %v1854 = vadd.f32 %v1834, %v1853
    %1855 = vdwg.mxu0
    %1856 = vmatpush.msra.mxu0 %v167
    %1857 = vmatpush.msra.mxu0 %v159
    %1858 = vmatpush.msra.mxu0 %v151
    %1859 = vmatpush.msra.mxu0 %v143
    %1860 = vmatpush.msra.mxu0 %v135
    %1861 = vmatpush.msra.mxu0 %v127
    %1862 = vmatpush.msra.mxu0 %v119
    %1863 = vmatpush.msra.mxu0 %v111
    %1864 = vmatpush.msra.mxu0 %v103
    %1865 = vmatpush.msra.mxu0 %v95
    %1866 = vmatpush.msra.mxu0 %v87
    %1867 = vmatpush.msra.mxu0 %v79
    %1868 = vmatpush.msra.mxu0 %v71
    %1869 = vmatpush.msra.mxu0 %v63
    %1870 = vmatpush.msra.mxu0 %v55
    %1871 = vmatpush.msra.mxu0 %v47
    %1872 = vmatmul.f32.gmra.mxu0 %v1685
    %v1873 = vpop.f32.mrf.mxu0
    %v1874 = vadd.f32 0.0, %v1873
    %1875 = vdwg.mxu0
    %1876 = vmatpush.msra.mxu0 %v295
    %1877 = vmatpush.msra.mxu0 %v287
    %1878 = vmatpush.msra.mxu0 %v279
    %1879 = vmatpush.msra.mxu0 %v271
    %1880 = vmatpush.msra.mxu0 %v263
    %1881 = vmatpush.msra.mxu0 %v255
    %1882 = vmatpush.msra.mxu0 %v247
    %1883 = vmatpush.msra.mxu0 %v239
    %1884 = vmatpush.msra.mxu0 %v231
    %1885 = vmatpush.msra.mxu0 %v223
    %1886 = vmatpush.msra.mxu0 %v215
    %1887 = vmatpush.msra.mxu0 %v207
    %1888 = vmatpush.msra.mxu0 %v199
    %1889 = vmatpush.msra.mxu0 %v191
    %1890 = vmatpush.msra.mxu0 %v183
    %1891 = vmatpush.msra.mxu0 %v175
    %1892 = vmatmul.f32.gmra.mxu0 %v1686
    %v1893 = vpop.f32.mrf.mxu0
    %v1894 = vadd.f32 %v1874, %v1893
    %1895 = vdwg.mxu0
    %1896 = vmatpush.msra.mxu0 %v168
    %1897 = vmatpush.msra.mxu0 %v160
    %1898 = vmatpush.msra.mxu0 %v152
    %1899 = vmatpush.msra.mxu0 %v144
    %1900 = vmatpush.msra.mxu0 %v136
    %1901 = vmatpush.msra.mxu0 %v128
    %1902 = vmatpush.msra.mxu0 %v120
    %1903 = vmatpush.msra.mxu0 %v112
    %1904 = vmatpush.msra.mxu0 %v104
    %1905 = vmatpush.msra.mxu0 %v96
    %1906 = vmatpush.msra.mxu0 %v88
    %1907 = vmatpush.msra.mxu0 %v80
    %1908 = vmatpush.msra.mxu0 %v72
    %1909 = vmatpush.msra.mxu0 %v64
    %1910 = vmatpush.msra.mxu0 %v56
    %1911 = vmatpush.msra.mxu0 %v48
    %1912 = vmatmul.f32.gmra.mxu0 %v1685
    %v1913 = vpop.f32.mrf.mxu0
    %v1914 = vadd.f32 0.0, %v1913
    %1915 = vdwg.mxu0
    %1916 = vmatpush.msra.mxu0 %v296
    %1917 = vmatpush.msra.mxu0 %v288
    %1918 = vmatpush.msra.mxu0 %v280
    %1919 = vmatpush.msra.mxu0 %v272
    %1920 = vmatpush.msra.mxu0 %v264
    %1921 = vmatpush.msra.mxu0 %v256
    %1922 = vmatpush.msra.mxu0 %v248
    %1923 = vmatpush.msra.mxu0 %v240
    %1924 = vmatpush.msra.mxu0 %v232
    %1925 = vmatpush.msra.mxu0 %v224
    %1926 = vmatpush.msra.mxu0 %v216
    %1927 = vmatpush.msra.mxu0 %v208
    %1928 = vmatpush.msra.mxu0 %v200
    %1929 = vmatpush.msra.mxu0 %v192
    %1930 = vmatpush.msra.mxu0 %v184
    %1931 = vmatpush.msra.mxu0 %v176
    %1932 = vmatmul.f32.gmra.mxu0 %v1686
    %v1933 = vpop.f32.mrf.mxu0
    %v1934 = vadd.f32 %v1914, %v1933
    %1935 = vdwg.mxu0
    %1936 = vmatpush.msra.mxu0 %v169
    %1937 = vmatpush.msra.mxu0 %v161
    %1938 = vmatpush.msra.mxu0 %v153
    %1939 = vmatpush.msra.mxu0 %v145
    %1940 = vmatpush.msra.mxu0 %v137
    %1941 = vmatpush.msra.mxu0 %v129
    %1942 = vmatpush.msra.mxu0 %v121
    %1943 = vmatpush.msra.mxu0 %v113
    %1944 = vmatpush.msra.mxu0 %v105
    %1945 = vmatpush.msra.mxu0 %v97
    %1946 = vmatpush.msra.mxu0 %v89
    %1947 = vmatpush.msra.mxu0 %v81
    %1948 = vmatpush.msra.mxu0 %v73
    %1949 = vmatpush.msra.mxu0 %v65
    %1950 = vmatpush.msra.mxu0 %v57
    %1951 = vmatpush.msra.mxu0 %v49
    %1952 = vmatmul.f32.gmra.mxu0 %v1685
    %v1953 = vpop.f32.mrf.mxu0
    %v1954 = vadd.f32 0.0, %v1953
    %1955 = vdwg.mxu0
    %1956 = vmatpush.msra.mxu0 %v297
    %1957 = vmatpush.msra.mxu0 %v289
    %1958 = vmatpush.msra.mxu0 %v281
    %1959 = vmatpush.msra.mxu0 %v273
    %1960 = vmatpush.msra.mxu0 %v265
    %1961 = vmatpush.msra.mxu0 %v257
    %1962 = vmatpush.msra.mxu0 %v249
    %1963 = vmatpush.msra.mxu0 %v241
    %1964 = vmatpush.msra.mxu0 %v233
    %1965 = vmatpush.msra.mxu0 %v225
    %1966 = vmatpush.msra.mxu0 %v217
    %1967 = vmatpush.msra.mxu0 %v209
    %1968 = vmatpush.msra.mxu0 %v201
    %1969 = vmatpush.msra.mxu0 %v193
    %1970 = vmatpush.msra.mxu0 %v185
    %1971 = vmatpush.msra.mxu0 %v177
    %1972 = vmatmul.f32.gmra.mxu0 %v1686
    %v1973 = vpop.f32.mrf.mxu0
    %v1974 = vadd.f32 %v1954, %v1973
    %1975 = vdwg.mxu0
    %1976 = vmatpush.msra.mxu0 %v170
    %1977 = vmatpush.msra.mxu0 %v162
    %1978 = vmatpush.msra.mxu0 %v154
    %1979 = vmatpush.msra.mxu0 %v146
    %1980 = vmatpush.msra.mxu0 %v138
    %1981 = vmatpush.msra.mxu0 %v130
    %1982 = vmatpush.msra.mxu0 %v122
    %1983 = vmatpush.msra.mxu0 %v114
    %1984 = vmatpush.msra.mxu0 %v106
    %1985 = vmatpush.msra.mxu0 %v98
    %1986 = vmatpush.msra.mxu0 %v90
    %1987 = vmatpush.msra.mxu0 %v82
    %1988 = vmatpush.msra.mxu0 %v74
    %1989 = vmatpush.msra.mxu0 %v66
    %1990 = vmatpush.msra.mxu0 %v58
    %1991 = vmatpush.msra.mxu0 %v50
    %1992 = vmatmul.f32.gmra.mxu0 %v1685
    %v1993 = vpop.f32.mrf.mxu0
    %v1994 = vadd.f32 0.0, %v1993
    %1995 = vdwg.mxu0
    %1996 = vmatpush.msra.mxu0 %v298
    %1997 = vmatpush.msra.mxu0 %v290
    %1998 = vmatpush.msra.mxu0 %v282
    %1999 = vmatpush.msra.mxu0 %v274
    %2000 = vmatpush.msra.mxu0 %v266
    %2001 = vmatpush.msra.mxu0 %v258
    %2002 = vmatpush.msra.mxu0 %v250
    %2003 = vmatpush.msra.mxu0 %v242
    %2004 = vmatpush.msra.mxu0 %v234
    %2005 = vmatpush.msra.mxu0 %v226
    %2006 = vmatpush.msra.mxu0 %v218
    %2007 = vmatpush.msra.mxu0 %v210
    %2008 = vmatpush.msra.mxu0 %v202
    %2009 = vmatpush.msra.mxu0 %v194
    %2010 = vmatpush.msra.mxu0 %v186
    %2011 = vmatpush.msra.mxu0 %v178
    %2012 = vmatmul.f32.gmra.mxu0 %v1686
    %v2013 = vpop.f32.mrf.mxu0
    %v2014 = vadd.f32 %v1994, %v2013
    %2015 = vdwg.mxu0
    %v2016 = vadd.f32 %v1688, %v1734
    %v2017 = vadd.f32 %v1689, %v1774
    %v2018 = vadd.f32 %v1690, %v1814
    %v2019 = vadd.f32 %v1691, %v1854
    %v2020 = vadd.f32 %v1692, %v1894
    %v2021 = vadd.f32 %v1693, %v1934
    %v2022 = vadd.f32 %v1694, %v1974
    %v2023 = vadd.f32 %v1695, %v2014
    %v2024 = vxor.u32 %v2016, 2147483648
    %v2025 = vxor.u32 %v2017, 2147483648
    %v2026 = vmul.f32 %v2024, 1.442695
    %v2027 = vpow.pop %v2026
    %v2028 = vmul.f32 %v2025, 1.442695
    %v2029 = vpow.pop %v2028
    %v2030 = vadd.f32 %v2027, 1.0
    %v2031 = vadd.f32 %v2029, 1.0
    %v2032 = vrcp.pop %v2030
    %v2033 = vmul.f32 %v2030, %v2032
    %v2034 = vsub.f32 1.0, %v2033
    %v2035 = vmul.f32 %v2032, %v2034
    %v2036 = vadd.f32 %v2032, %v2035
    %vm2037 = vweird.f32 %v2030
    %vm2038 = vweird.f32 %v2032
    %vm2039 = vmor %vm2037, %vm2038
    %v2040 = vsel %vm2039, %v2032, %v2036
    %v2041 = vand.u32 2147483647, %v2030
    %vm2042 = vcmp.eq.f32.partialorder %v2041, 8.507059e+37
    %v2043 = vand.u32 %v2030, 2147483648
    %v2044 = vor.u32 1.1754944e-38, %v2043
    %v2045 = vsel %vm2042, %v2044, %v2040
    %v2046 = vmul.f32 1.0, %v2045
    %v2047 = vrcp.pop %v2031
    %v2048 = vmul.f32 %v2031, %v2047
    %v2049 = vsub.f32 1.0, %v2048
    %v2050 = vmul.f32 %v2047, %v2049
    %v2051 = vadd.f32 %v2047, %v2050
    %vm2052 = vweird.f32 %v2031
    %vm2053 = vweird.f32 %v2047
    %vm2054 = vmor %vm2052, %vm2053
    %v2055 = vsel %vm2054, %v2047, %v2051
    %v2056 = vand.u32 2147483647, %v2031
    %vm2057 = vcmp.eq.f32.partialorder %v2056, 8.507059e+37
    %v2058 = vand.u32 %v2031, 2147483648
    %v2059 = vor.u32 1.1754944e-38, %v2058
    %v2060 = vsel %vm2057, %v2059, %v2055
    %v2061 = vmul.f32 1.0, %v2060
    %v2062 = vxor.u32 %v2018, 2147483648
    %v2063 = vxor.u32 %v2019, 2147483648
    %v2064 = vmul.f32 %v2062, 1.442695
    %v2065 = vpow.pop %v2064
    %v2066 = vmul.f32 %v2063, 1.442695
    %v2067 = vpow.pop %v2066
    %v2068 = vadd.f32 %v2065, 1.0
    %v2069 = vadd.f32 %v2067, 1.0
    %v2070 = vrcp.pop %v2068
    %v2071 = vmul.f32 %v2068, %v2070
    %v2072 = vsub.f32 1.0, %v2071
    %v2073 = vmul.f32 %v2070, %v2072
    %v2074 = vadd.f32 %v2070, %v2073
    %vm2075 = vweird.f32 %v2068
    %vm2076 = vweird.f32 %v2070
    %vm2077 = vmor %vm2075, %vm2076
    %v2078 = vsel %vm2077, %v2070, %v2074
    %v2079 = vand.u32 2147483647, %v2068
    %vm2080 = vcmp.eq.f32.partialorder %v2079, 8.507059e+37
    %v2081 = vand.u32 %v2068, 2147483648
    %v2082 = vor.u32 1.1754944e-38, %v2081
    %v2083 = vsel %vm2080, %v2082, %v2078
    %v2084 = vmul.f32 1.0, %v2083
    %v2085 = vrcp.pop %v2069
    %v2086 = vmul.f32 %v2069, %v2085
    %v2087 = vsub.f32 1.0, %v2086
    %v2088 = vmul.f32 %v2085, %v2087
    %v2089 = vadd.f32 %v2085, %v2088
    %vm2090 = vweird.f32 %v2069
    %vm2091 = vweird.f32 %v2085
    %vm2092 = vmor %vm2090, %vm2091
    %v2093 = vsel %vm2092, %v2085, %v2089
    %v2094 = vand.u32 2147483647, %v2069
    %vm2095 = vcmp.eq.f32.partialorder %v2094, 8.507059e+37
    %v2096 = vand.u32 %v2069, 2147483648
    %v2097 = vor.u32 1.1754944e-38, %v2096
    %v2098 = vsel %vm2095, %v2097, %v2093
    %v2099 = vmul.f32 1.0, %v2098
    %v2100 = vtanh.pop %v2020
    %v2101 = vtanh.pop %v2021
    %v2102 = vxor.u32 %v2022, 2147483648
    %v2103 = vxor.u32 %v2023, 2147483648
    %v2104 = vmul.f32 %v2102, 1.442695
    %v2105 = vpow.pop %v2104
    %v2106 = vmul.f32 %v2103, 1.442695
    %v2107 = vpow.pop %v2106
    %v2108 = vadd.f32 %v2105, 1.0
    %v2109 = vadd.f32 %v2107, 1.0
    %v2110 = vrcp.pop %v2108
    %v2111 = vmul.f32 %v2108, %v2110
    %v2112 = vsub.f32 1.0, %v2111
    %v2113 = vmul.f32 %v2110, %v2112
    %v2114 = vadd.f32 %v2110, %v2113
    %vm2115 = vweird.f32 %v2108
    %vm2116 = vweird.f32 %v2110
    %vm2117 = vmor %vm2115, %vm2116
    %v2118 = vsel %vm2117, %v2110, %v2114
    %v2119 = vand.u32 2147483647, %v2108
    %vm2120 = vcmp.eq.f32.partialorder %v2119, 8.507059e+37
    %v2121 = vand.u32 %v2108, 2147483648
    %v2122 = vor.u32 1.1754944e-38, %v2121
    %v2123 = vsel %vm2120, %v2122, %v2118
    %v2124 = vmul.f32 1.0, %v2123
    %v2125 = vrcp.pop %v2109
    %v2126 = vmul.f32 %v2109, %v2125
    %v2127 = vsub.f32 1.0, %v2126
    %v2128 = vmul.f32 %v2125, %v2127
    %v2129 = vadd.f32 %v2125, %v2128
    %vm2130 = vweird.f32 %v2109
    %vm2131 = vweird.f32 %v2125
    %vm2132 = vmor %vm2130, %vm2131
    %v2133 = vsel %vm2132, %v2125, %v2129
    %v2134 = vand.u32 2147483647, %v2109
    %vm2135 = vcmp.eq.f32.partialorder %v2134, 8.507059e+37
    %v2136 = vand.u32 %v2109, 2147483648
    %v2137 = vor.u32 1.1754944e-38, %v2136
    %v2138 = vsel %vm2135, %v2137, %v2133
    %v2139 = vmul.f32 1.0, %v2138
    %v2140 = vmul.f32 %v2084, %v1681
    %v2141 = vmul.f32 %v2099, %v1682
    %v2142 = vmul.f32 %v2046, %v2100
    %v2143 = vmul.f32 %v2061, %v2101
    %v2144 = vadd.f32 %v2140, %v2142
    %v2145 = vadd.f32 %v2141, %v2143
    %v2146 = vtanh.pop %v2144
    %v2147 = vtanh.pop %v2145
    %v2148 = vmul.f32 %v2124, %v2146
    %v2149 = vmul.f32 %v2139, %v2147
    %s2150 = scalar_lea.vmem %s0, 256
    %v2151 = vld [vmem:[%s2150] sm:$0xff]
    %v2152 = vld [vmem:[%s2150 + $0x8] sm:$0xff]
    %v2153 = vld [vmem:[%s2150 + $0x10] sm:$0xff]
    %v2154 = vld [vmem:[%s2150 + $0x18] sm:$0xff]
    %v2155 = vld [vmem:[%s2150 + $0x20] sm:$0xff]
    %v2156 = vld [vmem:[%s2150 + $0x28] sm:$0xff]
    %v2157 = vld [vmem:[%s2150 + $0x30] sm:$0xff]
    %v2158 = vld [vmem:[%s2150 + $0x38] sm:$0xff]
    %2159 = vmatpush.msra.mxu0 %v163
    %2160 = vmatpush.msra.mxu0 %v155
    %2161 = vmatpush.msra.mxu0 %v147
    %2162 = vmatpush.msra.mxu0 %v139
    %2163 = vmatpush.msra.mxu0 %v131
    %2164 = vmatpush.msra.mxu0 %v123
    %2165 = vmatpush.msra.mxu0 %v115
    %2166 = vmatpush.msra.mxu0 %v107
    %2167 = vmatpush.msra.mxu0 %v99
    %2168 = vmatpush.msra.mxu0 %v91
    %2169 = vmatpush.msra.mxu0 %v83
    %2170 = vmatpush.msra.mxu0 %v75
    %2171 = vmatpush.msra.mxu0 %v67
    %2172 = vmatpush.msra.mxu0 %v59
    %2173 = vmatpush.msra.mxu0 %v51
    %2174 = vmatpush.msra.mxu0 %v43
    %2175 = vmatmul.f32.gmra.mxu0 %v2148
    %v2176 = vpop.f32.mrf.mxu0
    %v2177 = vadd.f32 0.0, %v2176
    %2178 = vdwg.mxu0
    %2179 = vmatpush.msra.mxu0 %v291
    %2180 = vmatpush.msra.mxu0 %v283
    %2181 = vmatpush.msra.mxu0 %v275
    %2182 = vmatpush.msra.mxu0 %v267
    %2183 = vmatpush.msra.mxu0 %v259
    %2184 = vmatpush.msra.mxu0 %v251
    %2185 = vmatpush.msra.mxu0 %v243
    %2186 = vmatpush.msra.mxu0 %v235
    %2187 = vmatpush.msra.mxu0 %v227
    %2188 = vmatpush.msra.mxu0 %v219
    %2189 = vmatpush.msra.mxu0 %v211
    %2190 = vmatpush.msra.mxu0 %v203
    %2191 = vmatpush.msra.mxu0 %v195
    %2192 = vmatpush.msra.mxu0 %v187
    %2193 = vmatpush.msra.mxu0 %v179
    %2194 = vmatpush.msra.mxu0 %v171
    %2195 = vmatmul.f32.gmra.mxu0 %v2149
    %v2196 = vpop.f32.mrf.mxu0
    %v2197 = vadd.f32 %v2177, %v2196
    %2198 = vdwg.mxu0
    %2199 = vmatpush.msra.mxu0 %v164
    %2200 = vmatpush.msra.mxu0 %v156
    %2201 = vmatpush.msra.mxu0 %v148
    %2202 = vmatpush.msra.mxu0 %v140
    %2203 = vmatpush.msra.mxu0 %v132
    %2204 = vmatpush.msra.mxu0 %v124
    %2205 = vmatpush.msra.mxu0 %v116
    %2206 = vmatpush.msra.mxu0 %v108
    %2207 = vmatpush.msra.mxu0 %v100
    %2208 = vmatpush.msra.mxu0 %v92
    %2209 = vmatpush.msra.mxu0 %v84
    %2210 = vmatpush.msra.mxu0 %v76
    %2211 = vmatpush.msra.mxu0 %v68
    %2212 = vmatpush.msra.mxu0 %v60
    %2213 = vmatpush.msra.mxu0 %v52
    %2214 = vmatpush.msra.mxu0 %v44
    %2215 = vmatmul.f32.gmra.mxu0 %v2148
    %v2216 = vpop.f32.mrf.mxu0
    %v2217 = vadd.f32 0.0, %v2216
    %2218 = vdwg.mxu0
    %2219 = vmatpush.msra.mxu0 %v292
    %2220 = vmatpush.msra.mxu0 %v284
    %2221 = vmatpush.msra.mxu0 %v276
    %2222 = vmatpush.msra.mxu0 %v268
    %2223 = vmatpush.msra.mxu0 %v260
    %2224 = vmatpush.msra.mxu0 %v252
    %2225 = vmatpush.msra.mxu0 %v244
    %2226 = vmatpush.msra.mxu0 %v236
    %2227 = vmatpush.msra.mxu0 %v228
    %2228 = vmatpush.msra.mxu0 %v220
    %2229 = vmatpush.msra.mxu0 %v212
    %2230 = vmatpush.msra.mxu0 %v204
    %2231 = vmatpush.msra.mxu0 %v196
    %2232 = vmatpush.msra.mxu0 %v188
    %2233 = vmatpush.msra.mxu0 %v180
    %2234 = vmatpush.msra.mxu0 %v172
    %2235 = vmatmul.f32.gmra.mxu0 %v2149
    %v2236 = vpop.f32.mrf.mxu0
    %v2237 = vadd.f32 %v2217, %v2236
    %2238 = vdwg.mxu0
    %2239 = vmatpush.msra.mxu0 %v165
    %2240 = vmatpush.msra.mxu0 %v157
    %2241 = vmatpush.msra.mxu0 %v149
    %2242 = vmatpush.msra.mxu0 %v141
    %2243 = vmatpush.msra.mxu0 %v133
    %2244 = vmatpush.msra.mxu0 %v125
    %2245 = vmatpush.msra.mxu0 %v117
    %2246 = vmatpush.msra.mxu0 %v109
    %2247 = vmatpush.msra.mxu0 %v101
    %2248 = vmatpush.msra.mxu0 %v93
    %2249 = vmatpush.msra.mxu0 %v85
    %2250 = vmatpush.msra.mxu0 %v77
    %2251 = vmatpush.msra.mxu0 %v69
    %2252 = vmatpush.msra.mxu0 %v61
    %2253 = vmatpush.msra.mxu0 %v53
    %2254 = vmatpush.msra.mxu0 %v45
    %2255 = vmatmul.f32.gmra.mxu0 %v2148
    %v2256 = vpop.f32.mrf.mxu0
    %v2257 = vadd.f32 0.0, %v2256
    %2258 = vdwg.mxu0
    %2259 = vmatpush.msra.mxu0 %v293
    %2260 = vmatpush.msra.mxu0 %v285
    %2261 = vmatpush.msra.mxu0 %v277
    %2262 = vmatpush.msra.mxu0 %v269
    %2263 = vmatpush.msra.mxu0 %v261
    %2264 = vmatpush.msra.mxu0 %v253
    %2265 = vmatpush.msra.mxu0 %v245
    %2266 = vmatpush.msra.mxu0 %v237
    %2267 = vmatpush.msra.mxu0 %v229
    %2268 = vmatpush.msra.mxu0 %v221
    %2269 = vmatpush.msra.mxu0 %v213
    %2270 = vmatpush.msra.mxu0 %v205
    %2271 = vmatpush.msra.mxu0 %v197
    %2272 = vmatpush.msra.mxu0 %v189
    %2273 = vmatpush.msra.mxu0 %v181
    %2274 = vmatpush.msra.mxu0 %v173
    %2275 = vmatmul.f32.gmra.mxu0 %v2149
    %v2276 = vpop.f32.mrf.mxu0
    %v2277 = vadd.f32 %v2257, %v2276
    %2278 = vdwg.mxu0
    %2279 = vmatpush.msra.mxu0 %v166
    %2280 = vmatpush.msra.mxu0 %v158
    %2281 = vmatpush.msra.mxu0 %v150
    %2282 = vmatpush.msra.mxu0 %v142
    %2283 = vmatpush.msra.mxu0 %v134
    %2284 = vmatpush.msra.mxu0 %v126
    %2285 = vmatpush.msra.mxu0 %v118
    %2286 = vmatpush.msra.mxu0 %v110
    %2287 = vmatpush.msra.mxu0 %v102
    %2288 = vmatpush.msra.mxu0 %v94
    %2289 = vmatpush.msra.mxu0 %v86
    %2290 = vmatpush.msra.mxu0 %v78
    %2291 = vmatpush.msra.mxu0 %v70
    %2292 = vmatpush.msra.mxu0 %v62
    %2293 = vmatpush.msra.mxu0 %v54
    %2294 = vmatpush.msra.mxu0 %v46
    %2295 = vmatmul.f32.gmra.mxu0 %v2148
    %v2296 = vpop.f32.mrf.mxu0
    %v2297 = vadd.f32 0.0, %v2296
    %2298 = vdwg.mxu0
    %2299 = vmatpush.msra.mxu0 %v294
    %2300 = vmatpush.msra.mxu0 %v286
    %2301 = vmatpush.msra.mxu0 %v278
    %2302 = vmatpush.msra.mxu0 %v270
    %2303 = vmatpush.msra.mxu0 %v262
    %2304 = vmatpush.msra.mxu0 %v254
    %2305 = vmatpush.msra.mxu0 %v246
    %2306 = vmatpush.msra.mxu0 %v238
    %2307 = vmatpush.msra.mxu0 %v230
    %2308 = vmatpush.msra.mxu0 %v222
    %2309 = vmatpush.msra.mxu0 %v214
    %2310 = vmatpush.msra.mxu0 %v206
    %2311 = vmatpush.msra.mxu0 %v198
    %2312 = vmatpush.msra.mxu0 %v190
    %2313 = vmatpush.msra.mxu0 %v182
    %2314 = vmatpush.msra.mxu0 %v174
    %2315 = vmatmul.f32.gmra.mxu0 %v2149
    %v2316 = vpop.f32.mrf.mxu0
    %v2317 = vadd.f32 %v2297, %v2316
    %2318 = vdwg.mxu0
    %2319 = vmatpush.msra.mxu0 %v167
    %2320 = vmatpush.msra.mxu0 %v159
    %2321 = vmatpush.msra.mxu0 %v151
    %2322 = vmatpush.msra.mxu0 %v143
    %2323 = vmatpush.msra.mxu0 %v135
    %2324 = vmatpush.msra.mxu0 %v127
    %2325 = vmatpush.msra.mxu0 %v119
    %2326 = vmatpush.msra.mxu0 %v111
    %2327 = vmatpush.msra.mxu0 %v103
    %2328 = vmatpush.msra.mxu0 %v95
    %2329 = vmatpush.msra.mxu0 %v87
    %2330 = vmatpush.msra.mxu0 %v79
    %2331 = vmatpush.msra.mxu0 %v71
    %2332 = vmatpush.msra.mxu0 %v63
    %2333 = vmatpush.msra.mxu0 %v55
    %2334 = vmatpush.msra.mxu0 %v47
    %2335 = vmatmul.f32.gmra.mxu0 %v2148
    %v2336 = vpop.f32.mrf.mxu0
    %v2337 = vadd.f32 0.0, %v2336
    %2338 = vdwg.mxu0
    %2339 = vmatpush.msra.mxu0 %v295
    %2340 = vmatpush.msra.mxu0 %v287
    %2341 = vmatpush.msra.mxu0 %v279
    %2342 = vmatpush.msra.mxu0 %v271
    %2343 = vmatpush.msra.mxu0 %v263
    %2344 = vmatpush.msra.mxu0 %v255
    %2345 = vmatpush.msra.mxu0 %v247
    %2346 = vmatpush.msra.mxu0 %v239
    %2347 = vmatpush.msra.mxu0 %v231
    %2348 = vmatpush.msra.mxu0 %v223
    %2349 = vmatpush.msra.mxu0 %v215
    %2350 = vmatpush.msra.mxu0 %v207
    %2351 = vmatpush.msra.mxu0 %v199
    %2352 = vmatpush.msra.mxu0 %v191
    %2353 = vmatpush.msra.mxu0 %v183
    %2354 = vmatpush.msra.mxu0 %v175
    %2355 = vmatmul.f32.gmra.mxu0 %v2149
    %v2356 = vpop.f32.mrf.mxu0
    %v2357 = vadd.f32 %v2337, %v2356
    %2358 = vdwg.mxu0
    %2359 = vmatpush.msra.mxu0 %v168
    %2360 = vmatpush.msra.mxu0 %v160
    %2361 = vmatpush.msra.mxu0 %v152
    %2362 = vmatpush.msra.mxu0 %v144
    %2363 = vmatpush.msra.mxu0 %v136
    %2364 = vmatpush.msra.mxu0 %v128
    %2365 = vmatpush.msra.mxu0 %v120
    %2366 = vmatpush.msra.mxu0 %v112
    %2367 = vmatpush.msra.mxu0 %v104
    %2368 = vmatpush.msra.mxu0 %v96
    %2369 = vmatpush.msra.mxu0 %v88
    %2370 = vmatpush.msra.mxu0 %v80
    %2371 = vmatpush.msra.mxu0 %v72
    %2372 = vmatpush.msra.mxu0 %v64
    %2373 = vmatpush.msra.mxu0 %v56
    %2374 = vmatpush.msra.mxu0 %v48
    %2375 = vmatmul.f32.gmra.mxu0 %v2148
    %v2376 = vpop.f32.mrf.mxu0
    %v2377 = vadd.f32 0.0, %v2376
    %2378 = vdwg.mxu0
    %2379 = vmatpush.msra.mxu0 %v296
    %2380 = vmatpush.msra.mxu0 %v288
    %2381 = vmatpush.msra.mxu0 %v280
    %2382 = vmatpush.msra.mxu0 %v272
    %2383 = vmatpush.msra.mxu0 %v264
    %2384 = vmatpush.msra.mxu0 %v256
    %2385 = vmatpush.msra.mxu0 %v248
    %2386 = vmatpush.msra.mxu0 %v240
    %2387 = vmatpush.msra.mxu0 %v232
    %2388 = vmatpush.msra.mxu0 %v224
    %2389 = vmatpush.msra.mxu0 %v216
    %2390 = vmatpush.msra.mxu0 %v208
    %2391 = vmatpush.msra.mxu0 %v200
    %2392 = vmatpush.msra.mxu0 %v192
    %2393 = vmatpush.msra.mxu0 %v184
    %2394 = vmatpush.msra.mxu0 %v176
    %2395 = vmatmul.f32.gmra.mxu0 %v2149
    %v2396 = vpop.f32.mrf.mxu0
    %v2397 = vadd.f32 %v2377, %v2396
    %2398 = vdwg.mxu0
    %2399 = vmatpush.msra.mxu0 %v169
    %2400 = vmatpush.msra.mxu0 %v161
    %2401 = vmatpush.msra.mxu0 %v153
    %2402 = vmatpush.msra.mxu0 %v145
    %2403 = vmatpush.msra.mxu0 %v137
    %2404 = vmatpush.msra.mxu0 %v129
    %2405 = vmatpush.msra.mxu0 %v121
    %2406 = vmatpush.msra.mxu0 %v113
    %2407 = vmatpush.msra.mxu0 %v105
    %2408 = vmatpush.msra.mxu0 %v97
    %2409 = vmatpush.msra.mxu0 %v89
    %2410 = vmatpush.msra.mxu0 %v81
    %2411 = vmatpush.msra.mxu0 %v73
    %2412 = vmatpush.msra.mxu0 %v65
    %2413 = vmatpush.msra.mxu0 %v57
    %2414 = vmatpush.msra.mxu0 %v49
    %2415 = vmatmul.f32.gmra.mxu0 %v2148
    %v2416 = vpop.f32.mrf.mxu0
    %v2417 = vadd.f32 0.0, %v2416
    %2418 = vdwg.mxu0
    %2419 = vmatpush.msra.mxu0 %v297
    %2420 = vmatpush.msra.mxu0 %v289
    %2421 = vmatpush.msra.mxu0 %v281
    %2422 = vmatpush.msra.mxu0 %v273
    %2423 = vmatpush.msra.mxu0 %v265
    %2424 = vmatpush.msra.mxu0 %v257
    %2425 = vmatpush.msra.mxu0 %v249
    %2426 = vmatpush.msra.mxu0 %v241
    %2427 = vmatpush.msra.mxu0 %v233
    %2428 = vmatpush.msra.mxu0 %v225
    %2429 = vmatpush.msra.mxu0 %v217
    %2430 = vmatpush.msra.mxu0 %v209
    %2431 = vmatpush.msra.mxu0 %v201
    %2432 = vmatpush.msra.mxu0 %v193
    %2433 = vmatpush.msra.mxu0 %v185
    %2434 = vmatpush.msra.mxu0 %v177
    %2435 = vmatmul.f32.gmra.mxu0 %v2149
    %v2436 = vpop.f32.mrf.mxu0
    %v2437 = vadd.f32 %v2417, %v2436
    %2438 = vdwg.mxu0
    %2439 = vmatpush.msra.mxu0 %v170
    %2440 = vmatpush.msra.mxu0 %v162
    %2441 = vmatpush.msra.mxu0 %v154
    %2442 = vmatpush.msra.mxu0 %v146
    %2443 = vmatpush.msra.mxu0 %v138
    %2444 = vmatpush.msra.mxu0 %v130
    %2445 = vmatpush.msra.mxu0 %v122
    %2446 = vmatpush.msra.mxu0 %v114
    %2447 = vmatpush.msra.mxu0 %v106
    %2448 = vmatpush.msra.mxu0 %v98
    %2449 = vmatpush.msra.mxu0 %v90
    %2450 = vmatpush.msra.mxu0 %v82
    %2451 = vmatpush.msra.mxu0 %v74
    %2452 = vmatpush.msra.mxu0 %v66
    %2453 = vmatpush.msra.mxu0 %v58
    %2454 = vmatpush.msra.mxu0 %v50
    %2455 = vmatmul.f32.gmra.mxu0 %v2148
    %v2456 = vpop.f32.mrf.mxu0
    %v2457 = vadd.f32 0.0, %v2456
    %2458 = vdwg.mxu0
    %2459 = vmatpush.msra.mxu0 %v298
    %2460 = vmatpush.msra.mxu0 %v290
    %2461 = vmatpush.msra.mxu0 %v282
    %2462 = vmatpush.msra.mxu0 %v274
    %2463 = vmatpush.msra.mxu0 %v266
    %2464 = vmatpush.msra.mxu0 %v258
    %2465 = vmatpush.msra.mxu0 %v250
    %2466 = vmatpush.msra.mxu0 %v242
    %2467 = vmatpush.msra.mxu0 %v234
    %2468 = vmatpush.msra.mxu0 %v226
    %2469 = vmatpush.msra.mxu0 %v218
    %2470 = vmatpush.msra.mxu0 %v210
    %2471 = vmatpush.msra.mxu0 %v202
    %2472 = vmatpush.msra.mxu0 %v194
    %2473 = vmatpush.msra.mxu0 %v186
    %2474 = vmatpush.msra.mxu0 %v178
    %2475 = vmatmul.f32.gmra.mxu0 %v2149
    %v2476 = vpop.f32.mrf.mxu0
    %v2477 = vadd.f32 %v2457, %v2476
    %2478 = vdwg.mxu0
    %v2479 = vadd.f32 %v2151, %v2197
    %v2480 = vadd.f32 %v2152, %v2237
    %v2481 = vadd.f32 %v2153, %v2277
    %v2482 = vadd.f32 %v2154, %v2317
    %v2483 = vadd.f32 %v2155, %v2357
    %v2484 = vadd.f32 %v2156, %v2397
    %v2485 = vadd.f32 %v2157, %v2437
    %v2486 = vadd.f32 %v2158, %v2477
    %v2487 = vxor.u32 %v2479, 2147483648
    %v2488 = vxor.u32 %v2480, 2147483648
    %v2489 = vmul.f32 %v2487, 1.442695
    %v2490 = vpow.pop %v2489
    %v2491 = vmul.f32 %v2488, 1.442695
    %v2492 = vpow.pop %v2491
    %v2493 = vadd.f32 %v2490, 1.0
    %v2494 = vadd.f32 %v2492, 1.0
    %v2495 = vrcp.pop %v2493
    %v2496 = vmul.f32 %v2493, %v2495
    %v2497 = vsub.f32 1.0, %v2496
    %v2498 = vmul.f32 %v2495, %v2497
    %v2499 = vadd.f32 %v2495, %v2498
    %vm2500 = vweird.f32 %v2493
    %vm2501 = vweird.f32 %v2495
    %vm2502 = vmor %vm2500, %vm2501
    %v2503 = vsel %vm2502, %v2495, %v2499
    %v2504 = vand.u32 2147483647, %v2493
    %vm2505 = vcmp.eq.f32.partialorder %v2504, 8.507059e+37
    %v2506 = vand.u32 %v2493, 2147483648
    %v2507 = vor.u32 1.1754944e-38, %v2506
    %v2508 = vsel %vm2505, %v2507, %v2503
    %v2509 = vmul.f32 1.0, %v2508
    %v2510 = vrcp.pop %v2494
    %v2511 = vmul.f32 %v2494, %v2510
    %v2512 = vsub.f32 1.0, %v2511
    %v2513 = vmul.f32 %v2510, %v2512
    %v2514 = vadd.f32 %v2510, %v2513
    %vm2515 = vweird.f32 %v2494
    %vm2516 = vweird.f32 %v2510
    %vm2517 = vmor %vm2515, %vm2516
    %v2518 = vsel %vm2517, %v2510, %v2514
    %v2519 = vand.u32 2147483647, %v2494
    %vm2520 = vcmp.eq.f32.partialorder %v2519, 8.507059e+37
    %v2521 = vand.u32 %v2494, 2147483648
    %v2522 = vor.u32 1.1754944e-38, %v2521
    %v2523 = vsel %vm2520, %v2522, %v2518
    %v2524 = vmul.f32 1.0, %v2523
    %v2525 = vxor.u32 %v2481, 2147483648
    %v2526 = vxor.u32 %v2482, 2147483648
    %v2527 = vmul.f32 %v2525, 1.442695
    %v2528 = vpow.pop %v2527
    %v2529 = vmul.f32 %v2526, 1.442695
    %v2530 = vpow.pop %v2529
    %v2531 = vadd.f32 %v2528, 1.0
    %v2532 = vadd.f32 %v2530, 1.0
    %v2533 = vrcp.pop %v2531
    %v2534 = vmul.f32 %v2531, %v2533
    %v2535 = vsub.f32 1.0, %v2534
    %v2536 = vmul.f32 %v2533, %v2535
    %v2537 = vadd.f32 %v2533, %v2536
    %vm2538 = vweird.f32 %v2531
    %vm2539 = vweird.f32 %v2533
    %vm2540 = vmor %vm2538, %vm2539
    %v2541 = vsel %vm2540, %v2533, %v2537
    %v2542 = vand.u32 2147483647, %v2531
    %vm2543 = vcmp.eq.f32.partialorder %v2542, 8.507059e+37
    %v2544 = vand.u32 %v2531, 2147483648
    %v2545 = vor.u32 1.1754944e-38, %v2544
    %v2546 = vsel %vm2543, %v2545, %v2541
    %v2547 = vmul.f32 1.0, %v2546
    %v2548 = vrcp.pop %v2532
    %v2549 = vmul.f32 %v2532, %v2548
    %v2550 = vsub.f32 1.0, %v2549
    %v2551 = vmul.f32 %v2548, %v2550
    %v2552 = vadd.f32 %v2548, %v2551
    %vm2553 = vweird.f32 %v2532
    %vm2554 = vweird.f32 %v2548
    %vm2555 = vmor %vm2553, %vm2554
    %v2556 = vsel %vm2555, %v2548, %v2552
    %v2557 = vand.u32 2147483647, %v2532
    %vm2558 = vcmp.eq.f32.partialorder %v2557, 8.507059e+37
    %v2559 = vand.u32 %v2532, 2147483648
    %v2560 = vor.u32 1.1754944e-38, %v2559
    %v2561 = vsel %vm2558, %v2560, %v2556
    %v2562 = vmul.f32 1.0, %v2561
    %v2563 = vtanh.pop %v2483
    %v2564 = vtanh.pop %v2484
    %v2565 = vxor.u32 %v2485, 2147483648
    %v2566 = vxor.u32 %v2486, 2147483648
    %v2567 = vmul.f32 %v2565, 1.442695
    %v2568 = vpow.pop %v2567
    %v2569 = vmul.f32 %v2566, 1.442695
    %v2570 = vpow.pop %v2569
    %v2571 = vadd.f32 %v2568, 1.0
    %v2572 = vadd.f32 %v2570, 1.0
    %v2573 = vrcp.pop %v2571
    %v2574 = vmul.f32 %v2571, %v2573
    %v2575 = vsub.f32 1.0, %v2574
    %v2576 = vmul.f32 %v2573, %v2575
    %v2577 = vadd.f32 %v2573, %v2576
    %vm2578 = vweird.f32 %v2571
    %vm2579 = vweird.f32 %v2573
    %vm2580 = vmor %vm2578, %vm2579
    %v2581 = vsel %vm2580, %v2573, %v2577
    %v2582 = vand.u32 2147483647, %v2571
    %vm2583 = vcmp.eq.f32.partialorder %v2582, 8.507059e+37
    %v2584 = vand.u32 %v2571, 2147483648
    %v2585 = vor.u32 1.1754944e-38, %v2584
    %v2586 = vsel %vm2583, %v2585, %v2581
    %v2587 = vmul.f32 1.0, %v2586
    %v2588 = vrcp.pop %v2572
    %v2589 = vmul.f32 %v2572, %v2588
    %v2590 = vsub.f32 1.0, %v2589
    %v2591 = vmul.f32 %v2588, %v2590
    %v2592 = vadd.f32 %v2588, %v2591
    %vm2593 = vweird.f32 %v2572
    %vm2594 = vweird.f32 %v2588
    %vm2595 = vmor %vm2593, %vm2594
    %v2596 = vsel %vm2595, %v2588, %v2592
    %v2597 = vand.u32 2147483647, %v2572
    %vm2598 = vcmp.eq.f32.partialorder %v2597, 8.507059e+37
    %v2599 = vand.u32 %v2572, 2147483648
    %v2600 = vor.u32 1.1754944e-38, %v2599
    %v2601 = vsel %vm2598, %v2600, %v2596
    %v2602 = vmul.f32 1.0, %v2601
    %v2603 = vmul.f32 %v2547, %v2144
    %v2604 = vmul.f32 %v2562, %v2145
    %v2605 = vmul.f32 %v2509, %v2563
    %v2606 = vmul.f32 %v2524, %v2564
    %v2607 = vadd.f32 %v2603, %v2605
    %v2608 = vadd.f32 %v2604, %v2606
    %v2609 = vtanh.pop %v2607
    %v2610 = vtanh.pop %v2608
    %v2611 = vmul.f32 %v2587, %v2609
    %v2612 = vmul.f32 %v2602, %v2610
    %s2613 = scalar_lea.vmem %s0, 320
    %v2614 = vld [vmem:[%s2613] sm:$0xff]
    %v2615 = vld [vmem:[%s2613 + $0x8] sm:$0xff]
    %v2616 = vld [vmem:[%s2613 + $0x10] sm:$0xff]
    %v2617 = vld [vmem:[%s2613 + $0x18] sm:$0xff]
    %v2618 = vld [vmem:[%s2613 + $0x20] sm:$0xff]
    %v2619 = vld [vmem:[%s2613 + $0x28] sm:$0xff]
    %v2620 = vld [vmem:[%s2613 + $0x30] sm:$0xff]
    %v2621 = vld [vmem:[%s2613 + $0x38] sm:$0xff]
    %2622 = vmatpush.msra.mxu0 %v163
    %2623 = vmatpush.msra.mxu0 %v155
    %2624 = vmatpush.msra.mxu0 %v147
    %2625 = vmatpush.msra.mxu0 %v139
    %2626 = vmatpush.msra.mxu0 %v131
    %2627 = vmatpush.msra.mxu0 %v123
    %2628 = vmatpush.msra.mxu0 %v115
    %2629 = vmatpush.msra.mxu0 %v107
    %2630 = vmatpush.msra.mxu0 %v99
    %2631 = vmatpush.msra.mxu0 %v91
    %2632 = vmatpush.msra.mxu0 %v83
    %2633 = vmatpush.msra.mxu0 %v75
    %2634 = vmatpush.msra.mxu0 %v67
    %2635 = vmatpush.msra.mxu0 %v59
    %2636 = vmatpush.msra.mxu0 %v51
    %2637 = vmatpush.msra.mxu0 %v43
    %2638 = vmatmul.f32.gmra.mxu0 %v2611
    %v2639 = vpop.f32.mrf.mxu0
    %v2640 = vadd.f32 0.0, %v2639
    %2641 = vdwg.mxu0
    %2642 = vmatpush.msra.mxu0 %v291
    %2643 = vmatpush.msra.mxu0 %v283
    %2644 = vmatpush.msra.mxu0 %v275
    %2645 = vmatpush.msra.mxu0 %v267
    %2646 = vmatpush.msra.mxu0 %v259
    %2647 = vmatpush.msra.mxu0 %v251
    %2648 = vmatpush.msra.mxu0 %v243
    %2649 = vmatpush.msra.mxu0 %v235
    %2650 = vmatpush.msra.mxu0 %v227
    %2651 = vmatpush.msra.mxu0 %v219
    %2652 = vmatpush.msra.mxu0 %v211
    %2653 = vmatpush.msra.mxu0 %v203
    %2654 = vmatpush.msra.mxu0 %v195
    %2655 = vmatpush.msra.mxu0 %v187
    %2656 = vmatpush.msra.mxu0 %v179
    %2657 = vmatpush.msra.mxu0 %v171
    %2658 = vmatmul.f32.gmra.mxu0 %v2612
    %v2659 = vpop.f32.mrf.mxu0
    %v2660 = vadd.f32 %v2640, %v2659
    %2661 = vdwg.mxu0
    %2662 = vmatpush.msra.mxu0 %v164
    %2663 = vmatpush.msra.mxu0 %v156
    %2664 = vmatpush.msra.mxu0 %v148
    %2665 = vmatpush.msra.mxu0 %v140
    %2666 = vmatpush.msra.mxu0 %v132
    %2667 = vmatpush.msra.mxu0 %v124
    %2668 = vmatpush.msra.mxu0 %v116
    %2669 = vmatpush.msra.mxu0 %v108
    %2670 = vmatpush.msra.mxu0 %v100
    %2671 = vmatpush.msra.mxu0 %v92
    %2672 = vmatpush.msra.mxu0 %v84
    %2673 = vmatpush.msra.mxu0 %v76
    %2674 = vmatpush.msra.mxu0 %v68
    %2675 = vmatpush.msra.mxu0 %v60
    %2676 = vmatpush.msra.mxu0 %v52
    %2677 = vmatpush.msra.mxu0 %v44
    %2678 = vmatmul.f32.gmra.mxu0 %v2611
    %v2679 = vpop.f32.mrf.mxu0
    %v2680 = vadd.f32 0.0, %v2679
    %2681 = vdwg.mxu0
    %2682 = vmatpush.msra.mxu0 %v292
    %2683 = vmatpush.msra.mxu0 %v284
    %2684 = vmatpush.msra.mxu0 %v276
    %2685 = vmatpush.msra.mxu0 %v268
    %2686 = vmatpush.msra.mxu0 %v260
    %2687 = vmatpush.msra.mxu0 %v252
    %2688 = vmatpush.msra.mxu0 %v244
    %2689 = vmatpush.msra.mxu0 %v236
    %2690 = vmatpush.msra.mxu0 %v228
    %2691 = vmatpush.msra.mxu0 %v220
    %2692 = vmatpush.msra.mxu0 %v212
    %2693 = vmatpush.msra.mxu0 %v204
    %2694 = vmatpush.msra.mxu0 %v196
    %2695 = vmatpush.msra.mxu0 %v188
    %2696 = vmatpush.msra.mxu0 %v180
    %2697 = vmatpush.msra.mxu0 %v172
    %2698 = vmatmul.f32.gmra.mxu0 %v2612
    %v2699 = vpop.f32.mrf.mxu0
    %v2700 = vadd.f32 %v2680, %v2699
    %2701 = vdwg.mxu0
    %2702 = vmatpush.msra.mxu0 %v165
    %2703 = vmatpush.msra.mxu0 %v157
    %2704 = vmatpush.msra.mxu0 %v149
    %2705 = vmatpush.msra.mxu0 %v141
    %2706 = vmatpush.msra.mxu0 %v133
    %2707 = vmatpush.msra.mxu0 %v125
    %2708 = vmatpush.msra.mxu0 %v117
    %2709 = vmatpush.msra.mxu0 %v109
    %2710 = vmatpush.msra.mxu0 %v101
    %2711 = vmatpush.msra.mxu0 %v93
    %2712 = vmatpush.msra.mxu0 %v85
    %2713 = vmatpush.msra.mxu0 %v77
    %2714 = vmatpush.msra.mxu0 %v69
    %2715 = vmatpush.msra.mxu0 %v61
    %2716 = vmatpush.msra.mxu0 %v53
    %2717 = vmatpush.msra.mxu0 %v45
    %2718 = vmatmul.f32.gmra.mxu0 %v2611
    %v2719 = vpop.f32.mrf.mxu0
    %v2720 = vadd.f32 0.0, %v2719
    %2721 = vdwg.mxu0
    %2722 = vmatpush.msra.mxu0 %v293
    %2723 = vmatpush.msra.mxu0 %v285
    %2724 = vmatpush.msra.mxu0 %v277
    %2725 = vmatpush.msra.mxu0 %v269
    %2726 = vmatpush.msra.mxu0 %v261
    %2727 = vmatpush.msra.mxu0 %v253
    %2728 = vmatpush.msra.mxu0 %v245
    %2729 = vmatpush.msra.mxu0 %v237
    %2730 = vmatpush.msra.mxu0 %v229
    %2731 = vmatpush.msra.mxu0 %v221
    %2732 = vmatpush.msra.mxu0 %v213
    %2733 = vmatpush.msra.mxu0 %v205
    %2734 = vmatpush.msra.mxu0 %v197
    %2735 = vmatpush.msra.mxu0 %v189
    %2736 = vmatpush.msra.mxu0 %v181
    %2737 = vmatpush.msra.mxu0 %v173
    %2738 = vmatmul.f32.gmra.mxu0 %v2612
    %v2739 = vpop.f32.mrf.mxu0
    %v2740 = vadd.f32 %v2720, %v2739
    %2741 = vdwg.mxu0
    %2742 = vmatpush.msra.mxu0 %v166
    %2743 = vmatpush.msra.mxu0 %v158
    %2744 = vmatpush.msra.mxu0 %v150
    %2745 = vmatpush.msra.mxu0 %v142
    %2746 = vmatpush.msra.mxu0 %v134
    %2747 = vmatpush.msra.mxu0 %v126
    %2748 = vmatpush.msra.mxu0 %v118
    %2749 = vmatpush.msra.mxu0 %v110
    %2750 = vmatpush.msra.mxu0 %v102
    %2751 = vmatpush.msra.mxu0 %v94
    %2752 = vmatpush.msra.mxu0 %v86
    %2753 = vmatpush.msra.mxu0 %v78
    %2754 = vmatpush.msra.mxu0 %v70
    %2755 = vmatpush.msra.mxu0 %v62
    %2756 = vmatpush.msra.mxu0 %v54
    %2757 = vmatpush.msra.mxu0 %v46
    %2758 = vmatmul.f32.gmra.mxu0 %v2611
    %v2759 = vpop.f32.mrf.mxu0
    %v2760 = vadd.f32 0.0, %v2759
    %2761 = vdwg.mxu0
    %2762 = vmatpush.msra.mxu0 %v294
    %2763 = vmatpush.msra.mxu0 %v286
    %2764 = vmatpush.msra.mxu0 %v278
    %2765 = vmatpush.msra.mxu0 %v270
    %2766 = vmatpush.msra.mxu0 %v262
    %2767 = vmatpush.msra.mxu0 %v254
    %2768 = vmatpush.msra.mxu0 %v246
    %2769 = vmatpush.msra.mxu0 %v238
    %2770 = vmatpush.msra.mxu0 %v230
    %2771 = vmatpush.msra.mxu0 %v222
    %2772 = vmatpush.msra.mxu0 %v214
    %2773 = vmatpush.msra.mxu0 %v206
    %2774 = vmatpush.msra.mxu0 %v198
    %2775 = vmatpush.msra.mxu0 %v190
    %2776 = vmatpush.msra.mxu0 %v182
    %2777 = vmatpush.msra.mxu0 %v174
    %2778 = vmatmul.f32.gmra.mxu0 %v2612
    %v2779 = vpop.f32.mrf.mxu0
    %v2780 = vadd.f32 %v2760, %v2779
    %2781 = vdwg.mxu0
    %2782 = vmatpush.msra.mxu0 %v167
    %2783 = vmatpush.msra.mxu0 %v159
    %2784 = vmatpush.msra.mxu0 %v151
    %2785 = vmatpush.msra.mxu0 %v143
    %2786 = vmatpush.msra.mxu0 %v135
    %2787 = vmatpush.msra.mxu0 %v127
    %2788 = vmatpush.msra.mxu0 %v119
    %2789 = vmatpush.msra.mxu0 %v111
    %2790 = vmatpush.msra.mxu0 %v103
    %2791 = vmatpush.msra.mxu0 %v95
    %2792 = vmatpush.msra.mxu0 %v87
    %2793 = vmatpush.msra.mxu0 %v79
    %2794 = vmatpush.msra.mxu0 %v71
    %2795 = vmatpush.msra.mxu0 %v63
    %2796 = vmatpush.msra.mxu0 %v55
    %2797 = vmatpush.msra.mxu0 %v47
    %2798 = vmatmul.f32.gmra.mxu0 %v2611
    %v2799 = vpop.f32.mrf.mxu0
    %v2800 = vadd.f32 0.0, %v2799
    %2801 = vdwg.mxu0
    %2802 = vmatpush.msra.mxu0 %v295
    %2803 = vmatpush.msra.mxu0 %v287
    %2804 = vmatpush.msra.mxu0 %v279
    %2805 = vmatpush.msra.mxu0 %v271
    %2806 = vmatpush.msra.mxu0 %v263
    %2807 = vmatpush.msra.mxu0 %v255
    %2808 = vmatpush.msra.mxu0 %v247
    %2809 = vmatpush.msra.mxu0 %v239
    %2810 = vmatpush.msra.mxu0 %v231
    %2811 = vmatpush.msra.mxu0 %v223
    %2812 = vmatpush.msra.mxu0 %v215
    %2813 = vmatpush.msra.mxu0 %v207
    %2814 = vmatpush.msra.mxu0 %v199
    %2815 = vmatpush.msra.mxu0 %v191
    %2816 = vmatpush.msra.mxu0 %v183
    %2817 = vmatpush.msra.mxu0 %v175
    %2818 = vmatmul.f32.gmra.mxu0 %v2612
    %v2819 = vpop.f32.mrf.mxu0
    %v2820 = vadd.f32 %v2800, %v2819
    %2821 = vdwg.mxu0
    %2822 = vmatpush.msra.mxu0 %v168
    %2823 = vmatpush.msra.mxu0 %v160
    %2824 = vmatpush.msra.mxu0 %v152
    %2825 = vmatpush.msra.mxu0 %v144
    %2826 = vmatpush.msra.mxu0 %v136
    %2827 = vmatpush.msra.mxu0 %v128
    %2828 = vmatpush.msra.mxu0 %v120
    %2829 = vmatpush.msra.mxu0 %v112
    %2830 = vmatpush.msra.mxu0 %v104
    %2831 = vmatpush.msra.mxu0 %v96
    %2832 = vmatpush.msra.mxu0 %v88
    %2833 = vmatpush.msra.mxu0 %v80
    %2834 = vmatpush.msra.mxu0 %v72
    %2835 = vmatpush.msra.mxu0 %v64
    %2836 = vmatpush.msra.mxu0 %v56
    %2837 = vmatpush.msra.mxu0 %v48
    %2838 = vmatmul.f32.gmra.mxu0 %v2611
    %v2839 = vpop.f32.mrf.mxu0
    %v2840 = vadd.f32 0.0, %v2839
    %2841 = vdwg.mxu0
    %2842 = vmatpush.msra.mxu0 %v296
    %2843 = vmatpush.msra.mxu0 %v288
    %2844 = vmatpush.msra.mxu0 %v280
    %2845 = vmatpush.msra.mxu0 %v272
    %2846 = vmatpush.msra.mxu0 %v264
    %2847 = vmatpush.msra.mxu0 %v256
    %2848 = vmatpush.msra.mxu0 %v248
    %2849 = vmatpush.msra.mxu0 %v240
    %2850 = vmatpush.msra.mxu0 %v232
    %2851 = vmatpush.msra.mxu0 %v224
    %2852 = vmatpush.msra.mxu0 %v216
    %2853 = vmatpush.msra.mxu0 %v208
    %2854 = vmatpush.msra.mxu0 %v200
    %2855 = vmatpush.msra.mxu0 %v192
    %2856 = vmatpush.msra.mxu0 %v184
    %2857 = vmatpush.msra.mxu0 %v176
    %2858 = vmatmul.f32.gmra.mxu0 %v2612
    %v2859 = vpop.f32.mrf.mxu0
    %v2860 = vadd.f32 %v2840, %v2859
    %2861 = vdwg.mxu0
    %2862 = vmatpush.msra.mxu0 %v169
    %2863 = vmatpush.msra.mxu0 %v161
    %2864 = vmatpush.msra.mxu0 %v153
    %2865 = vmatpush.msra.mxu0 %v145
    %2866 = vmatpush.msra.mxu0 %v137
    %2867 = vmatpush.msra.mxu0 %v129
    %2868 = vmatpush.msra.mxu0 %v121
    %2869 = vmatpush.msra.mxu0 %v113
    %2870 = vmatpush.msra.mxu0 %v105
    %2871 = vmatpush.msra.mxu0 %v97
    %2872 = vmatpush.msra.mxu0 %v89
    %2873 = vmatpush.msra.mxu0 %v81
    %2874 = vmatpush.msra.mxu0 %v73
    %2875 = vmatpush.msra.mxu0 %v65
    %2876 = vmatpush.msra.mxu0 %v57
    %2877 = vmatpush.msra.mxu0 %v49
    %2878 = vmatmul.f32.gmra.mxu0 %v2611
    %v2879 = vpop.f32.mrf.mxu0
    %v2880 = vadd.f32 0.0, %v2879
    %2881 = vdwg.mxu0
    %2882 = vmatpush.msra.mxu0 %v297
    %2883 = vmatpush.msra.mxu0 %v289
    %2884 = vmatpush.msra.mxu0 %v281
    %2885 = vmatpush.msra.mxu0 %v273
    %2886 = vmatpush.msra.mxu0 %v265
    %2887 = vmatpush.msra.mxu0 %v257
    %2888 = vmatpush.msra.mxu0 %v249
    %2889 = vmatpush.msra.mxu0 %v241
    %2890 = vmatpush.msra.mxu0 %v233
    %2891 = vmatpush.msra.mxu0 %v225
    %2892 = vmatpush.msra.mxu0 %v217
    %2893 = vmatpush.msra.mxu0 %v209
    %2894 = vmatpush.msra.mxu0 %v201
    %2895 = vmatpush.msra.mxu0 %v193
    %2896 = vmatpush.msra.mxu0 %v185
    %2897 = vmatpush.msra.mxu0 %v177
    %2898 = vmatmul.f32.gmra.mxu0 %v2612
    %v2899 = vpop.f32.mrf.mxu0
    %v2900 = vadd.f32 %v2880, %v2899
    %2901 = vdwg.mxu0
    %2902 = vmatpush.msra.mxu0 %v170
    %2903 = vmatpush.msra.mxu0 %v162
    %2904 = vmatpush.msra.mxu0 %v154
    %2905 = vmatpush.msra.mxu0 %v146
    %2906 = vmatpush.msra.mxu0 %v138
    %2907 = vmatpush.msra.mxu0 %v130
    %2908 = vmatpush.msra.mxu0 %v122
    %2909 = vmatpush.msra.mxu0 %v114
    %2910 = vmatpush.msra.mxu0 %v106
    %2911 = vmatpush.msra.mxu0 %v98
    %2912 = vmatpush.msra.mxu0 %v90
    %2913 = vmatpush.msra.mxu0 %v82
    %2914 = vmatpush.msra.mxu0 %v74
    %2915 = vmatpush.msra.mxu0 %v66
    %2916 = vmatpush.msra.mxu0 %v58
    %2917 = vmatpush.msra.mxu0 %v50
    %2918 = vmatmul.f32.gmra.mxu0 %v2611
    %v2919 = vpop.f32.mrf.mxu0
    %v2920 = vadd.f32 0.0, %v2919
    %2921 = vdwg.mxu0
    %2922 = vmatpush.msra.mxu0 %v298
    %2923 = vmatpush.msra.mxu0 %v290
    %2924 = vmatpush.msra.mxu0 %v282
    %2925 = vmatpush.msra.mxu0 %v274
    %2926 = vmatpush.msra.mxu0 %v266
    %2927 = vmatpush.msra.mxu0 %v258
    %2928 = vmatpush.msra.mxu0 %v250
    %2929 = vmatpush.msra.mxu0 %v242
    %2930 = vmatpush.msra.mxu0 %v234
    %2931 = vmatpush.msra.mxu0 %v226
    %2932 = vmatpush.msra.mxu0 %v218
    %2933 = vmatpush.msra.mxu0 %v210
    %2934 = vmatpush.msra.mxu0 %v202
    %2935 = vmatpush.msra.mxu0 %v194
    %2936 = vmatpush.msra.mxu0 %v186
    %2937 = vmatpush.msra.mxu0 %v178
    %2938 = vmatmul.f32.gmra.mxu0 %v2612
    %v2939 = vpop.f32.mrf.mxu0
    %v2940 = vadd.f32 %v2920, %v2939
    %2941 = vdwg.mxu0
    %v2942 = vadd.f32 %v2614, %v2660
    %v2943 = vadd.f32 %v2615, %v2700
    %v2944 = vadd.f32 %v2616, %v2740
    %v2945 = vadd.f32 %v2617, %v2780
    %v2946 = vadd.f32 %v2618, %v2820
    %v2947 = vadd.f32 %v2619, %v2860
    %v2948 = vadd.f32 %v2620, %v2900
    %v2949 = vadd.f32 %v2621, %v2940
    %v2950 = vxor.u32 %v2942, 2147483648
    %v2951 = vxor.u32 %v2943, 2147483648
    %v2952 = vmul.f32 %v2950, 1.442695
    %v2953 = vpow.pop %v2952
    %v2954 = vmul.f32 %v2951, 1.442695
    %v2955 = vpow.pop %v2954
    %v2956 = vadd.f32 %v2953, 1.0
    %v2957 = vadd.f32 %v2955, 1.0
    %v2958 = vrcp.pop %v2956
    %v2959 = vmul.f32 %v2956, %v2958
    %v2960 = vsub.f32 1.0, %v2959
    %v2961 = vmul.f32 %v2958, %v2960
    %v2962 = vadd.f32 %v2958, %v2961
    %vm2963 = vweird.f32 %v2956
    %vm2964 = vweird.f32 %v2958
    %vm2965 = vmor %vm2963, %vm2964
    %v2966 = vsel %vm2965, %v2958, %v2962
    %v2967 = vand.u32 2147483647, %v2956
    %vm2968 = vcmp.eq.f32.partialorder %v2967, 8.507059e+37
    %v2969 = vand.u32 %v2956, 2147483648
    %v2970 = vor.u32 1.1754944e-38, %v2969
    %v2971 = vsel %vm2968, %v2970, %v2966
    %v2972 = vmul.f32 1.0, %v2971
    %v2973 = vrcp.pop %v2957
    %v2974 = vmul.f32 %v2957, %v2973
    %v2975 = vsub.f32 1.0, %v2974
    %v2976 = vmul.f32 %v2973, %v2975
    %v2977 = vadd.f32 %v2973, %v2976
    %vm2978 = vweird.f32 %v2957
    %vm2979 = vweird.f32 %v2973
    %vm2980 = vmor %vm2978, %vm2979
    %v2981 = vsel %vm2980, %v2973, %v2977
    %v2982 = vand.u32 2147483647, %v2957
    %vm2983 = vcmp.eq.f32.partialorder %v2982, 8.507059e+37
    %v2984 = vand.u32 %v2957, 2147483648
    %v2985 = vor.u32 1.1754944e-38, %v2984
    %v2986 = vsel %vm2983, %v2985, %v2981
    %v2987 = vmul.f32 1.0, %v2986
    %v2988 = vxor.u32 %v2944, 2147483648
    %v2989 = vxor.u32 %v2945, 2147483648
    %v2990 = vmul.f32 %v2988, 1.442695
    %v2991 = vpow.pop %v2990
    %v2992 = vmul.f32 %v2989, 1.442695
    %v2993 = vpow.pop %v2992
    %v2994 = vadd.f32 %v2991, 1.0
    %v2995 = vadd.f32 %v2993, 1.0
    %v2996 = vrcp.pop %v2994
    %v2997 = vmul.f32 %v2994, %v2996
    %v2998 = vsub.f32 1.0, %v2997
    %v2999 = vmul.f32 %v2996, %v2998
    %v3000 = vadd.f32 %v2996, %v2999
    %vm3001 = vweird.f32 %v2994
    %vm3002 = vweird.f32 %v2996
    %vm3003 = vmor %vm3001, %vm3002
    %v3004 = vsel %vm3003, %v2996, %v3000
    %v3005 = vand.u32 2147483647, %v2994
    %vm3006 = vcmp.eq.f32.partialorder %v3005, 8.507059e+37
    %v3007 = vand.u32 %v2994, 2147483648
    %v3008 = vor.u32 1.1754944e-38, %v3007
    %v3009 = vsel %vm3006, %v3008, %v3004
    %v3010 = vmul.f32 1.0, %v3009
    %v3011 = vrcp.pop %v2995
    %v3012 = vmul.f32 %v2995, %v3011
    %v3013 = vsub.f32 1.0, %v3012
    %v3014 = vmul.f32 %v3011, %v3013
    %v3015 = vadd.f32 %v3011, %v3014
    %vm3016 = vweird.f32 %v2995
    %vm3017 = vweird.f32 %v3011
    %vm3018 = vmor %vm3016, %vm3017
    %v3019 = vsel %vm3018, %v3011, %v3015
    %v3020 = vand.u32 2147483647, %v2995
    %vm3021 = vcmp.eq.f32.partialorder %v3020, 8.507059e+37
    %v3022 = vand.u32 %v2995, 2147483648
    %v3023 = vor.u32 1.1754944e-38, %v3022
    %v3024 = vsel %vm3021, %v3023, %v3019
    %v3025 = vmul.f32 1.0, %v3024
    %v3026 = vtanh.pop %v2946
    %v3027 = vtanh.pop %v2947
    %v3028 = vxor.u32 %v2948, 2147483648
    %v3029 = vxor.u32 %v2949, 2147483648
    %v3030 = vmul.f32 %v3028, 1.442695
    %v3031 = vpow.pop %v3030
    %v3032 = vmul.f32 %v3029, 1.442695
    %v3033 = vpow.pop %v3032
    %v3034 = vadd.f32 %v3031, 1.0
    %v3035 = vadd.f32 %v3033, 1.0
    %v3036 = vrcp.pop %v3034
    %v3037 = vmul.f32 %v3034, %v3036
    %v3038 = vsub.f32 1.0, %v3037
    %v3039 = vmul.f32 %v3036, %v3038
    %v3040 = vadd.f32 %v3036, %v3039
    %vm3041 = vweird.f32 %v3034
    %vm3042 = vweird.f32 %v3036
    %vm3043 = vmor %vm3041, %vm3042
    %v3044 = vsel %vm3043, %v3036, %v3040
    %v3045 = vand.u32 2147483647, %v3034
    %vm3046 = vcmp.eq.f32.partialorder %v3045, 8.507059e+37
    %v3047 = vand.u32 %v3034, 2147483648
    %v3048 = vor.u32 1.1754944e-38, %v3047
    %v3049 = vsel %vm3046, %v3048, %v3044
    %v3050 = vmul.f32 1.0, %v3049
    %v3051 = vrcp.pop %v3035
    %v3052 = vmul.f32 %v3035, %v3051
    %v3053 = vsub.f32 1.0, %v3052
    %v3054 = vmul.f32 %v3051, %v3053
    %v3055 = vadd.f32 %v3051, %v3054
    %vm3056 = vweird.f32 %v3035
    %vm3057 = vweird.f32 %v3051
    %vm3058 = vmor %vm3056, %vm3057
    %v3059 = vsel %vm3058, %v3051, %v3055
    %v3060 = vand.u32 2147483647, %v3035
    %vm3061 = vcmp.eq.f32.partialorder %v3060, 8.507059e+37
    %v3062 = vand.u32 %v3035, 2147483648
    %v3063 = vor.u32 1.1754944e-38, %v3062
    %v3064 = vsel %vm3061, %v3063, %v3059
    %v3065 = vmul.f32 1.0, %v3064
    %v3066 = vmul.f32 %v3010, %v2607
    %v3067 = vmul.f32 %v3025, %v2608
    %v3068 = vmul.f32 %v2972, %v3026
    %v3069 = vmul.f32 %v2987, %v3027
    %v3070 = vadd.f32 %v3066, %v3068
    %v3071 = vadd.f32 %v3067, %v3069
    %v3072 = vtanh.pop %v3070
    %v3073 = vtanh.pop %v3071
    %v3074 = vmul.f32 %v3050, %v3072
    %v3075 = vmul.f32 %v3065, %v3073
    %s3076 = scalar_lea.vmem %s0, 384
    %v3077 = vld [vmem:[%s3076] sm:$0xff]
    %v3078 = vld [vmem:[%s3076 + $0x8] sm:$0xff]
    %v3079 = vld [vmem:[%s3076 + $0x10] sm:$0xff]
    %v3080 = vld [vmem:[%s3076 + $0x18] sm:$0xff]
    %v3081 = vld [vmem:[%s3076 + $0x20] sm:$0xff]
    %v3082 = vld [vmem:[%s3076 + $0x28] sm:$0xff]
    %v3083 = vld [vmem:[%s3076 + $0x30] sm:$0xff]
    %v3084 = vld [vmem:[%s3076 + $0x38] sm:$0xff]
    %3085 = vmatpush.msra.mxu0 %v163
    %3086 = vmatpush.msra.mxu0 %v155
    %3087 = vmatpush.msra.mxu0 %v147
    %3088 = vmatpush.msra.mxu0 %v139
    %3089 = vmatpush.msra.mxu0 %v131
    %3090 = vmatpush.msra.mxu0 %v123
    %3091 = vmatpush.msra.mxu0 %v115
    %3092 = vmatpush.msra.mxu0 %v107
    %3093 = vmatpush.msra.mxu0 %v99
    %3094 = vmatpush.msra.mxu0 %v91
    %3095 = vmatpush.msra.mxu0 %v83
    %3096 = vmatpush.msra.mxu0 %v75
    %3097 = vmatpush.msra.mxu0 %v67
    %3098 = vmatpush.msra.mxu0 %v59
    %3099 = vmatpush.msra.mxu0 %v51
    %3100 = vmatpush.msra.mxu0 %v43
    %3101 = vmatmul.f32.gmra.mxu0 %v3074
    %v3102 = vpop.f32.mrf.mxu0
    %v3103 = vadd.f32 0.0, %v3102
    %3104 = vdwg.mxu0
    %3105 = vmatpush.msra.mxu0 %v291
    %3106 = vmatpush.msra.mxu0 %v283
    %3107 = vmatpush.msra.mxu0 %v275
    %3108 = vmatpush.msra.mxu0 %v267
    %3109 = vmatpush.msra.mxu0 %v259
    %3110 = vmatpush.msra.mxu0 %v251
    %3111 = vmatpush.msra.mxu0 %v243
    %3112 = vmatpush.msra.mxu0 %v235
    %3113 = vmatpush.msra.mxu0 %v227
    %3114 = vmatpush.msra.mxu0 %v219
    %3115 = vmatpush.msra.mxu0 %v211
    %3116 = vmatpush.msra.mxu0 %v203
    %3117 = vmatpush.msra.mxu0 %v195
    %3118 = vmatpush.msra.mxu0 %v187
    %3119 = vmatpush.msra.mxu0 %v179
    %3120 = vmatpush.msra.mxu0 %v171
    %3121 = vmatmul.f32.gmra.mxu0 %v3075
    %v3122 = vpop.f32.mrf.mxu0
    %v3123 = vadd.f32 %v3103, %v3122
    %3124 = vdwg.mxu0
    %3125 = vmatpush.msra.mxu0 %v164
    %3126 = vmatpush.msra.mxu0 %v156
    %3127 = vmatpush.msra.mxu0 %v148
    %3128 = vmatpush.msra.mxu0 %v140
    %3129 = vmatpush.msra.mxu0 %v132
    %3130 = vmatpush.msra.mxu0 %v124
    %3131 = vmatpush.msra.mxu0 %v116
    %3132 = vmatpush.msra.mxu0 %v108
    %3133 = vmatpush.msra.mxu0 %v100
    %3134 = vmatpush.msra.mxu0 %v92
    %3135 = vmatpush.msra.mxu0 %v84
    %3136 = vmatpush.msra.mxu0 %v76
    %3137 = vmatpush.msra.mxu0 %v68
    %3138 = vmatpush.msra.mxu0 %v60
    %3139 = vmatpush.msra.mxu0 %v52
    %3140 = vmatpush.msra.mxu0 %v44
    %3141 = vmatmul.f32.gmra.mxu0 %v3074
    %v3142 = vpop.f32.mrf.mxu0
    %v3143 = vadd.f32 0.0, %v3142
    %3144 = vdwg.mxu0
    %3145 = vmatpush.msra.mxu0 %v292
    %3146 = vmatpush.msra.mxu0 %v284
    %3147 = vmatpush.msra.mxu0 %v276
    %3148 = vmatpush.msra.mxu0 %v268
    %3149 = vmatpush.msra.mxu0 %v260
    %3150 = vmatpush.msra.mxu0 %v252
    %3151 = vmatpush.msra.mxu0 %v244
    %3152 = vmatpush.msra.mxu0 %v236
    %3153 = vmatpush.msra.mxu0 %v228
    %3154 = vmatpush.msra.mxu0 %v220
    %3155 = vmatpush.msra.mxu0 %v212
    %3156 = vmatpush.msra.mxu0 %v204
    %3157 = vmatpush.msra.mxu0 %v196
    %3158 = vmatpush.msra.mxu0 %v188
    %3159 = vmatpush.msra.mxu0 %v180
    %3160 = vmatpush.msra.mxu0 %v172
    %3161 = vmatmul.f32.gmra.mxu0 %v3075
    %v3162 = vpop.f32.mrf.mxu0
    %v3163 = vadd.f32 %v3143, %v3162
    %3164 = vdwg.mxu0
    %3165 = vmatpush.msra.mxu0 %v165
    %3166 = vmatpush.msra.mxu0 %v157
    %3167 = vmatpush.msra.mxu0 %v149
    %3168 = vmatpush.msra.mxu0 %v141
    %3169 = vmatpush.msra.mxu0 %v133
    %3170 = vmatpush.msra.mxu0 %v125
    %3171 = vmatpush.msra.mxu0 %v117
    %3172 = vmatpush.msra.mxu0 %v109
    %3173 = vmatpush.msra.mxu0 %v101
    %3174 = vmatpush.msra.mxu0 %v93
    %3175 = vmatpush.msra.mxu0 %v85
    %3176 = vmatpush.msra.mxu0 %v77
    %3177 = vmatpush.msra.mxu0 %v69
    %3178 = vmatpush.msra.mxu0 %v61
    %3179 = vmatpush.msra.mxu0 %v53
    %3180 = vmatpush.msra.mxu0 %v45
    %3181 = vmatmul.f32.gmra.mxu0 %v3074
    %v3182 = vpop.f32.mrf.mxu0
    %v3183 = vadd.f32 0.0, %v3182
    %3184 = vdwg.mxu0
    %3185 = vmatpush.msra.mxu0 %v293
    %3186 = vmatpush.msra.mxu0 %v285
    %3187 = vmatpush.msra.mxu0 %v277
    %3188 = vmatpush.msra.mxu0 %v269
    %3189 = vmatpush.msra.mxu0 %v261
    %3190 = vmatpush.msra.mxu0 %v253
    %3191 = vmatpush.msra.mxu0 %v245
    %3192 = vmatpush.msra.mxu0 %v237
    %3193 = vmatpush.msra.mxu0 %v229
    %3194 = vmatpush.msra.mxu0 %v221
    %3195 = vmatpush.msra.mxu0 %v213
    %3196 = vmatpush.msra.mxu0 %v205
    %3197 = vmatpush.msra.mxu0 %v197
    %3198 = vmatpush.msra.mxu0 %v189
    %3199 = vmatpush.msra.mxu0 %v181
    %3200 = vmatpush.msra.mxu0 %v173
    %3201 = vmatmul.f32.gmra.mxu0 %v3075
    %v3202 = vpop.f32.mrf.mxu0
    %v3203 = vadd.f32 %v3183, %v3202
    %3204 = vdwg.mxu0
    %3205 = vmatpush.msra.mxu0 %v166
    %3206 = vmatpush.msra.mxu0 %v158
    %3207 = vmatpush.msra.mxu0 %v150
    %3208 = vmatpush.msra.mxu0 %v142
    %3209 = vmatpush.msra.mxu0 %v134
    %3210 = vmatpush.msra.mxu0 %v126
    %3211 = vmatpush.msra.mxu0 %v118
    %3212 = vmatpush.msra.mxu0 %v110
    %3213 = vmatpush.msra.mxu0 %v102
    %3214 = vmatpush.msra.mxu0 %v94
    %3215 = vmatpush.msra.mxu0 %v86
    %3216 = vmatpush.msra.mxu0 %v78
    %3217 = vmatpush.msra.mxu0 %v70
    %3218 = vmatpush.msra.mxu0 %v62
    %3219 = vmatpush.msra.mxu0 %v54
    %3220 = vmatpush.msra.mxu0 %v46
    %3221 = vmatmul.f32.gmra.mxu0 %v3074
    %v3222 = vpop.f32.mrf.mxu0
    %v3223 = vadd.f32 0.0, %v3222
    %3224 = vdwg.mxu0
    %3225 = vmatpush.msra.mxu0 %v294
    %3226 = vmatpush.msra.mxu0 %v286
    %3227 = vmatpush.msra.mxu0 %v278
    %3228 = vmatpush.msra.mxu0 %v270
    %3229 = vmatpush.msra.mxu0 %v262
    %3230 = vmatpush.msra.mxu0 %v254
    %3231 = vmatpush.msra.mxu0 %v246
    %3232 = vmatpush.msra.mxu0 %v238
    %3233 = vmatpush.msra.mxu0 %v230
    %3234 = vmatpush.msra.mxu0 %v222
    %3235 = vmatpush.msra.mxu0 %v214
    %3236 = vmatpush.msra.mxu0 %v206
    %3237 = vmatpush.msra.mxu0 %v198
    %3238 = vmatpush.msra.mxu0 %v190
    %3239 = vmatpush.msra.mxu0 %v182
    %3240 = vmatpush.msra.mxu0 %v174
    %3241 = vmatmul.f32.gmra.mxu0 %v3075
    %v3242 = vpop.f32.mrf.mxu0
    %v3243 = vadd.f32 %v3223, %v3242
    %3244 = vdwg.mxu0
    %3245 = vmatpush.msra.mxu0 %v167
    %3246 = vmatpush.msra.mxu0 %v159
    %3247 = vmatpush.msra.mxu0 %v151
    %3248 = vmatpush.msra.mxu0 %v143
    %3249 = vmatpush.msra.mxu0 %v135
    %3250 = vmatpush.msra.mxu0 %v127
    %3251 = vmatpush.msra.mxu0 %v119
    %3252 = vmatpush.msra.mxu0 %v111
    %3253 = vmatpush.msra.mxu0 %v103
    %3254 = vmatpush.msra.mxu0 %v95
    %3255 = vmatpush.msra.mxu0 %v87
    %3256 = vmatpush.msra.mxu0 %v79
    %3257 = vmatpush.msra.mxu0 %v71
    %3258 = vmatpush.msra.mxu0 %v63
    %3259 = vmatpush.msra.mxu0 %v55
    %3260 = vmatpush.msra.mxu0 %v47
    %3261 = vmatmul.f32.gmra.mxu0 %v3074
    %v3262 = vpop.f32.mrf.mxu0
    %v3263 = vadd.f32 0.0, %v3262
    %3264 = vdwg.mxu0
    %3265 = vmatpush.msra.mxu0 %v295
    %3266 = vmatpush.msra.mxu0 %v287
    %3267 = vmatpush.msra.mxu0 %v279
    %3268 = vmatpush.msra.mxu0 %v271
    %3269 = vmatpush.msra.mxu0 %v263
    %3270 = vmatpush.msra.mxu0 %v255
    %3271 = vmatpush.msra.mxu0 %v247
    %3272 = vmatpush.msra.mxu0 %v239
    %3273 = vmatpush.msra.mxu0 %v231
    %3274 = vmatpush.msra.mxu0 %v223
    %3275 = vmatpush.msra.mxu0 %v215
    %3276 = vmatpush.msra.mxu0 %v207
    %3277 = vmatpush.msra.mxu0 %v199
    %3278 = vmatpush.msra.mxu0 %v191
    %3279 = vmatpush.msra.mxu0 %v183
    %3280 = vmatpush.msra.mxu0 %v175
    %3281 = vmatmul.f32.gmra.mxu0 %v3075
    %v3282 = vpop.f32.mrf.mxu0
    %v3283 = vadd.f32 %v3263, %v3282
    %3284 = vdwg.mxu0
    %3285 = vmatpush.msra.mxu0 %v168
    %3286 = vmatpush.msra.mxu0 %v160
    %3287 = vmatpush.msra.mxu0 %v152
    %3288 = vmatpush.msra.mxu0 %v144
    %3289 = vmatpush.msra.mxu0 %v136
    %3290 = vmatpush.msra.mxu0 %v128
    %3291 = vmatpush.msra.mxu0 %v120
    %3292 = vmatpush.msra.mxu0 %v112
    %3293 = vmatpush.msra.mxu0 %v104
    %3294 = vmatpush.msra.mxu0 %v96
    %3295 = vmatpush.msra.mxu0 %v88
    %3296 = vmatpush.msra.mxu0 %v80
    %3297 = vmatpush.msra.mxu0 %v72
    %3298 = vmatpush.msra.mxu0 %v64
    %3299 = vmatpush.msra.mxu0 %v56
    %3300 = vmatpush.msra.mxu0 %v48
    %3301 = vmatmul.f32.gmra.mxu0 %v3074
    %v3302 = vpop.f32.mrf.mxu0
    %v3303 = vadd.f32 0.0, %v3302
    %3304 = vdwg.mxu0
    %3305 = vmatpush.msra.mxu0 %v296
    %3306 = vmatpush.msra.mxu0 %v288
    %3307 = vmatpush.msra.mxu0 %v280
    %3308 = vmatpush.msra.mxu0 %v272
    %3309 = vmatpush.msra.mxu0 %v264
    %3310 = vmatpush.msra.mxu0 %v256
    %3311 = vmatpush.msra.mxu0 %v248
    %3312 = vmatpush.msra.mxu0 %v240
    %3313 = vmatpush.msra.mxu0 %v232
    %3314 = vmatpush.msra.mxu0 %v224
    %3315 = vmatpush.msra.mxu0 %v216
    %3316 = vmatpush.msra.mxu0 %v208
    %3317 = vmatpush.msra.mxu0 %v200
    %3318 = vmatpush.msra.mxu0 %v192
    %3319 = vmatpush.msra.mxu0 %v184
    %3320 = vmatpush.msra.mxu0 %v176
    %3321 = vmatmul.f32.gmra.mxu0 %v3075
    %v3322 = vpop.f32.mrf.mxu0
    %v3323 = vadd.f32 %v3303, %v3322
    %3324 = vdwg.mxu0
    %3325 = vmatpush.msra.mxu0 %v169
    %3326 = vmatpush.msra.mxu0 %v161
    %3327 = vmatpush.msra.mxu0 %v153
    %3328 = vmatpush.msra.mxu0 %v145
    %3329 = vmatpush.msra.mxu0 %v137
    %3330 = vmatpush.msra.mxu0 %v129
    %3331 = vmatpush.msra.mxu0 %v121
    %3332 = vmatpush.msra.mxu0 %v113
    %3333 = vmatpush.msra.mxu0 %v105
    %3334 = vmatpush.msra.mxu0 %v97
    %3335 = vmatpush.msra.mxu0 %v89
    %3336 = vmatpush.msra.mxu0 %v81
    %3337 = vmatpush.msra.mxu0 %v73
    %3338 = vmatpush.msra.mxu0 %v65
    %3339 = vmatpush.msra.mxu0 %v57
    %3340 = vmatpush.msra.mxu0 %v49
    %3341 = vmatmul.f32.gmra.mxu0 %v3074
    %v3342 = vpop.f32.mrf.mxu0
    %v3343 = vadd.f32 0.0, %v3342
    %3344 = vdwg.mxu0
    %3345 = vmatpush.msra.mxu0 %v297
    %3346 = vmatpush.msra.mxu0 %v289
    %3347 = vmatpush.msra.mxu0 %v281
    %3348 = vmatpush.msra.mxu0 %v273
    %3349 = vmatpush.msra.mxu0 %v265
    %3350 = vmatpush.msra.mxu0 %v257
    %3351 = vmatpush.msra.mxu0 %v249
    %3352 = vmatpush.msra.mxu0 %v241
    %3353 = vmatpush.msra.mxu0 %v233
    %3354 = vmatpush.msra.mxu0 %v225
    %3355 = vmatpush.msra.mxu0 %v217
    %3356 = vmatpush.msra.mxu0 %v209
    %3357 = vmatpush.msra.mxu0 %v201
    %3358 = vmatpush.msra.mxu0 %v193
    %3359 = vmatpush.msra.mxu0 %v185
    %3360 = vmatpush.msra.mxu0 %v177
    %3361 = vmatmul.f32.gmra.mxu0 %v3075
    %v3362 = vpop.f32.mrf.mxu0
    %v3363 = vadd.f32 %v3343, %v3362
    %3364 = vdwg.mxu0
    %3365 = vmatpush.msra.mxu0 %v170
    %3366 = vmatpush.msra.mxu0 %v162
    %3367 = vmatpush.msra.mxu0 %v154
    %3368 = vmatpush.msra.mxu0 %v146
    %3369 = vmatpush.msra.mxu0 %v138
    %3370 = vmatpush.msra.mxu0 %v130
    %3371 = vmatpush.msra.mxu0 %v122
    %3372 = vmatpush.msra.mxu0 %v114
    %3373 = vmatpush.msra.mxu0 %v106
    %3374 = vmatpush.msra.mxu0 %v98
    %3375 = vmatpush.msra.mxu0 %v90
    %3376 = vmatpush.msra.mxu0 %v82
    %3377 = vmatpush.msra.mxu0 %v74
    %3378 = vmatpush.msra.mxu0 %v66
    %3379 = vmatpush.msra.mxu0 %v58
    %3380 = vmatpush.msra.mxu0 %v50
    %3381 = vmatmul.f32.gmra.mxu0 %v3074
    %v3382 = vpop.f32.mrf.mxu0
    %v3383 = vadd.f32 0.0, %v3382
    %3384 = vdwg.mxu0
    %3385 = vmatpush.msra.mxu0 %v298
    %3386 = vmatpush.msra.mxu0 %v290
    %3387 = vmatpush.msra.mxu0 %v282
    %3388 = vmatpush.msra.mxu0 %v274
    %3389 = vmatpush.msra.mxu0 %v266
    %3390 = vmatpush.msra.mxu0 %v258
    %3391 = vmatpush.msra.mxu0 %v250
    %3392 = vmatpush.msra.mxu0 %v242
    %3393 = vmatpush.msra.mxu0 %v234
    %3394 = vmatpush.msra.mxu0 %v226
    %3395 = vmatpush.msra.mxu0 %v218
    %3396 = vmatpush.msra.mxu0 %v210
    %3397 = vmatpush.msra.mxu0 %v202
    %3398 = vmatpush.msra.mxu0 %v194
    %3399 = vmatpush.msra.mxu0 %v186
    %3400 = vmatpush.msra.mxu0 %v178
    %3401 = vmatmul.f32.gmra.mxu0 %v3075
    %v3402 = vpop.f32.mrf.mxu0
    %v3403 = vadd.f32 %v3383, %v3402
    %3404 = vdwg.mxu0
    %v3405 = vadd.f32 %v3077, %v3123
    %v3406 = vadd.f32 %v3078, %v3163
    %v3407 = vadd.f32 %v3079, %v3203
    %v3408 = vadd.f32 %v3080, %v3243
    %v3409 = vadd.f32 %v3081, %v3283
    %v3410 = vadd.f32 %v3082, %v3323
    %v3411 = vadd.f32 %v3083, %v3363
    %v3412 = vadd.f32 %v3084, %v3403
    %v3413 = vxor.u32 %v3405, 2147483648
    %v3414 = vxor.u32 %v3406, 2147483648
    %v3415 = vmul.f32 %v3413, 1.442695
    %v3416 = vpow.pop %v3415
    %v3417 = vmul.f32 %v3414, 1.442695
    %v3418 = vpow.pop %v3417
    %v3419 = vadd.f32 %v3416, 1.0
    %v3420 = vadd.f32 %v3418, 1.0
    %v3421 = vrcp.pop %v3419
    %v3422 = vmul.f32 %v3419, %v3421
    %v3423 = vsub.f32 1.0, %v3422
    %v3424 = vmul.f32 %v3421, %v3423
    %v3425 = vadd.f32 %v3421, %v3424
    %vm3426 = vweird.f32 %v3419
    %vm3427 = vweird.f32 %v3421
    %vm3428 = vmor %vm3426, %vm3427
    %v3429 = vsel %vm3428, %v3421, %v3425
    %v3430 = vand.u32 2147483647, %v3419
    %vm3431 = vcmp.eq.f32.partialorder %v3430, 8.507059e+37
    %v3432 = vand.u32 %v3419, 2147483648
    %v3433 = vor.u32 1.1754944e-38, %v3432
    %v3434 = vsel %vm3431, %v3433, %v3429
    %v3435 = vmul.f32 1.0, %v3434
    %v3436 = vrcp.pop %v3420
    %v3437 = vmul.f32 %v3420, %v3436
    %v3438 = vsub.f32 1.0, %v3437
    %v3439 = vmul.f32 %v3436, %v3438
    %v3440 = vadd.f32 %v3436, %v3439
    %vm3441 = vweird.f32 %v3420
    %vm3442 = vweird.f32 %v3436
    %vm3443 = vmor %vm3441, %vm3442
    %v3444 = vsel %vm3443, %v3436, %v3440
    %v3445 = vand.u32 2147483647, %v3420
    %vm3446 = vcmp.eq.f32.partialorder %v3445, 8.507059e+37
    %v3447 = vand.u32 %v3420, 2147483648
    %v3448 = vor.u32 1.1754944e-38, %v3447
    %v3449 = vsel %vm3446, %v3448, %v3444
    %v3450 = vmul.f32 1.0, %v3449
    %v3451 = vxor.u32 %v3407, 2147483648
    %v3452 = vxor.u32 %v3408, 2147483648
    %v3453 = vmul.f32 %v3451, 1.442695
    %v3454 = vpow.pop %v3453
    %v3455 = vmul.f32 %v3452, 1.442695
    %v3456 = vpow.pop %v3455
    %v3457 = vadd.f32 %v3454, 1.0
    %v3458 = vadd.f32 %v3456, 1.0
    %v3459 = vrcp.pop %v3457
    %v3460 = vmul.f32 %v3457, %v3459
    %v3461 = vsub.f32 1.0, %v3460
    %v3462 = vmul.f32 %v3459, %v3461
    %v3463 = vadd.f32 %v3459, %v3462
    %vm3464 = vweird.f32 %v3457
    %vm3465 = vweird.f32 %v3459
    %vm3466 = vmor %vm3464, %vm3465
    %v3467 = vsel %vm3466, %v3459, %v3463
    %v3468 = vand.u32 2147483647, %v3457
    %vm3469 = vcmp.eq.f32.partialorder %v3468, 8.507059e+37
    %v3470 = vand.u32 %v3457, 2147483648
    %v3471 = vor.u32 1.1754944e-38, %v3470
    %v3472 = vsel %vm3469, %v3471, %v3467
    %v3473 = vmul.f32 1.0, %v3472
    %v3474 = vrcp.pop %v3458
    %v3475 = vmul.f32 %v3458, %v3474
    %v3476 = vsub.f32 1.0, %v3475
    %v3477 = vmul.f32 %v3474, %v3476
    %v3478 = vadd.f32 %v3474, %v3477
    %vm3479 = vweird.f32 %v3458
    %vm3480 = vweird.f32 %v3474
    %vm3481 = vmor %vm3479, %vm3480
    %v3482 = vsel %vm3481, %v3474, %v3478
    %v3483 = vand.u32 2147483647, %v3458
    %vm3484 = vcmp.eq.f32.partialorder %v3483, 8.507059e+37
    %v3485 = vand.u32 %v3458, 2147483648
    %v3486 = vor.u32 1.1754944e-38, %v3485
    %v3487 = vsel %vm3484, %v3486, %v3482
    %v3488 = vmul.f32 1.0, %v3487
    %v3489 = vtanh.pop %v3409
    %v3490 = vtanh.pop %v3410
    %v3491 = vxor.u32 %v3411, 2147483648
    %v3492 = vxor.u32 %v3412, 2147483648
    %v3493 = vmul.f32 %v3491, 1.442695
    %v3494 = vpow.pop %v3493
    %v3495 = vmul.f32 %v3492, 1.442695
    %v3496 = vpow.pop %v3495
    %v3497 = vadd.f32 %v3494, 1.0
    %v3498 = vadd.f32 %v3496, 1.0
    %v3499 = vrcp.pop %v3497
    %v3500 = vmul.f32 %v3497, %v3499
    %v3501 = vsub.f32 1.0, %v3500
    %v3502 = vmul.f32 %v3499, %v3501
    %v3503 = vadd.f32 %v3499, %v3502
    %vm3504 = vweird.f32 %v3497
    %vm3505 = vweird.f32 %v3499
    %vm3506 = vmor %vm3504, %vm3505
    %v3507 = vsel %vm3506, %v3499, %v3503
    %v3508 = vand.u32 2147483647, %v3497
    %vm3509 = vcmp.eq.f32.partialorder %v3508, 8.507059e+37
    %v3510 = vand.u32 %v3497, 2147483648
    %v3511 = vor.u32 1.1754944e-38, %v3510
    %v3512 = vsel %vm3509, %v3511, %v3507
    %v3513 = vmul.f32 1.0, %v3512
    %v3514 = vrcp.pop %v3498
    %v3515 = vmul.f32 %v3498, %v3514
    %v3516 = vsub.f32 1.0, %v3515
    %v3517 = vmul.f32 %v3514, %v3516
    %v3518 = vadd.f32 %v3514, %v3517
    %vm3519 = vweird.f32 %v3498
    %vm3520 = vweird.f32 %v3514
    %vm3521 = vmor %vm3519, %vm3520
    %v3522 = vsel %vm3521, %v3514, %v3518
    %v3523 = vand.u32 2147483647, %v3498
    %vm3524 = vcmp.eq.f32.partialorder %v3523, 8.507059e+37
    %v3525 = vand.u32 %v3498, 2147483648
    %v3526 = vor.u32 1.1754944e-38, %v3525
    %v3527 = vsel %vm3524, %v3526, %v3522
    %v3528 = vmul.f32 1.0, %v3527
    %v3529 = vmul.f32 %v3473, %v3070
    %v3530 = vmul.f32 %v3488, %v3071
    %v3531 = vmul.f32 %v3435, %v3489
    %v3532 = vmul.f32 %v3450, %v3490
    %v3533 = vadd.f32 %v3529, %v3531
    %v3534 = vadd.f32 %v3530, %v3532
    %v3535 = vtanh.pop %v3533
    %v3536 = vtanh.pop %v3534
    %v3537 = vmul.f32 %v3513, %v3535
    %v3538 = vmul.f32 %v3528, %v3536
    %s3539 = scalar_lea.vmem %s0, 448
    %v3540 = vld [vmem:[%s3539] sm:$0xff]
    %v3541 = vld [vmem:[%s3539 + $0x8] sm:$0xff]
    %v3542 = vld [vmem:[%s3539 + $0x10] sm:$0xff]
    %v3543 = vld [vmem:[%s3539 + $0x18] sm:$0xff]
    %v3544 = vld [vmem:[%s3539 + $0x20] sm:$0xff]
    %v3545 = vld [vmem:[%s3539 + $0x28] sm:$0xff]
    %v3546 = vld [vmem:[%s3539 + $0x30] sm:$0xff]
    %v3547 = vld [vmem:[%s3539 + $0x38] sm:$0xff]
    %3548 = vmatpush.msra.mxu0 %v163
    %3549 = vmatpush.msra.mxu0 %v155
    %3550 = vmatpush.msra.mxu0 %v147
    %3551 = vmatpush.msra.mxu0 %v139
    %3552 = vmatpush.msra.mxu0 %v131
    %3553 = vmatpush.msra.mxu0 %v123
    %3554 = vmatpush.msra.mxu0 %v115
    %3555 = vmatpush.msra.mxu0 %v107
    %3556 = vmatpush.msra.mxu0 %v99
    %3557 = vmatpush.msra.mxu0 %v91
    %3558 = vmatpush.msra.mxu0 %v83
    %3559 = vmatpush.msra.mxu0 %v75
    %3560 = vmatpush.msra.mxu0 %v67
    %3561 = vmatpush.msra.mxu0 %v59
    %3562 = vmatpush.msra.mxu0 %v51
    %3563 = vmatpush.msra.mxu0 %v43
    %3564 = vmatmul.f32.gmra.mxu0 %v3537
    %v3565 = vpop.f32.mrf.mxu0
    %v3566 = vadd.f32 0.0, %v3565
    %3567 = vdwg.mxu0
    %3568 = vmatpush.msra.mxu0 %v291
    %3569 = vmatpush.msra.mxu0 %v283
    %3570 = vmatpush.msra.mxu0 %v275
    %3571 = vmatpush.msra.mxu0 %v267
    %3572 = vmatpush.msra.mxu0 %v259
    %3573 = vmatpush.msra.mxu0 %v251
    %3574 = vmatpush.msra.mxu0 %v243
    %3575 = vmatpush.msra.mxu0 %v235
    %3576 = vmatpush.msra.mxu0 %v227
    %3577 = vmatpush.msra.mxu0 %v219
    %3578 = vmatpush.msra.mxu0 %v211
    %3579 = vmatpush.msra.mxu0 %v203
    %3580 = vmatpush.msra.mxu0 %v195
    %3581 = vmatpush.msra.mxu0 %v187
    %3582 = vmatpush.msra.mxu0 %v179
    %3583 = vmatpush.msra.mxu0 %v171
    %3584 = vmatmul.f32.gmra.mxu0 %v3538
    %v3585 = vpop.f32.mrf.mxu0
    %v3586 = vadd.f32 %v3566, %v3585
    %3587 = vdwg.mxu0
    %3588 = vmatpush.msra.mxu0 %v164
    %3589 = vmatpush.msra.mxu0 %v156
    %3590 = vmatpush.msra.mxu0 %v148
    %3591 = vmatpush.msra.mxu0 %v140
    %3592 = vmatpush.msra.mxu0 %v132
    %3593 = vmatpush.msra.mxu0 %v124
    %3594 = vmatpush.msra.mxu0 %v116
    %3595 = vmatpush.msra.mxu0 %v108
    %3596 = vmatpush.msra.mxu0 %v100
    %3597 = vmatpush.msra.mxu0 %v92
    %3598 = vmatpush.msra.mxu0 %v84
    %3599 = vmatpush.msra.mxu0 %v76
    %3600 = vmatpush.msra.mxu0 %v68
    %3601 = vmatpush.msra.mxu0 %v60
    %3602 = vmatpush.msra.mxu0 %v52
    %3603 = vmatpush.msra.mxu0 %v44
    %3604 = vmatmul.f32.gmra.mxu0 %v3537
    %v3605 = vpop.f32.mrf.mxu0
    %v3606 = vadd.f32 0.0, %v3605
    %3607 = vdwg.mxu0
    %3608 = vmatpush.msra.mxu0 %v292
    %3609 = vmatpush.msra.mxu0 %v284
    %3610 = vmatpush.msra.mxu0 %v276
    %3611 = vmatpush.msra.mxu0 %v268
    %3612 = vmatpush.msra.mxu0 %v260
    %3613 = vmatpush.msra.mxu0 %v252
    %3614 = vmatpush.msra.mxu0 %v244
    %3615 = vmatpush.msra.mxu0 %v236
    %3616 = vmatpush.msra.mxu0 %v228
    %3617 = vmatpush.msra.mxu0 %v220
    %3618 = vmatpush.msra.mxu0 %v212
    %3619 = vmatpush.msra.mxu0 %v204
    %3620 = vmatpush.msra.mxu0 %v196
    %3621 = vmatpush.msra.mxu0 %v188
    %3622 = vmatpush.msra.mxu0 %v180
    %3623 = vmatpush.msra.mxu0 %v172
    %3624 = vmatmul.f32.gmra.mxu0 %v3538
    %v3625 = vpop.f32.mrf.mxu0
    %v3626 = vadd.f32 %v3606, %v3625
    %3627 = vdwg.mxu0
    %3628 = vmatpush.msra.mxu0 %v165
    %3629 = vmatpush.msra.mxu0 %v157
    %3630 = vmatpush.msra.mxu0 %v149
    %3631 = vmatpush.msra.mxu0 %v141
    %3632 = vmatpush.msra.mxu0 %v133
    %3633 = vmatpush.msra.mxu0 %v125
    %3634 = vmatpush.msra.mxu0 %v117
    %3635 = vmatpush.msra.mxu0 %v109
    %3636 = vmatpush.msra.mxu0 %v101
    %3637 = vmatpush.msra.mxu0 %v93
    %3638 = vmatpush.msra.mxu0 %v85
    %3639 = vmatpush.msra.mxu0 %v77
    %3640 = vmatpush.msra.mxu0 %v69
    %3641 = vmatpush.msra.mxu0 %v61
    %3642 = vmatpush.msra.mxu0 %v53
    %3643 = vmatpush.msra.mxu0 %v45
    %3644 = vmatmul.f32.gmra.mxu0 %v3537
    %v3645 = vpop.f32.mrf.mxu0
    %v3646 = vadd.f32 0.0, %v3645
    %3647 = vdwg.mxu0
    %3648 = vmatpush.msra.mxu0 %v293
    %3649 = vmatpush.msra.mxu0 %v285
    %3650 = vmatpush.msra.mxu0 %v277
    %3651 = vmatpush.msra.mxu0 %v269
    %3652 = vmatpush.msra.mxu0 %v261
    %3653 = vmatpush.msra.mxu0 %v253
    %3654 = vmatpush.msra.mxu0 %v245
    %3655 = vmatpush.msra.mxu0 %v237
    %3656 = vmatpush.msra.mxu0 %v229
    %3657 = vmatpush.msra.mxu0 %v221
    %3658 = vmatpush.msra.mxu0 %v213
    %3659 = vmatpush.msra.mxu0 %v205
    %3660 = vmatpush.msra.mxu0 %v197
    %3661 = vmatpush.msra.mxu0 %v189
    %3662 = vmatpush.msra.mxu0 %v181
    %3663 = vmatpush.msra.mxu0 %v173
    %3664 = vmatmul.f32.gmra.mxu0 %v3538
    %v3665 = vpop.f32.mrf.mxu0
    %v3666 = vadd.f32 %v3646, %v3665
    %3667 = vdwg.mxu0
    %3668 = vmatpush.msra.mxu0 %v166
    %3669 = vmatpush.msra.mxu0 %v158
    %3670 = vmatpush.msra.mxu0 %v150
    %3671 = vmatpush.msra.mxu0 %v142
    %3672 = vmatpush.msra.mxu0 %v134
    %3673 = vmatpush.msra.mxu0 %v126
    %3674 = vmatpush.msra.mxu0 %v118
    %3675 = vmatpush.msra.mxu0 %v110
    %3676 = vmatpush.msra.mxu0 %v102
    %3677 = vmatpush.msra.mxu0 %v94
    %3678 = vmatpush.msra.mxu0 %v86
    %3679 = vmatpush.msra.mxu0 %v78
    %3680 = vmatpush.msra.mxu0 %v70
    %3681 = vmatpush.msra.mxu0 %v62
    %3682 = vmatpush.msra.mxu0 %v54
    %3683 = vmatpush.msra.mxu0 %v46
    %3684 = vmatmul.f32.gmra.mxu0 %v3537
    %v3685 = vpop.f32.mrf.mxu0
    %v3686 = vadd.f32 0.0, %v3685
    %3687 = vdwg.mxu0
    %3688 = vmatpush.msra.mxu0 %v294
    %3689 = vmatpush.msra.mxu0 %v286
    %3690 = vmatpush.msra.mxu0 %v278
    %3691 = vmatpush.msra.mxu0 %v270
    %3692 = vmatpush.msra.mxu0 %v262
    %3693 = vmatpush.msra.mxu0 %v254
    %3694 = vmatpush.msra.mxu0 %v246
    %3695 = vmatpush.msra.mxu0 %v238
    %3696 = vmatpush.msra.mxu0 %v230
    %3697 = vmatpush.msra.mxu0 %v222
    %3698 = vmatpush.msra.mxu0 %v214
    %3699 = vmatpush.msra.mxu0 %v206
    %3700 = vmatpush.msra.mxu0 %v198
    %3701 = vmatpush.msra.mxu0 %v190
    %3702 = vmatpush.msra.mxu0 %v182
    %3703 = vmatpush.msra.mxu0 %v174
    %3704 = vmatmul.f32.gmra.mxu0 %v3538
    %v3705 = vpop.f32.mrf.mxu0
    %v3706 = vadd.f32 %v3686, %v3705
    %3707 = vdwg.mxu0
    %3708 = vmatpush.msra.mxu0 %v167
    %3709 = vmatpush.msra.mxu0 %v159
    %3710 = vmatpush.msra.mxu0 %v151
    %3711 = vmatpush.msra.mxu0 %v143
    %3712 = vmatpush.msra.mxu0 %v135
    %3713 = vmatpush.msra.mxu0 %v127
    %3714 = vmatpush.msra.mxu0 %v119
    %3715 = vmatpush.msra.mxu0 %v111
    %3716 = vmatpush.msra.mxu0 %v103
    %3717 = vmatpush.msra.mxu0 %v95
    %3718 = vmatpush.msra.mxu0 %v87
    %3719 = vmatpush.msra.mxu0 %v79
    %3720 = vmatpush.msra.mxu0 %v71
    %3721 = vmatpush.msra.mxu0 %v63
    %3722 = vmatpush.msra.mxu0 %v55
    %3723 = vmatpush.msra.mxu0 %v47
    %3724 = vmatmul.f32.gmra.mxu0 %v3537
    %v3725 = vpop.f32.mrf.mxu0
    %v3726 = vadd.f32 0.0, %v3725
    %3727 = vdwg.mxu0
    %3728 = vmatpush.msra.mxu0 %v295
    %3729 = vmatpush.msra.mxu0 %v287
    %3730 = vmatpush.msra.mxu0 %v279
    %3731 = vmatpush.msra.mxu0 %v271
    %3732 = vmatpush.msra.mxu0 %v263
    %3733 = vmatpush.msra.mxu0 %v255
    %3734 = vmatpush.msra.mxu0 %v247
    %3735 = vmatpush.msra.mxu0 %v239
    %3736 = vmatpush.msra.mxu0 %v231
    %3737 = vmatpush.msra.mxu0 %v223
    %3738 = vmatpush.msra.mxu0 %v215
    %3739 = vmatpush.msra.mxu0 %v207
    %3740 = vmatpush.msra.mxu0 %v199
    %3741 = vmatpush.msra.mxu0 %v191
    %3742 = vmatpush.msra.mxu0 %v183
    %3743 = vmatpush.msra.mxu0 %v175
    %3744 = vmatmul.f32.gmra.mxu0 %v3538
    %v3745 = vpop.f32.mrf.mxu0
    %v3746 = vadd.f32 %v3726, %v3745
    %3747 = vdwg.mxu0
    %3748 = vmatpush.msra.mxu0 %v168
    %3749 = vmatpush.msra.mxu0 %v160
    %3750 = vmatpush.msra.mxu0 %v152
    %3751 = vmatpush.msra.mxu0 %v144
    %3752 = vmatpush.msra.mxu0 %v136
    %3753 = vmatpush.msra.mxu0 %v128
    %3754 = vmatpush.msra.mxu0 %v120
    %3755 = vmatpush.msra.mxu0 %v112
    %3756 = vmatpush.msra.mxu0 %v104
    %3757 = vmatpush.msra.mxu0 %v96
    %3758 = vmatpush.msra.mxu0 %v88
    %3759 = vmatpush.msra.mxu0 %v80
    %3760 = vmatpush.msra.mxu0 %v72
    %3761 = vmatpush.msra.mxu0 %v64
    %3762 = vmatpush.msra.mxu0 %v56
    %3763 = vmatpush.msra.mxu0 %v48
    %3764 = vmatmul.f32.gmra.mxu0 %v3537
    %v3765 = vpop.f32.mrf.mxu0
    %v3766 = vadd.f32 0.0, %v3765
    %3767 = vdwg.mxu0
    %3768 = vmatpush.msra.mxu0 %v296
    %3769 = vmatpush.msra.mxu0 %v288
    %3770 = vmatpush.msra.mxu0 %v280
    %3771 = vmatpush.msra.mxu0 %v272
    %3772 = vmatpush.msra.mxu0 %v264
    %3773 = vmatpush.msra.mxu0 %v256
    %3774 = vmatpush.msra.mxu0 %v248
    %3775 = vmatpush.msra.mxu0 %v240
    %3776 = vmatpush.msra.mxu0 %v232
    %3777 = vmatpush.msra.mxu0 %v224
    %3778 = vmatpush.msra.mxu0 %v216
    %3779 = vmatpush.msra.mxu0 %v208
    %3780 = vmatpush.msra.mxu0 %v200
    %3781 = vmatpush.msra.mxu0 %v192
    %3782 = vmatpush.msra.mxu0 %v184
    %3783 = vmatpush.msra.mxu0 %v176
    %3784 = vmatmul.f32.gmra.mxu0 %v3538
    %v3785 = vpop.f32.mrf.mxu0
    %v3786 = vadd.f32 %v3766, %v3785
    %3787 = vdwg.mxu0
    %3788 = vmatpush.msra.mxu0 %v169
    %3789 = vmatpush.msra.mxu0 %v161
    %3790 = vmatpush.msra.mxu0 %v153
    %3791 = vmatpush.msra.mxu0 %v145
    %3792 = vmatpush.msra.mxu0 %v137
    %3793 = vmatpush.msra.mxu0 %v129
    %3794 = vmatpush.msra.mxu0 %v121
    %3795 = vmatpush.msra.mxu0 %v113
    %3796 = vmatpush.msra.mxu0 %v105
    %3797 = vmatpush.msra.mxu0 %v97
    %3798 = vmatpush.msra.mxu0 %v89
    %3799 = vmatpush.msra.mxu0 %v81
    %3800 = vmatpush.msra.mxu0 %v73
    %3801 = vmatpush.msra.mxu0 %v65
    %3802 = vmatpush.msra.mxu0 %v57
    %3803 = vmatpush.msra.mxu0 %v49
    %3804 = vmatmul.f32.gmra.mxu0 %v3537
    %v3805 = vpop.f32.mrf.mxu0
    %v3806 = vadd.f32 0.0, %v3805
    %3807 = vdwg.mxu0
    %3808 = vmatpush.msra.mxu0 %v297
    %3809 = vmatpush.msra.mxu0 %v289
    %3810 = vmatpush.msra.mxu0 %v281
    %3811 = vmatpush.msra.mxu0 %v273
    %3812 = vmatpush.msra.mxu0 %v265
    %3813 = vmatpush.msra.mxu0 %v257
    %3814 = vmatpush.msra.mxu0 %v249
    %3815 = vmatpush.msra.mxu0 %v241
    %3816 = vmatpush.msra.mxu0 %v233
    %3817 = vmatpush.msra.mxu0 %v225
    %3818 = vmatpush.msra.mxu0 %v217
    %3819 = vmatpush.msra.mxu0 %v209
    %3820 = vmatpush.msra.mxu0 %v201
    %3821 = vmatpush.msra.mxu0 %v193
    %3822 = vmatpush.msra.mxu0 %v185
    %3823 = vmatpush.msra.mxu0 %v177
    %3824 = vmatmul.f32.gmra.mxu0 %v3538
    %v3825 = vpop.f32.mrf.mxu0
    %v3826 = vadd.f32 %v3806, %v3825
    %3827 = vdwg.mxu0
    %3828 = vmatpush.msra.mxu0 %v170
    %3829 = vmatpush.msra.mxu0 %v162
    %3830 = vmatpush.msra.mxu0 %v154
    %3831 = vmatpush.msra.mxu0 %v146
    %3832 = vmatpush.msra.mxu0 %v138
    %3833 = vmatpush.msra.mxu0 %v130
    %3834 = vmatpush.msra.mxu0 %v122
    %3835 = vmatpush.msra.mxu0 %v114
    %3836 = vmatpush.msra.mxu0 %v106
    %3837 = vmatpush.msra.mxu0 %v98
    %3838 = vmatpush.msra.mxu0 %v90
    %3839 = vmatpush.msra.mxu0 %v82
    %3840 = vmatpush.msra.mxu0 %v74
    %3841 = vmatpush.msra.mxu0 %v66
    %3842 = vmatpush.msra.mxu0 %v58
    %3843 = vmatpush.msra.mxu0 %v50
    %3844 = vmatmul.f32.gmra.mxu0 %v3537
    %v3845 = vpop.f32.mrf.mxu0
    %v3846 = vadd.f32 0.0, %v3845
    %3847 = vdwg.mxu0
    %3848 = vmatpush.msra.mxu0 %v298
    %3849 = vmatpush.msra.mxu0 %v290
    %3850 = vmatpush.msra.mxu0 %v282
    %3851 = vmatpush.msra.mxu0 %v274
    %3852 = vmatpush.msra.mxu0 %v266
    %3853 = vmatpush.msra.mxu0 %v258
    %3854 = vmatpush.msra.mxu0 %v250
    %3855 = vmatpush.msra.mxu0 %v242
    %3856 = vmatpush.msra.mxu0 %v234
    %3857 = vmatpush.msra.mxu0 %v226
    %3858 = vmatpush.msra.mxu0 %v218
    %3859 = vmatpush.msra.mxu0 %v210
    %3860 = vmatpush.msra.mxu0 %v202
    %3861 = vmatpush.msra.mxu0 %v194
    %3862 = vmatpush.msra.mxu0 %v186
    %3863 = vmatpush.msra.mxu0 %v178
    %3864 = vmatmul.f32.gmra.mxu0 %v3538
    %v3865 = vpop.f32.mrf.mxu0
    %v3866 = vadd.f32 %v3846, %v3865
    %3867 = vdwg.mxu0
    %v3868 = vadd.f32 %v3540, %v3586
    %v3869 = vadd.f32 %v3541, %v3626
    %v3870 = vadd.f32 %v3542, %v3666
    %v3871 = vadd.f32 %v3543, %v3706
    %v3872 = vadd.f32 %v3544, %v3746
    %v3873 = vadd.f32 %v3545, %v3786
    %v3874 = vadd.f32 %v3546, %v3826
    %v3875 = vadd.f32 %v3547, %v3866
    %v3876 = vxor.u32 %v3868, 2147483648
    %v3877 = vxor.u32 %v3869, 2147483648
    %v3878 = vmul.f32 %v3876, 1.442695
    %v3879 = vpow.pop %v3878
    %v3880 = vmul.f32 %v3877, 1.442695
    %v3881 = vpow.pop %v3880
    %v3882 = vadd.f32 %v3879, 1.0
    %v3883 = vadd.f32 %v3881, 1.0
    %v3884 = vrcp.pop %v3882
    %v3885 = vmul.f32 %v3882, %v3884
    %v3886 = vsub.f32 1.0, %v3885
    %v3887 = vmul.f32 %v3884, %v3886
    %v3888 = vadd.f32 %v3884, %v3887
    %vm3889 = vweird.f32 %v3882
    %vm3890 = vweird.f32 %v3884
    %vm3891 = vmor %vm3889, %vm3890
    %v3892 = vsel %vm3891, %v3884, %v3888
    %v3893 = vand.u32 2147483647, %v3882
    %vm3894 = vcmp.eq.f32.partialorder %v3893, 8.507059e+37
    %v3895 = vand.u32 %v3882, 2147483648
    %v3896 = vor.u32 1.1754944e-38, %v3895
    %v3897 = vsel %vm3894, %v3896, %v3892
    %v3898 = vmul.f32 1.0, %v3897
    %v3899 = vrcp.pop %v3883
    %v3900 = vmul.f32 %v3883, %v3899
    %v3901 = vsub.f32 1.0, %v3900
    %v3902 = vmul.f32 %v3899, %v3901
    %v3903 = vadd.f32 %v3899, %v3902
    %vm3904 = vweird.f32 %v3883
    %vm3905 = vweird.f32 %v3899
    %vm3906 = vmor %vm3904, %vm3905
    %v3907 = vsel %vm3906, %v3899, %v3903
    %v3908 = vand.u32 2147483647, %v3883
    %vm3909 = vcmp.eq.f32.partialorder %v3908, 8.507059e+37
    %v3910 = vand.u32 %v3883, 2147483648
    %v3911 = vor.u32 1.1754944e-38, %v3910
    %v3912 = vsel %vm3909, %v3911, %v3907
    %v3913 = vmul.f32 1.0, %v3912
    %v3914 = vxor.u32 %v3870, 2147483648
    %v3915 = vxor.u32 %v3871, 2147483648
    %v3916 = vmul.f32 %v3914, 1.442695
    %v3917 = vpow.pop %v3916
    %v3918 = vmul.f32 %v3915, 1.442695
    %v3919 = vpow.pop %v3918
    %v3920 = vadd.f32 %v3917, 1.0
    %v3921 = vadd.f32 %v3919, 1.0
    %v3922 = vrcp.pop %v3920
    %v3923 = vmul.f32 %v3920, %v3922
    %v3924 = vsub.f32 1.0, %v3923
    %v3925 = vmul.f32 %v3922, %v3924
    %v3926 = vadd.f32 %v3922, %v3925
    %vm3927 = vweird.f32 %v3920
    %vm3928 = vweird.f32 %v3922
    %vm3929 = vmor %vm3927, %vm3928
    %v3930 = vsel %vm3929, %v3922, %v3926
    %v3931 = vand.u32 2147483647, %v3920
    %vm3932 = vcmp.eq.f32.partialorder %v3931, 8.507059e+37
    %v3933 = vand.u32 %v3920, 2147483648
    %v3934 = vor.u32 1.1754944e-38, %v3933
    %v3935 = vsel %vm3932, %v3934, %v3930
    %v3936 = vmul.f32 1.0, %v3935
    %v3937 = vrcp.pop %v3921
    %v3938 = vmul.f32 %v3921, %v3937
    %v3939 = vsub.f32 1.0, %v3938
    %v3940 = vmul.f32 %v3937, %v3939
    %v3941 = vadd.f32 %v3937, %v3940
    %vm3942 = vweird.f32 %v3921
    %vm3943 = vweird.f32 %v3937
    %vm3944 = vmor %vm3942, %vm3943
    %v3945 = vsel %vm3944, %v3937, %v3941
    %v3946 = vand.u32 2147483647, %v3921
    %vm3947 = vcmp.eq.f32.partialorder %v3946, 8.507059e+37
    %v3948 = vand.u32 %v3921, 2147483648
    %v3949 = vor.u32 1.1754944e-38, %v3948
    %v3950 = vsel %vm3947, %v3949, %v3945
    %v3951 = vmul.f32 1.0, %v3950
    %v3952 = vtanh.pop %v3872
    %v3953 = vtanh.pop %v3873
    %v3954 = vxor.u32 %v3874, 2147483648
    %v3955 = vxor.u32 %v3875, 2147483648
    %v3956 = vmul.f32 %v3954, 1.442695
    %v3957 = vpow.pop %v3956
    %v3958 = vmul.f32 %v3955, 1.442695
    %v3959 = vpow.pop %v3958
    %v3960 = vadd.f32 %v3957, 1.0
    %v3961 = vadd.f32 %v3959, 1.0
    %v3962 = vrcp.pop %v3960
    %v3963 = vmul.f32 %v3960, %v3962
    %v3964 = vsub.f32 1.0, %v3963
    %v3965 = vmul.f32 %v3962, %v3964
    %v3966 = vadd.f32 %v3962, %v3965
    %vm3967 = vweird.f32 %v3960
    %vm3968 = vweird.f32 %v3962
    %vm3969 = vmor %vm3967, %vm3968
    %v3970 = vsel %vm3969, %v3962, %v3966
    %v3971 = vand.u32 2147483647, %v3960
    %vm3972 = vcmp.eq.f32.partialorder %v3971, 8.507059e+37
    %v3973 = vand.u32 %v3960, 2147483648
    %v3974 = vor.u32 1.1754944e-38, %v3973
    %v3975 = vsel %vm3972, %v3974, %v3970
    %v3976 = vmul.f32 1.0, %v3975
    %v3977 = vrcp.pop %v3961
    %v3978 = vmul.f32 %v3961, %v3977
    %v3979 = vsub.f32 1.0, %v3978
    %v3980 = vmul.f32 %v3977, %v3979
    %v3981 = vadd.f32 %v3977, %v3980
    %vm3982 = vweird.f32 %v3961
    %vm3983 = vweird.f32 %v3977
    %vm3984 = vmor %vm3982, %vm3983
    %v3985 = vsel %vm3984, %v3977, %v3981
    %v3986 = vand.u32 2147483647, %v3961
    %vm3987 = vcmp.eq.f32.partialorder %v3986, 8.507059e+37
    %v3988 = vand.u32 %v3961, 2147483648
    %v3989 = vor.u32 1.1754944e-38, %v3988
    %v3990 = vsel %vm3987, %v3989, %v3985
    %v3991 = vmul.f32 1.0, %v3990
    %v3992 = vmul.f32 %v3936, %v3533
    %v3993 = vmul.f32 %v3951, %v3534
    %v3994 = vmul.f32 %v3898, %v3952
    %v3995 = vmul.f32 %v3913, %v3953
    %v3996 = vadd.f32 %v3992, %v3994
    %v3997 = vadd.f32 %v3993, %v3995
    %v3998 = vtanh.pop %v3996
    %v3999 = vtanh.pop %v3997
    %v4000 = vmul.f32 %v3976, %v3998
    %v4001 = vmul.f32 %v3991, %v3999
    %v4002 = vld [vmem:[%s4] sm:$0xff]
    %v4003 = vld [vmem:[%s4 + $0x8] sm:$0xff]
    %v4004 = vld [vmem:[%s4 + $0x10] sm:$0xff]
    %v4005 = vld [vmem:[%s4 + $0x18] sm:$0xff]
    %v4006 = vld [vmem:[%s4 + $0x20] sm:$0xff]
    %v4007 = vld [vmem:[%s4 + $0x28] sm:$0xff]
    %v4008 = vld [vmem:[%s4 + $0x30] sm:$0xff]
    %v4009 = vld [vmem:[%s4 + $0x38] sm:$0xff]
    %v4010 = vld [vmem:[%s4 + $0x40] sm:$0xff]
    %v4011 = vld [vmem:[%s4 + $0x48] sm:$0xff]
    %v4012 = vld [vmem:[%s4 + $0x50] sm:$0xff]
    %v4013 = vld [vmem:[%s4 + $0x58] sm:$0xff]
    %v4014 = vld [vmem:[%s4 + $0x60] sm:$0xff]
    %v4015 = vld [vmem:[%s4 + $0x68] sm:$0xff]
    %v4016 = vld [vmem:[%s4 + $0x70] sm:$0xff]
    %v4017 = vld [vmem:[%s4 + $0x78] sm:$0xff]
    %v4018 = vld [vmem:[%s4 + $0x80] sm:$0xff]
    %v4019 = vld [vmem:[%s4 + $0x88] sm:$0xff]
    %v4020 = vld [vmem:[%s4 + $0x90] sm:$0xff]
    %v4021 = vld [vmem:[%s4 + $0x98] sm:$0xff]
    %v4022 = vld [vmem:[%s4 + $0xa0] sm:$0xff]
    %v4023 = vld [vmem:[%s4 + $0xa8] sm:$0xff]
    %v4024 = vld [vmem:[%s4 + $0xb0] sm:$0xff]
    %v4025 = vld [vmem:[%s4 + $0xb8] sm:$0xff]
    %v4026 = vld [vmem:[%s4 + $0xc0] sm:$0xff]
    %v4027 = vld [vmem:[%s4 + $0xc8] sm:$0xff]
    %v4028 = vld [vmem:[%s4 + $0xd0] sm:$0xff]
    %v4029 = vld [vmem:[%s4 + $0xd8] sm:$0xff]
    %v4030 = vld [vmem:[%s4 + $0xe0] sm:$0xff]
    %v4031 = vld [vmem:[%s4 + $0xe8] sm:$0xff]
    %v4032 = vld [vmem:[%s4 + $0xf0] sm:$0xff]
    %v4033 = vld [vmem:[%s4 + $0xf8] sm:$0xff]
    %v4034 = vld [vmem:[%s4 + $0x100] sm:$0xff]
    %v4035 = vld [vmem:[%s4 + $0x108] sm:$0xff]
    %v4036 = vld [vmem:[%s4 + $0x110] sm:$0xff]
    %v4037 = vld [vmem:[%s4 + $0x118] sm:$0xff]
    %v4038 = vld [vmem:[%s4 + $0x120] sm:$0xff]
    %v4039 = vld [vmem:[%s4 + $0x128] sm:$0xff]
    %v4040 = vld [vmem:[%s4 + $0x130] sm:$0xff]
    %v4041 = vld [vmem:[%s4 + $0x138] sm:$0xff]
    %v4042 = vld [vmem:[%s4 + $0x140] sm:$0xff]
    %v4043 = vld [vmem:[%s4 + $0x148] sm:$0xff]
    %v4044 = vld [vmem:[%s4 + $0x150] sm:$0xff]
    %v4045 = vld [vmem:[%s4 + $0x158] sm:$0xff]
    %v4046 = vld [vmem:[%s4 + $0x160] sm:$0xff]
    %v4047 = vld [vmem:[%s4 + $0x168] sm:$0xff]
    %v4048 = vld [vmem:[%s4 + $0x170] sm:$0xff]
    %v4049 = vld [vmem:[%s4 + $0x178] sm:$0xff]
    %v4050 = vld [vmem:[%s4 + $0x180] sm:$0xff]
    %v4051 = vld [vmem:[%s4 + $0x188] sm:$0xff]
    %v4052 = vld [vmem:[%s4 + $0x190] sm:$0xff]
    %v4053 = vld [vmem:[%s4 + $0x198] sm:$0xff]
    %v4054 = vld [vmem:[%s4 + $0x1a0] sm:$0xff]
    %v4055 = vld [vmem:[%s4 + $0x1a8] sm:$0xff]
    %v4056 = vld [vmem:[%s4 + $0x1b0] sm:$0xff]
    %v4057 = vld [vmem:[%s4 + $0x1b8] sm:$0xff]
    %v4058 = vld [vmem:[%s4 + $0x1c0] sm:$0xff]
    %v4059 = vld [vmem:[%s4 + $0x1c8] sm:$0xff]
    %v4060 = vld [vmem:[%s4 + $0x1d0] sm:$0xff]
    %v4061 = vld [vmem:[%s4 + $0x1d8] sm:$0xff]
    %v4062 = vld [vmem:[%s4 + $0x1e0] sm:$0xff]
    %v4063 = vld [vmem:[%s4 + $0x1e8] sm:$0xff]
    %v4064 = vld [vmem:[%s4 + $0x1f0] sm:$0xff]
    %v4065 = vld [vmem:[%s4 + $0x1f8] sm:$0xff]
    %v4066 = vld [vmem:[%s5] sm:$0x3]
    %v4068 = vperm.slane %v4066, 0
    %v4069 = vperm.slane %v4066, 1
    %4072 = vmatpush.msra.mxu0 %v4032
    %4073 = vmatpush.msra.mxu0 %v4030
    %4074 = vmatpush.msra.mxu0 %v4028
    %4075 = vmatpush.msra.mxu0 %v4026
    %4076 = vmatpush.msra.mxu0 %v4024
    %4077 = vmatpush.msra.mxu0 %v4022
    %4078 = vmatpush.msra.mxu0 %v4020
    %4079 = vmatpush.msra.mxu0 %v4018
    %4080 = vmatpush.msra.mxu0 %v4016
    %4081 = vmatpush.msra.mxu0 %v4014
    %4082 = vmatpush.msra.mxu0 %v4012
    %4083 = vmatpush.msra.mxu0 %v4010
    %4084 = vmatpush.msra.mxu0 %v4008
    %4085 = vmatpush.msra.mxu0 %v4006
    %4086 = vmatpush.msra.mxu0 %v4004
    %4087 = vmatpush.msra.mxu0 %v4002
    %4088 = vmatmul.f32.gmra.mxu0 %v4000
    %v4089 = vpop.f32.mrf.mxu0
    %v4090 = vadd.f32 %v4068, %v4089
    %4091 = vdwg.mxu0
    %4092 = vmatpush.msra.mxu0 %v4064
    %4093 = vmatpush.msra.mxu0 %v4062
    %4094 = vmatpush.msra.mxu0 %v4060
    %4095 = vmatpush.msra.mxu0 %v4058
    %4096 = vmatpush.msra.mxu0 %v4056
    %4097 = vmatpush.msra.mxu0 %v4054
    %4098 = vmatpush.msra.mxu0 %v4052
    %4099 = vmatpush.msra.mxu0 %v4050
    %4100 = vmatpush.msra.mxu0 %v4048
    %4101 = vmatpush.msra.mxu0 %v4046
    %4102 = vmatpush.msra.mxu0 %v4044
    %4103 = vmatpush.msra.mxu0 %v4042
    %4104 = vmatpush.msra.mxu0 %v4040
    %4105 = vmatpush.msra.mxu0 %v4038
    %4106 = vmatpush.msra.mxu0 %v4036
    %4107 = vmatpush.msra.mxu0 %v4034
    %4108 = vmatmul.f32.gmra.mxu0 %v4001
    %v4109 = vpop.f32.mrf.mxu0
    %v4110 = vadd.f32 %v4090, %v4109
    %4111 = vdwg.mxu0
    %4112 = vmatpush.msra.mxu0 %v4033
    %4113 = vmatpush.msra.mxu0 %v4031
    %4114 = vmatpush.msra.mxu0 %v4029
    %4115 = vmatpush.msra.mxu0 %v4027
    %4116 = vmatpush.msra.mxu0 %v4025
    %4117 = vmatpush.msra.mxu0 %v4023
    %4118 = vmatpush.msra.mxu0 %v4021
    %4119 = vmatpush.msra.mxu0 %v4019
    %4120 = vmatpush.msra.mxu0 %v4017
    %4121 = vmatpush.msra.mxu0 %v4015
    %4122 = vmatpush.msra.mxu0 %v4013
    %4123 = vmatpush.msra.mxu0 %v4011
    %4124 = vmatpush.msra.mxu0 %v4009
    %4125 = vmatpush.msra.mxu0 %v4007
    %4126 = vmatpush.msra.mxu0 %v4005
    %4127 = vmatpush.msra.mxu0 %v4003
    %4128 = vmatmul.f32.gmra.mxu0 %v4000
    %v4129 = vpop.f32.mrf.mxu0
    %v4130 = vadd.f32 %v4069, %v4129
    %4131 = vdwg.mxu0
    %4132 = vmatpush.msra.mxu0 %v4065
    %4133 = vmatpush.msra.mxu0 %v4063
    %4134 = vmatpush.msra.mxu0 %v4061
    %4135 = vmatpush.msra.mxu0 %v4059
    %4136 = vmatpush.msra.mxu0 %v4057
    %4137 = vmatpush.msra.mxu0 %v4055
    %4138 = vmatpush.msra.mxu0 %v4053
    %4139 = vmatpush.msra.mxu0 %v4051
    %4140 = vmatpush.msra.mxu0 %v4049
    %4141 = vmatpush.msra.mxu0 %v4047
    %4142 = vmatpush.msra.mxu0 %v4045
    %4143 = vmatpush.msra.mxu0 %v4043
    %4144 = vmatpush.msra.mxu0 %v4041
    %4145 = vmatpush.msra.mxu0 %v4039
    %4146 = vmatpush.msra.mxu0 %v4037
    %4147 = vmatpush.msra.mxu0 %v4035
    %4148 = vmatmul.f32.gmra.mxu0 %v4001
    %v4149 = vpop.f32.mrf.mxu0
    %v4150 = vadd.f32 %v4130, %v4149
    %4151 = vdwg.mxu0
    %v4152 = vtanh.pop %v4110
    %v4153 = vtanh.pop %v4150
    %v4154 = vld [vmem:[%s6] sm:$0xff]
    %v4155 = vld [vmem:[%s6 + $0x8] sm:$0xff]
    %v4156 = vld [vmem:[%s6 + $0x10] sm:$0xff]
    %v4157 = vld [vmem:[%s6 + $0x18] sm:$0xff]
    %v4158 = vld [vmem:[%s6 + $0x20] sm:$0xff]
    %v4159 = vld [vmem:[%s6 + $0x28] sm:$0xff]
    %v4160 = vld [vmem:[%s6 + $0x30] sm:$0xff]
    %v4161 = vld [vmem:[%s6 + $0x38] sm:$0xff]
    %v4162 = vld [vmem:[%s6 + $0x40] sm:$0xff]
    %v4163 = vld [vmem:[%s6 + $0x48] sm:$0xff]
    %v4164 = vld [vmem:[%s6 + $0x50] sm:$0xff]
    %v4165 = vld [vmem:[%s6 + $0x58] sm:$0xff]
    %v4166 = vld [vmem:[%s6 + $0x60] sm:$0xff]
    %v4167 = vld [vmem:[%s6 + $0x68] sm:$0xff]
    %v4168 = vld [vmem:[%s6 + $0x70] sm:$0xff]
    %v4169 = vld [vmem:[%s6 + $0x78] sm:$0xff]
    %v4170 = vld [vmem:[%s6 + $0x80] sm:$0xff]
    %v4171 = vld [vmem:[%s6 + $0x88] sm:$0xff]
    %v4172 = vld [vmem:[%s6 + $0x90] sm:$0xff]
    %v4173 = vld [vmem:[%s6 + $0x98] sm:$0xff]
    %v4174 = vld [vmem:[%s6 + $0xa0] sm:$0xff]
    %v4175 = vld [vmem:[%s6 + $0xa8] sm:$0xff]
    %v4176 = vld [vmem:[%s6 + $0xb0] sm:$0xff]
    %v4177 = vld [vmem:[%s6 + $0xb8] sm:$0xff]
    %v4178 = vld [vmem:[%s6 + $0xc0] sm:$0xff]
    %v4179 = vld [vmem:[%s6 + $0xc8] sm:$0xff]
    %v4180 = vld [vmem:[%s6 + $0xd0] sm:$0xff]
    %v4181 = vld [vmem:[%s6 + $0xd8] sm:$0xff]
    %v4182 = vld [vmem:[%s6 + $0xe0] sm:$0xff]
    %v4183 = vld [vmem:[%s6 + $0xe8] sm:$0xff]
    %v4184 = vld [vmem:[%s6 + $0xf0] sm:$0xff]
    %v4185 = vld [vmem:[%s6 + $0xf8] sm:$0xff]
    %v4186 = vld [vmem:[%s7] sm:$0x1]
    %v4188 = vperm.slane %v4186, 0
    %4190 = vmatpush.msra.mxu0 %v4169
    %4191 = vmatpush.msra.mxu0 %v4168
    %4192 = vmatpush.msra.mxu0 %v4167
    %4193 = vmatpush.msra.mxu0 %v4166
    %4194 = vmatpush.msra.mxu0 %v4165
    %4195 = vmatpush.msra.mxu0 %v4164
    %4196 = vmatpush.msra.mxu0 %v4163
    %4197 = vmatpush.msra.mxu0 %v4162
    %4198 = vmatpush.msra.mxu0 %v4161
    %4199 = vmatpush.msra.mxu0 %v4160
    %4200 = vmatpush.msra.mxu0 %v4159
    %4201 = vmatpush.msra.mxu0 %v4158
    %4202 = vmatpush.msra.mxu0 %v4157
    %4203 = vmatpush.msra.mxu0 %v4156
    %4204 = vmatpush.msra.mxu0 %v4155
    %4205 = vmatpush.msra.mxu0 %v4154
    %4206 = vmatmul.f32.gmra.mxu0 %v4152
    %v4207 = vpop.f32.mrf.mxu0
    %v4208 = vadd.f32 %v4188, %v4207
    %4209 = vdwg.mxu0
    %4210 = vmatpush.msra.mxu0 %v4185
    %4211 = vmatpush.msra.mxu0 %v4184
    %4212 = vmatpush.msra.mxu0 %v4183
    %4213 = vmatpush.msra.mxu0 %v4182
    %4214 = vmatpush.msra.mxu0 %v4181
    %4215 = vmatpush.msra.mxu0 %v4180
    %4216 = vmatpush.msra.mxu0 %v4179
    %4217 = vmatpush.msra.mxu0 %v4178
    %4218 = vmatpush.msra.mxu0 %v4177
    %4219 = vmatpush.msra.mxu0 %v4176
    %4220 = vmatpush.msra.mxu0 %v4175
    %4221 = vmatpush.msra.mxu0 %v4174
    %4222 = vmatpush.msra.mxu0 %v4173
    %4223 = vmatpush.msra.mxu0 %v4172
    %4224 = vmatpush.msra.mxu0 %v4171
    %4225 = vmatpush.msra.mxu0 %v4170
    %4226 = vmatmul.f32.gmra.mxu0 %v4153
    %v4227 = vpop.f32.mrf.mxu0
    %v4228 = vadd.f32 %v4208, %v4227
    %4229 = vdwg.mxu0
    %vm4230 = vcmask 64512
    %v4231 = vsel %vm4230, %v4228, -inf
    %4232 = vmax.xlane.f32.xlu0 %v4231
    %v4233 = vpop.xlane.xlu0 %4232
    %v4234 = vsub.f32 %v4228, %v4233
    %v4235 = vmul.f32 %v4234, 1.442695
    %v4236 = vpow.pop %v4235
    %v4237 = vsel %vm4230, %v4236, 0.0
    %4238 = vadd.xlane.f32.xlu0 %v4237
    %v4239 = vpop.xlane.xlu0 %4238
    %v4240 = vrcp.pop %v4239
    %v4241 = vmul.f32 %v4239, %v4240
    %v4242 = vsub.f32 1.0, %v4241
    %v4243 = vmul.f32 %v4240, %v4242
    %v4244 = vadd.f32 %v4240, %v4243
    %vm4245 = vweird.f32 %v4239
    %vm4246 = vweird.f32 %v4240
    %vm4247 = vmor %vm4245, %vm4246
    %v4248 = vsel %vm4247, %v4240, %v4244
    %v4249 = vand.u32 2147483647, %v4239
    %vm4250 = vcmp.eq.f32.partialorder %v4249, 8.507059e+37
    %v4251 = vand.u32 %v4239, 2147483648
    %v4252 = vor.u32 1.1754944e-38, %v4251
    %v4253 = vsel %vm4250, %v4252, %v4248
    %v4254 = vmul.f32 %v4236, %v4253
    %4256 = vset.pattern.permute.xlu0 0
    %4257 = vperm.xlu0 %4256, %v4254
    %v4258 = vpop.permute.xlu0 %4257
    %v4260 = vmul.f32 %v4258, %v759
    %v4261 = vmul.f32 %v4258, %v760
    %v4262 = vadd.f32 %v4260, 0.0
    %v4263 = vadd.f32 %v4261, 0.0
    %4264 = vset.pattern.permute.xlu0 1
    %4265 = vperm.xlu0 %4264, %v4254
    %v4266 = vpop.permute.xlu0 %4265
    %v4268 = vmul.f32 %v4266, %v1222
    %v4269 = vmul.f32 %v4266, %v1223
    %v4270 = vadd.f32 %v4262, %v4268
    %v4271 = vadd.f32 %v4263, %v4269
    %4272 = vset.pattern.permute.xlu0 2
    %4273 = vperm.xlu0 %4272, %v4254
    %v4274 = vpop.permute.xlu0 %4273
    %v4276 = vmul.f32 %v4274, %v1685
    %v4277 = vmul.f32 %v4274, %v1686
    %v4278 = vadd.f32 %v4270, %v4276
    %v4279 = vadd.f32 %v4271, %v4277
    %4280 = vset.pattern.permute.xlu0 3
    %4281 = vperm.xlu0 %4280, %v4254
    %v4282 = vpop.permute.xlu0 %4281
    %v4284 = vmul.f32 %v4282, %v2148
    %v4285 = vmul.f32 %v4282, %v2149
    %v4286 = vadd.f32 %v4278, %v4284
    %v4287 = vadd.f32 %v4279, %v4285
    %4288 = vset.pattern.permute.xlu0 4
    %4289 = vperm.xlu0 %4288, %v4254
    %v4290 = vpop.permute.xlu0 %4289
    %v4292 = vmul.f32 %v4290, %v2611
    %v4293 = vmul.f32 %v4290, %v2612
    %v4294 = vadd.f32 %v4286, %v4292
    %v4295 = vadd.f32 %v4287, %v4293
    %4296 = vset.pattern.permute.xlu0 5
    %4297 = vperm.xlu0 %4296, %v4254
    %v4298 = vpop.permute.xlu0 %4297
    %v4300 = vmul.f32 %v4298, %v3074
    %v4301 = vmul.f32 %v4298, %v3075
    %v4302 = vadd.f32 %v4294, %v4300
    %v4303 = vadd.f32 %v4295, %v4301
    %4304 = vset.pattern.permute.xlu0 6
    %4305 = vperm.xlu0 %4304, %v4254
    %v4306 = vpop.permute.xlu0 %4305
    %v4308 = vmul.f32 %v4306, %v3537
    %v4309 = vmul.f32 %v4306, %v3538
    %v4310 = vadd.f32 %v4302, %v4308
    %v4311 = vadd.f32 %v4303, %v4309
    %4312 = vset.pattern.permute.xlu0 7
    %4313 = vperm.xlu0 %4312, %v4254
    %v4314 = vpop.permute.xlu0 %4313
    %v4316 = vmul.f32 %v4314, %v4000
    %v4317 = vmul.f32 %v4314, %v4001
    %v4318 = vadd.f32 %v4310, %v4316
    %v4319 = vadd.f32 %v4311, %v4317
    %v4320 = vld [vmem:[%s8] sm:$0xff]
    %v4321 = vld [vmem:[%s8 + $0x8] sm:$0xff]
    %v4322 = vld [vmem:[%s8 + $0x10] sm:$0xff]
    %v4323 = vld [vmem:[%s8 + $0x18] sm:$0xff]
    %v4324 = vld [vmem:[%s8 + $0x20] sm:$0xff]
    %v4325 = vld [vmem:[%s8 + $0x28] sm:$0xff]
    %v4326 = vld [vmem:[%s8 + $0x30] sm:$0xff]
    %v4327 = vld [vmem:[%s8 + $0x38] sm:$0xff]
    %v4328 = vld [vmem:[%s8 + $0x40] sm:$0xff]
    %v4329 = vld [vmem:[%s8 + $0x48] sm:$0xff]
    %v4330 = vld [vmem:[%s8 + $0x50] sm:$0xff]
    %v4331 = vld [vmem:[%s8 + $0x58] sm:$0xff]
    %v4332 = vld [vmem:[%s8 + $0x60] sm:$0xff]
    %v4333 = vld [vmem:[%s8 + $0x68] sm:$0xff]
    %v4334 = vld [vmem:[%s8 + $0x70] sm:$0xff]
    %v4335 = vld [vmem:[%s8 + $0x78] sm:$0xff]
    %v4336 = vld [vmem:[%s8 + $0x80] sm:$0xff]
    %v4337 = vld [vmem:[%s8 + $0x88] sm:$0xff]
    %v4338 = vld [vmem:[%s8 + $0x90] sm:$0xff]
    %v4339 = vld [vmem:[%s8 + $0x98] sm:$0xff]
    %v4340 = vld [vmem:[%s8 + $0xa0] sm:$0xff]
    %v4341 = vld [vmem:[%s8 + $0xa8] sm:$0xff]
    %v4342 = vld [vmem:[%s8 + $0xb0] sm:$0xff]
    %v4343 = vld [vmem:[%s8 + $0xb8] sm:$0xff]
    %v4344 = vld [vmem:[%s8 + $0xc0] sm:$0xff]
    %v4345 = vld [vmem:[%s8 + $0xc8] sm:$0xff]
    %v4346 = vld [vmem:[%s8 + $0xd0] sm:$0xff]
    %v4347 = vld [vmem:[%s8 + $0xd8] sm:$0xff]
    %v4348 = vld [vmem:[%s8 + $0xe0] sm:$0xff]
    %v4349 = vld [vmem:[%s8 + $0xe8] sm:$0xff]
    %v4350 = vld [vmem:[%s8 + $0xf0] sm:$0xff]
    %v4351 = vld [vmem:[%s8 + $0xf8] sm:$0xff]
    %v4352 = vld [vmem:[%s9] sm:$0x1]
    %v4354 = vperm.slane %v4352, 0
    %4356 = vmatpush.msra.mxu0 %v4335
    %4357 = vmatpush.msra.mxu0 %v4334
    %4358 = vmatpush.msra.mxu0 %v4333
    %4359 = vmatpush.msra.mxu0 %v4332
    %4360 = vmatpush.msra.mxu0 %v4331
    %4361 = vmatpush.msra.mxu0 %v4330
    %4362 = vmatpush.msra.mxu0 %v4329
    %4363 = vmatpush.msra.mxu0 %v4328
    %4364 = vmatpush.msra.mxu0 %v4327
    %4365 = vmatpush.msra.mxu0 %v4326
    %4366 = vmatpush.msra.mxu0 %v4325
    %4367 = vmatpush.msra.mxu0 %v4324
    %4368 = vmatpush.msra.mxu0 %v4323
    %4369 = vmatpush.msra.mxu0 %v4322
    %4370 = vmatpush.msra.mxu0 %v4321
    %4371 = vmatpush.msra.mxu0 %v4320
    %4372 = vmatmul.f32.gmra.mxu0 %v4318
    %v4373 = vpop.f32.mrf.mxu0
    %v4374 = vadd.f32 %v4354, %v4373
    %4375 = vdwg.mxu0
    %4376 = vmatpush.msra.mxu0 %v4351
    %4377 = vmatpush.msra.mxu0 %v4350
    %4378 = vmatpush.msra.mxu0 %v4349
    %4379 = vmatpush.msra.mxu0 %v4348
    %4380 = vmatpush.msra.mxu0 %v4347
    %4381 = vmatpush.msra.mxu0 %v4346
    %4382 = vmatpush.msra.mxu0 %v4345
    %4383 = vmatpush.msra.mxu0 %v4344
    %4384 = vmatpush.msra.mxu0 %v4343
    %4385 = vmatpush.msra.mxu0 %v4342
    %4386 = vmatpush.msra.mxu0 %v4341
    %4387 = vmatpush.msra.mxu0 %v4340
    %4388 = vmatpush.msra.mxu0 %v4339
    %4389 = vmatpush.msra.mxu0 %v4338
    %4390 = vmatpush.msra.mxu0 %v4337
    %4391 = vmatpush.msra.mxu0 %v4336
    %4392 = vmatmul.f32.gmra.mxu0 %v4319
    %v4393 = vpop.f32.mrf.mxu0
    %v4394 = vadd.f32 %v4374, %v4393
    %4395 = vdwg.mxu0
    %4396 = vst.msk [vmem:[#allocation2] sm:$0xff] %vm4230, %v4394
    %4397 = vst.msk [vmem:[#allocation4] sm:$0xff] %vm4230, %v4254
    // Predicated region
    $region42: #{_lambda_.1} parent=1 // pred_check
      _
    $region43: #{_lambda_.1} parent=1 // pred_check_branch
      %4399 = sbr.rel (0) target = $region45
    $region44: #{_lambda_.1} parent=1 // pred_region
      %4401 = vsyncadd [#allocation3], 0
      %s4403 = sshll.u32 [#allocation2], 4
      %s4404 = int_to_ptr.vmem [resolvable:$true] %s4403
      %s4405 = sshll.u32 %s10, 4
      %s4406 = int_to_ptr.hbm [resolvable:$true] %s4405
      %4408 = dma.vmem_to_hbm [thread:$0]  %s4404, 128, %s4406, [#allocation3]
    $region45: #{_lambda_.1} parent=1 // pred_fallthru
      _
    // Predicated region
    $region46: #{_lambda_.1} parent=1 // pred_check
      _
    $region47: #{_lambda_.1} parent=1 // pred_check_branch
      %4410 = sbr.rel (0) target = $region49
    $region48: #{_lambda_.1} parent=1 // pred_region
      %4412 = vsyncadd [#allocation5], 0
      %s4414 = sshll.u32 [#allocation4], 4
      %s4415 = int_to_ptr.vmem [resolvable:$true] %s4414
      %s4416 = sshll.u32 %s11, 4
      %s4417 = int_to_ptr.hbm [resolvable:$true] %s4416
      %4419 = dma.vmem_to_hbm [thread:$0]  %s4415, 128, %s4417, [#allocation5]
    $region49: #{_lambda_.1} parent=1 // pred_fallthru
      _
    // Predicated region
    $region50: #{_lambda_.1} parent=1 // pred_check
      _
    $region51: #{_lambda_.1} parent=1 // pred_check_branch
      %4421 = sbr.rel (0) target = $region53
    $region52: #{_lambda_.1} parent=1 // pred_region
      %4423 = dma.done [#allocation3], 128
    $region53: #{_lambda_.1} parent=1 // pred_fallthru
      _
    // Predicated region
    $region54: #{_lambda_.1} parent=1 // pred_check
      _
    $region55: #{_lambda_.1} parent=1 // pred_check_branch
      %4425 = sbr.rel (0) target = $region57
    $region56: #{_lambda_.1} parent=1 // pred_region
      %4427 = dma.done [#allocation5], 128
    $region57: #{_lambda_.1} parent=1 // pred_fallthru
      _
    %4428 = vsyncpa [#allocation3], 1
    %4429 = vsyncpa [#allocation5], 1

</llo_original>
